<compile_context>
chip_gen: v7x
topology: tpu7x:2x2x1
jax: 0.10.0
libtpu: 0.0.40
codegen_flags: <defaults>
</compile_context>

<pallas_src>
import functools

import jax
import jax.numpy as jnp
import numpy as np
from jax import lax
from jax.experimental import pallas as pl
from jax.experimental.pallas import tpu as pltpu


# ----------------------------- kernel helpers -----------------------------


def _unnormalize(pts_ref, D, H, W):
    """align_corners=True unnormalization + border clamp; returns (1, TN) rows."""
    def u(row, size):
        v = (pts_ref[row:row + 1, :].astype(jnp.float32) + 1.0) * (0.5 * (size - 1.0))
        return jnp.clip(v, 0.0, float(size - 1))
    # point rows are (x, y, z) -> (W, H, D) axes (torch grid_sample convention)
    return u(0, W), u(1, H), u(2, D)


def _floordiv_exact(a, b):
    """floor(a / b) for non-negative integer-valued f32 `a`, python int b.

    Robust to the 1-2 ulp error of the hardware f32 divide via a +/-1 fix-up.
    """
    q = jnp.floor(a / float(b))
    r = a - q * b
    return q + (r >= b).astype(jnp.float32) - (r < 0.0).astype(jnp.float32)


def _chunk_weights(off, chunk_k, ux, uy, uz, H, W, dtype):
    """(chunk_k, TN) trilinear weights for flat DHW indices [off, off+chunk_k)."""
    flat = (lax.broadcasted_iota(jnp.int32, (chunk_k, 1), 0) + off).astype(jnp.float32)
    q = _floordiv_exact(flat, W)            # = d*H + h
    w_col = flat - q * W                    # (chunk_k, 1)
    d_col = _floordiv_exact(q, H)
    h_col = q - d_col * H

    def tent(col, u):
        t = (col - u).astype(dtype)         # subtraction in f32, single cast
        return jnp.maximum(1.0 - jnp.abs(t), 0.0)

    return tent(w_col, ux) * tent(h_col, uy) * tent(d_col, uz)


# ------------------------------ kernel bodies ------------------------------


def _fv_kernel_resident(pts_ref, fm_ref, o_ref, *, D, H, W, chunk_k, num_chunks,
                        compute_dtype):
    """Resident-fm path.

    pts_ref : (3, TN)                    f32 normalized coords
    fm_ref  : (num_chunks, C, chunk_k)   compute_dtype, VMEM-resident
    o_ref   : (C, TN)                    lane-dense output block
    """
    ux, uy, uz = _unnormalize(pts_ref, D, H, W)
    C = fm_ref.shape[1]
    tn = o_ref.shape[1]

    def body(s, acc):
        off = s * chunk_k
        wts = _chunk_weights(off, chunk_k, ux, uy, uz, H, W, compute_dtype)
        return acc + jnp.dot(fm_ref[s], wts, preferred_element_type=jnp.float32)

    acc = lax.fori_loop(0, num_chunks, body,
                        jnp.zeros((C, tn), jnp.float32),
                        unroll=(num_chunks <= 8))
    o_ref[...] = acc.astype(o_ref.dtype)


def _fv_kernel_chunked(pts_ref, fm_ref, o_ref, acc_ref, *, D, H, W, chunk_k,
                       chunks_per_block, compute_dtype):
    """Chunked fallback for volumes too large to keep resident.

    Grid = (point tiles [parallel], DHW blocks [arbitrary reduction]).
    fm_ref : (chunks_per_block, C, chunk_k) block of the packed volume
    acc_ref: (C, TN) f32 accumulator, persists across the DHW grid axis
    """
    k = pl.program_id(1)

    @pl.when(k == 0)
    def _():
        acc_ref[...] = jnp.zeros_like(acc_ref)

    ux, uy, uz = _unnormalize(pts_ref, D, H, W)
    base = k * (chunks_per_block * chunk_k)

    def body(s, acc):
        off = base + s * chunk_k
        wts = _chunk_weights(off, chunk_k, ux, uy, uz, H, W, compute_dtype)
        return acc + jnp.dot(fm_ref[s], wts, preferred_element_type=jnp.float32)

    acc = lax.fori_loop(0, chunks_per_block, body, acc_ref[...],
                        unroll=(chunks_per_block <= 8))
    acc_ref[...] = acc

    @pl.when(k == pl.num_programs(1) - 1)
    def _():
        o_ref[...] = acc.astype(o_ref.dtype)


# -------------------------------- wrapper ----------------------------------


def feature_volume_forward(fm, x, *, tile_n=512, chunk_k=256, chunks_per_block=8,
                           compute_dtype=jnp.bfloat16,
                           max_resident_bytes=16 * 1024 * 1024):
    """fm: (1, C, D, H, W); x: (N, 3) or (N, K, 3) -> (N, C) or (N, K, C)."""
    assert tile_n % 128 == 0 and chunk_k % 128 == 0 and chunks_per_block >= 1

    orig_shape = x.shape
    pts = x.reshape(-1, 3).astype(jnp.float32)
    N = pts.shape[0]

    C, D, H, W = fm.shape[1:]
    DHW = D * H * W
    itemsize = jnp.dtype(compute_dtype).itemsize

    # ---- choose resident vs chunked fm, pad DHW accordingly ----
    resident = C * (pl.cdiv(DHW, chunk_k) * chunk_k) * itemsize <= max_resident_bytes
    block_k = chunk_k if resident else chunk_k * chunks_per_block
    dhw_pad = pl.cdiv(DHW, block_k) * block_k
    num_chunks = dhw_pad // chunk_k

    # Pack fm channels-first and chunk the DHW axis: (num_chunks, C, chunk_k).
    # (This pad/cast/reshape only depends on the parameter; callers that invoke
    # the forward repeatedly should hoist/cache fm_packed.)
    fm_cd = fm[0].reshape(C, DHW)
    fm_cd = jnp.pad(fm_cd, ((0, 0), (0, dhw_pad - DHW))).astype(compute_dtype)
    fm_packed = fm_cd.reshape(C, num_chunks, chunk_k).transpose(1, 0, 2)

    # ---- point tiling: prefer >= 2 tiles so v7x can shard across its 2 TCs ----
    tn = tile_n
    while tn >= 512 and pl.cdiv(N, tn) < 2:
        tn //= 2
    n_pad = pl.cdiv(N, tn) * tn
    n_tiles = n_pad // tn
    pts_t = jnp.pad(pts, ((0, n_pad - N), (0, 0))).T          # (3, n_pad)

    if resident:
        kernel = functools.partial(
            _fv_kernel_resident, D=D, H=H, W=W, chunk_k=chunk_k,
            num_chunks=num_chunks, compute_dtype=compute_dtype)
        fm_bytes = C * dhw_pad * itemsize
        # 2x for (possible) double buffering + headroom for weight temporaries;
        # capped at 48 MiB so the plan also fits a 64 MiB/TC v7x.
        vmem_limit = int(max(32 << 20, min(48 << 20, 2 * fm_bytes + (16 << 20))))
        out_t = pl.pallas_call(
            kernel,
            out_shape=jax.ShapeDtypeStruct((C, n_pad), fm.dtype),
            grid_spec=pltpu.PrefetchScalarGridSpec(
                num_scalar_prefetch=0,
                grid=(n_tiles,),
                in_specs=[
                    pl.BlockSpec((3, tn), lambda i: (0, i)),               # points
                    pl.BlockSpec((num_chunks, C, chunk_k),
                                 lambda i: (0, 0, 0)),                     # fm (resident)
                ],
                out_specs=pl.BlockSpec((C, tn), lambda i: (0, i)),
            ),
            compiler_params=pltpu.CompilerParams(
                dimension_semantics=("parallel",),
                vmem_limit_bytes=vmem_limit,
            ),
        )(pts_t, fm_packed)
    else:
        k_blocks = num_chunks // chunks_per_block
        kernel = functools.partial(
            _fv_kernel_chunked, D=D, H=H, W=W, chunk_k=chunk_k,
            chunks_per_block=chunks_per_block, compute_dtype=compute_dtype)
        out_t = pl.pallas_call(
            kernel,
            out_shape=jax.ShapeDtypeStruct((C, n_pad), fm.dtype),
            grid_spec=pltpu.PrefetchScalarGridSpec(
                num_scalar_prefetch=0,
                grid=(n_tiles, k_blocks),                 # reduction axis last
                in_specs=[
                    pl.BlockSpec((3, tn), lambda i, k: (0, i)),            # points
                    pl.BlockSpec((chunks_per_block, C, chunk_k),
                                 lambda i, k: (k, 0, 0)),                  # fm block
                ],
                out_specs=pl.BlockSpec((C, tn), lambda i, k: (0, i)),
                scratch_shapes=[pltpu.VMEM((C, tn), jnp.float32)],
            ),
            compiler_params=pltpu.CompilerParams(
                dimension_semantics=("parallel", "arbitrary"),
                vmem_limit_bytes=32 * 1024 * 1024,
            ),
        )(pts_t, fm_packed)

    out = out_t[:, :N].T                                      # (N, C)
    if x.ndim == 3:
        out = out.reshape(orig_shape[0], orig_shape[1], C)
    return out


# ------------------------------ pure-JAX ref --------------------------------


def reference_forward(fm, x):
    """Pure-JAX trilinear grid_sample (align_corners=True, border) reference."""
    C, D, H, W = fm.shape[1:]
    pts = x.reshape(-1, 3)

    def unnorm(c, size):
        return jnp.clip((c + 1.0) * 0.5 * (size - 1.0), 0.0, size - 1.0)

    ux, uy, uz = unnorm(pts[:, 0], W), unnorm(pts[:, 1], H), unnorm(pts[:, 2], D)
    x0, y0, z0 = jnp.floor(ux), jnp.floor(uy), jnp.floor(uz)
    tx, ty, tz = ux - x0, uy - y0, uz - z0
    x0i, y0i, z0i = x0.astype(jnp.int32), y0.astype(jnp.int32), z0.astype(jnp.int32)
    x1i = jnp.minimum(x0i + 1, W - 1)
    y1i = jnp.minimum(y0i + 1, H - 1)
    z1i = jnp.minimum(z0i + 1, D - 1)
    vol = fm[0]                                   # (C, D, H, W)

    def g(zi, yi, xi):
        return vol[:, zi, yi, xi].T               # (N, C)

    txc, tyc, tzc = tx[:, None], ty[:, None], tz[:, None]
    out = ((1 - tzc) * ((1 - tyc) * ((1 - txc) * g(z0i, y0i, x0i) + txc * g(z0i, y0i, x1i))
                        + tyc * ((1 - txc) * g(z0i, y1i, x0i) + txc * g(z0i, y1i, x1i)))
           + tzc * ((1 - tyc) * ((1 - txc) * g(z1i, y0i, x0i) + txc * g(z1i, y0i, x1i))
                    + tyc * ((1 - txc) * g(z1i, y1i, x0i) + txc * g(z1i, y1i, x1i))))
    if x.ndim == 3:
        out = out.reshape(x.shape[0], x.shape[1], C)
    return out


# ---------------------------------- test -----------------------------------


if __name__ == "__main__":
    key = jax.random.PRNGKey(0)
    k_fm, k_x, k_x2 = jax.random.split(key, 3)

    fdim, fsize = 16, 8                            # fm: (1, 16, 9, 9, 9)
    fm = jax.random.normal(
        k_fm, (1, fdim, fsize + 1, fsize + 1, fsize + 1), dtype=jnp.float32) * 0.01

    # Branch 1: x of shape (N, 3) -> (N, fdim). N spans two point tiles and the
    # coordinate range exceeds [-1, 1] to exercise the border clamp.
    N = 300
    x = jax.random.uniform(k_x, (N, 3), minval=-1.1, maxval=1.1, dtype=jnp.float32)
    ref = reference_forward(fm, x)

    # Resident path, exact f32 math.
    out_f32 = jax.block_until_ready(
        feature_volume_forward(fm, x, compute_dtype=jnp.float32))
    assert out_f32.shape == (N, fdim)
    np.testing.assert_allclose(np.asarray(out_f32), np.asarray(ref),
                               atol=1e-5, rtol=1e-5)

    # Resident path, default bf16 weights / MXU operands (f32 accumulation).
    out_bf16 = jax.block_until_ready(feature_volume_forward(fm, x))
    assert out_bf16.shape == (N, fdim)
    np.testing.assert_allclose(np.asarray(out_bf16), np.asarray(ref),
                               atol=2e-3, rtol=0)

    # Chunked fallback path (forced), exercising the multi-step DHW reduction.
    out_chunk = jax.block_until_ready(
        feature_volume_forward(fm, x, max_resident_bytes=0, chunks_per_block=1))
    np.testing.assert_allclose(np.asarray(out_chunk), np.asarray(ref),
                               atol=2e-3, rtol=0)

    # Branch 2: x of shape (N, K, 3) -> (N, K, fdim)
    N2, K = 8, 4
    x2 = jax.random.uniform(k_x2, (N2, K, 3), minval=-1.0, maxval=1.0,
                            dtype=jnp.float32)
    out2 = jax.block_until_ready(feature_volume_forward(fm, x2))
    ref2 = reference_forward(fm, x2)
    assert out2.shape == (N2, K, fdim)
    np.testing.assert_allclose(np.asarray(out2), np.asarray(ref2),
                               atol=2e-3, rtol=0)

    print("KERNEL_OK")
</pallas_src>

<mosaic_0001>
module attributes {stable_mosaic.version = 11 : i64} {
  func.func @_fv_kernel_resident(%arg0: i32, %arg1: memref<3x256xf32, #tpu.memory_space<vmem>>, %arg2: memref<3x16x256xf32, #tpu.memory_space<vmem>>, %arg3: memref<16x256xf32, #tpu.memory_space<vmem>>) attributes {dimension_semantics = [#tpu.dimension_semantics<parallel>], iteration_bounds = array<i64: 2>, scalar_prefetch = 0 : i64, scratch_operands = 0 : i64, tpu.core_type = #tpu.core_type<tc>, window_params = [{transform_indices = @transform_0, window_bounds = array<i64: 3, 256>}, {pipeline_mode = #tpu.pipeline_mode<synchronous>, transform_indices = @transform_1, window_bounds = array<i64: 3, 16, 256>}, {transform_indices = @transform_2, window_bounds = array<i64: 16, 256>}]} {
    %c0 = arith.constant 0 : index
    %c0_0 = arith.constant 0 : index
    %0 = vector.load %arg1[%c0, %c0_0] : memref<3x256xf32, #tpu.memory_space<vmem>>, vector<1x256xf32>
    %cst = arith.constant 1.000000e+00 : f32
    %1 = vector.broadcast %cst : f32 to vector<1x256xf32>
    %2 = arith.addf %0, %1 : vector<1x256xf32>
    %cst_1 = arith.constant 4.000000e+00 : f32
    %3 = vector.broadcast %cst_1 : f32 to vector<1x256xf32>
    %4 = arith.mulf %2, %3 : vector<1x256xf32>
    %cst_2 = arith.constant 0.000000e+00 : f32
    %cst_3 = arith.constant 8.000000e+00 : f32
    %5 = vector.broadcast %cst_2 : f32 to vector<1x256xf32>
    %6 = arith.maximumf %5, %4 : vector<1x256xf32>
    %7 = vector.broadcast %cst_3 : f32 to vector<1x256xf32>
    %8 = arith.minimumf %7, %6 : vector<1x256xf32>
    %c1 = arith.constant 1 : index
    %c0_4 = arith.constant 0 : index
    %9 = vector.load %arg1[%c1, %c0_4] : memref<3x256xf32, #tpu.memory_space<vmem>>, vector<1x256xf32>
    %cst_5 = arith.constant 1.000000e+00 : f32
    %10 = vector.broadcast %cst_5 : f32 to vector<1x256xf32>
    %11 = arith.addf %9, %10 : vector<1x256xf32>
    %cst_6 = arith.constant 4.000000e+00 : f32
    %12 = vector.broadcast %cst_6 : f32 to vector<1x256xf32>
    %13 = arith.mulf %11, %12 : vector<1x256xf32>
    %cst_7 = arith.constant 0.000000e+00 : f32
    %cst_8 = arith.constant 8.000000e+00 : f32
    %14 = vector.broadcast %cst_7 : f32 to vector<1x256xf32>
    %15 = arith.maximumf %14, %13 : vector<1x256xf32>
    %16 = vector.broadcast %cst_8 : f32 to vector<1x256xf32>
    %17 = arith.minimumf %16, %15 : vector<1x256xf32>
    %c2 = arith.constant 2 : index
    %c0_9 = arith.constant 0 : index
    %18 = vector.load %arg1[%c2, %c0_9] : memref<3x256xf32, #tpu.memory_space<vmem>>, vector<1x256xf32>
    %cst_10 = arith.constant 1.000000e+00 : f32
    %19 = vector.broadcast %cst_10 : f32 to vector<1x256xf32>
    %20 = arith.addf %18, %19 : vector<1x256xf32>
    %cst_11 = arith.constant 4.000000e+00 : f32
    %21 = vector.broadcast %cst_11 : f32 to vector<1x256xf32>
    %22 = arith.mulf %20, %21 : vector<1x256xf32>
    %cst_12 = arith.constant 0.000000e+00 : f32
    %cst_13 = arith.constant 8.000000e+00 : f32
    %23 = vector.broadcast %cst_12 : f32 to vector<1x256xf32>
    %24 = arith.maximumf %23, %22 : vector<1x256xf32>
    %25 = vector.broadcast %cst_13 : f32 to vector<1x256xf32>
    %26 = arith.minimumf %25, %24 : vector<1x256xf32>
    %cst_14 = arith.constant 0.000000e+00 : f32
    %27 = vector.broadcast %cst_14 : f32 to vector<16x256xf32>
    %c0_i32 = arith.constant 0 : i32
    %c256_i32 = arith.constant 256 : i32
    %28 = arith.muli %c0_i32, %c256_i32 : i32
    %29 = tpu.iota {dimensions = array<i32: 0>} : vector<256x1xi32>
    %30 = vector.broadcast %28 : i32 to vector<256x1xi32>
    %31 = arith.addi %29, %30 : vector<256x1xi32>
    %32 = arith.sitofp %31 : vector<256x1xi32> to vector<256x1xf32>
    %cst_15 = arith.constant 9.000000e+00 : f32
    %33 = vector.broadcast %cst_15 : f32 to vector<256x1xf32>
    %34 = arith.divf %32, %33 : vector<256x1xf32>
    %35 = math.floor %34 : vector<256x1xf32>
    %cst_16 = arith.constant 9.000000e+00 : f32
    %36 = vector.broadcast %cst_16 : f32 to vector<256x1xf32>
    %37 = arith.mulf %35, %36 : vector<256x1xf32>
    %38 = arith.subf %32, %37 : vector<256x1xf32>
    %cst_17 = arith.constant 9.000000e+00 : f32
    %39 = vector.broadcast %cst_17 : f32 to vector<256x1xf32>
    %40 = arith.cmpf oge, %38, %39 : vector<256x1xf32>
    %41 = arith.extui %40 : vector<256x1xi1> to vector<256x1xi32>
    %42 = arith.sitofp %41 : vector<256x1xi32> to vector<256x1xf32>
    %43 = arith.addf %35, %42 : vector<256x1xf32>
    %cst_18 = arith.constant 0.000000e+00 : f32
    %44 = vector.broadcast %cst_18 : f32 to vector<256x1xf32>
    %45 = arith.cmpf olt, %38, %44 : vector<256x1xf32>
    %46 = arith.extui %45 : vector<256x1xi1> to vector<256x1xi32>
    %47 = arith.sitofp %46 : vector<256x1xi32> to vector<256x1xf32>
    %48 = arith.subf %43, %47 : vector<256x1xf32>
    %cst_19 = arith.constant 9.000000e+00 : f32
    %49 = vector.broadcast %cst_19 : f32 to vector<256x1xf32>
    %50 = arith.mulf %48, %49 : vector<256x1xf32>
    %51 = arith.subf %32, %50 : vector<256x1xf32>
    %cst_20 = arith.constant 9.000000e+00 : f32
    %52 = vector.broadcast %cst_20 : f32 to vector<256x1xf32>
    %53 = arith.divf %48, %52 : vector<256x1xf32>
    %54 = math.floor %53 : vector<256x1xf32>
    %cst_21 = arith.constant 9.000000e+00 : f32
    %55 = vector.broadcast %cst_21 : f32 to vector<256x1xf32>
    %56 = arith.mulf %54, %55 : vector<256x1xf32>
    %57 = arith.subf %48, %56 : vector<256x1xf32>
    %cst_22 = arith.constant 9.000000e+00 : f32
    %58 = vector.broadcast %cst_22 : f32 to vector<256x1xf32>
    %59 = arith.cmpf oge, %57, %58 : vector<256x1xf32>
    %60 = arith.extui %59 : vector<256x1xi1> to vector<256x1xi32>
    %61 = arith.sitofp %60 : vector<256x1xi32> to vector<256x1xf32>
    %62 = arith.addf %54, %61 : vector<256x1xf32>
    %cst_23 = arith.constant 0.000000e+00 : f32
    %63 = vector.broadcast %cst_23 : f32 to vector<256x1xf32>
    %64 = arith.cmpf olt, %57, %63 : vector<256x1xf32>
    %65 = arith.extui %64 : vector<256x1xi1> to vector<256x1xi32>
    %66 = arith.sitofp %65 : vector<256x1xi32> to vector<256x1xf32>
    %67 = arith.subf %62, %66 : vector<256x1xf32>
    %cst_24 = arith.constant 9.000000e+00 : f32
    %68 = vector.broadcast %cst_24 : f32 to vector<256x1xf32>
    %69 = arith.mulf %67, %68 : vector<256x1xf32>
    %70 = arith.subf %48, %69 : vector<256x1xf32>
    %71 = vector.broadcast %51 : vector<256x1xf32> to vector<256x256xf32>
    %72 = vector.broadcast %8 : vector<1x256xf32> to vector<256x256xf32>
    %73 = arith.subf %71, %72 : vector<256x256xf32>
    %74 = math.absf %73 : vector<256x256xf32>
    %cst_25 = arith.constant 1.000000e+00 : f32
    %75 = vector.broadcast %cst_25 : f32 to vector<256x256xf32>
    %76 = arith.subf %75, %74 : vector<256x256xf32>
    %cst_26 = arith.constant 0.000000e+00 : f32
    %77 = vector.broadcast %cst_26 : f32 to vector<256x256xf32>
    %78 = arith.maximumf %76, %77 : vector<256x256xf32>
    %79 = vector.broadcast %70 : vector<256x1xf32> to vector<256x256xf32>
    %80 = vector.broadcast %17 : vector<1x256xf32> to vector<256x256xf32>
    %81 = arith.subf %79, %80 : vector<256x256xf32>
    %82 = math.absf %81 : vector<256x256xf32>
    %cst_27 = arith.constant 1.000000e+00 : f32
    %83 = vector.broadcast %cst_27 : f32 to vector<256x256xf32>
    %84 = arith.subf %83, %82 : vector<256x256xf32>
    %cst_28 = arith.constant 0.000000e+00 : f32
    %85 = vector.broadcast %cst_28 : f32 to vector<256x256xf32>
    %86 = arith.maximumf %84, %85 : vector<256x256xf32>
    %87 = arith.mulf %78, %86 : vector<256x256xf32>
    %88 = vector.broadcast %67 : vector<256x1xf32> to vector<256x256xf32>
    %89 = vector.broadcast %26 : vector<1x256xf32> to vector<256x256xf32>
    %90 = arith.subf %88, %89 : vector<256x256xf32>
    %91 = math.absf %90 : vector<256x256xf32>
    %cst_29 = arith.constant 1.000000e+00 : f32
    %92 = vector.broadcast %cst_29 : f32 to vector<256x256xf32>
    %93 = arith.subf %92, %91 : vector<256x256xf32>
    %cst_30 = arith.constant 0.000000e+00 : f32
    %94 = vector.broadcast %cst_30 : f32 to vector<256x256xf32>
    %95 = arith.maximumf %93, %94 : vector<256x256xf32>
    %96 = arith.mulf %87, %95 : vector<256x256xf32>
    %97 = arith.index_cast %c0_i32 : i32 to index
    %c0_31 = arith.constant 0 : index
    %c0_32 = arith.constant 0 : index
    %98 = vector.load %arg2[%97, %c0_31, %c0_32] : memref<3x16x256xf32, #tpu.memory_space<vmem>>, vector<1x16x256xf32>
    %99 = vector.shape_cast %98 : vector<1x16x256xf32> to vector<16x256xf32>
    %cst_33 = arith.constant dense<0.000000e+00> : vector<16x256xf32>
    %100 = tpu.matmul %99, %96, %cst_33 {dimension_numbers = #tpu.dot_dimension_numbers<[1], [0], [0], [1], [0, 0, 1, 1], [], []>} : vector<16x256xf32>, vector<256x256xf32>, vector<16x256xf32> -> vector<16x256xf32>
    %101 = arith.addf %27, %100 : vector<16x256xf32>
    %c1_i32 = arith.constant 1 : i32
    %c256_i32_34 = arith.constant 256 : i32
    %102 = arith.muli %c1_i32, %c256_i32_34 : i32
    %103 = tpu.iota {dimensions = array<i32: 0>} : vector<256x1xi32>
    %104 = vector.broadcast %102 : i32 to vector<256x1xi32>
    %105 = arith.addi %103, %104 : vector<256x1xi32>
    %106 = arith.sitofp %105 : vector<256x1xi32> to vector<256x1xf32>
    %cst_35 = arith.constant 9.000000e+00 : f32
    %107 = vector.broadcast %cst_35 : f32 to vector<256x1xf32>
    %108 = arith.divf %106, %107 : vector<256x1xf32>
    %109 = math.floor %108 : vector<256x1xf32>
    %cst_36 = arith.constant 9.000000e+00 : f32
    %110 = vector.broadcast %cst_36 : f32 to vector<256x1xf32>
    %111 = arith.mulf %109, %110 : vector<256x1xf32>
    %112 = arith.subf %106, %111 : vector<256x1xf32>
    %cst_37 = arith.constant 9.000000e+00 : f32
    %113 = vector.broadcast %cst_37 : f32 to vector<256x1xf32>
    %114 = arith.cmpf oge, %112, %113 : vector<256x1xf32>
    %115 = arith.extui %114 : vector<256x1xi1> to vector<256x1xi32>
    %116 = arith.sitofp %115 : vector<256x1xi32> to vector<256x1xf32>
    %117 = arith.addf %109, %116 : vector<256x1xf32>
    %cst_38 = arith.constant 0.000000e+00 : f32
    %118 = vector.broadcast %cst_38 : f32 to vector<256x1xf32>
    %119 = arith.cmpf olt, %112, %118 : vector<256x1xf32>
    %120 = arith.extui %119 : vector<256x1xi1> to vector<256x1xi32>
    %121 = arith.sitofp %120 : vector<256x1xi32> to vector<256x1xf32>
    %122 = arith.subf %117, %121 : vector<256x1xf32>
    %cst_39 = arith.constant 9.000000e+00 : f32
    %123 = vector.broadcast %cst_39 : f32 to vector<256x1xf32>
    %124 = arith.mulf %122, %123 : vector<256x1xf32>
    %125 = arith.subf %106, %124 : vector<256x1xf32>
    %cst_40 = arith.constant 9.000000e+00 : f32
    %126 = vector.broadcast %cst_40 : f32 to vector<256x1xf32>
    %127 = arith.divf %122, %126 : vector<256x1xf32>
    %128 = math.floor %127 : vector<256x1xf32>
    %cst_41 = arith.constant 9.000000e+00 : f32
    %129 = vector.broadcast %cst_41 : f32 to vector<256x1xf32>
    %130 = arith.mulf %128, %129 : vector<256x1xf32>
    %131 = arith.subf %122, %130 : vector<256x1xf32>
    %cst_42 = arith.constant 9.000000e+00 : f32
    %132 = vector.broadcast %cst_42 : f32 to vector<256x1xf32>
    %133 = arith.cmpf oge, %131, %132 : vector<256x1xf32>
    %134 = arith.extui %133 : vector<256x1xi1> to vector<256x1xi32>
    %135 = arith.sitofp %134 : vector<256x1xi32> to vector<256x1xf32>
    %136 = arith.addf %128, %135 : vector<256x1xf32>
    %cst_43 = arith.constant 0.000000e+00 : f32
    %137 = vector.broadcast %cst_43 : f32 to vector<256x1xf32>
    %138 = arith.cmpf olt, %131, %137 : vector<256x1xf32>
    %139 = arith.extui %138 : vector<256x1xi1> to vector<256x1xi32>
    %140 = arith.sitofp %139 : vector<256x1xi32> to vector<256x1xf32>
    %141 = arith.subf %136, %140 : vector<256x1xf32>
    %cst_44 = arith.constant 9.000000e+00 : f32
    %142 = vector.broadcast %cst_44 : f32 to vector<256x1xf32>
    %143 = arith.mulf %141, %142 : vector<256x1xf32>
    %144 = arith.subf %122, %143 : vector<256x1xf32>
    %145 = vector.broadcast %125 : vector<256x1xf32> to vector<256x256xf32>
    %146 = vector.broadcast %8 : vector<1x256xf32> to vector<256x256xf32>
    %147 = arith.subf %145, %146 : vector<256x256xf32>
    %148 = math.absf %147 : vector<256x256xf32>
    %cst_45 = arith.constant 1.000000e+00 : f32
    %149 = vector.broadcast %cst_45 : f32 to vector<256x256xf32>
    %150 = arith.subf %149, %148 : vector<256x256xf32>
    %cst_46 = arith.constant 0.000000e+00 : f32
    %151 = vector.broadcast %cst_46 : f32 to vector<256x256xf32>
    %152 = arith.maximumf %150, %151 : vector<256x256xf32>
    %153 = vector.broadcast %144 : vector<256x1xf32> to vector<256x256xf32>
    %154 = vector.broadcast %17 : vector<1x256xf32> to vector<256x256xf32>
    %155 = arith.subf %153, %154 : vector<256x256xf32>
    %156 = math.absf %155 : vector<256x256xf32>
    %cst_47 = arith.constant 1.000000e+00 : f32
    %157 = vector.broadcast %cst_47 : f32 to vector<256x256xf32>
    %158 = arith.subf %157, %156 : vector<256x256xf32>
    %cst_48 = arith.constant 0.000000e+00 : f32
    %159 = vector.broadcast %cst_48 : f32 to vector<256x256xf32>
    %160 = arith.maximumf %158, %159 : vector<256x256xf32>
    %161 = arith.mulf %152, %160 : vector<256x256xf32>
    %162 = vector.broadcast %141 : vector<256x1xf32> to vector<256x256xf32>
    %163 = vector.broadcast %26 : vector<1x256xf32> to vector<256x256xf32>
    %164 = arith.subf %162, %163 : vector<256x256xf32>
    %165 = math.absf %164 : vector<256x256xf32>
    %cst_49 = arith.constant 1.000000e+00 : f32
    %166 = vector.broadcast %cst_49 : f32 to vector<256x256xf32>
    %167 = arith.subf %166, %165 : vector<256x256xf32>
    %cst_50 = arith.constant 0.000000e+00 : f32
    %168 = vector.broadcast %cst_50 : f32 to vector<256x256xf32>
    %169 = arith.maximumf %167, %168 : vector<256x256xf32>
    %170 = arith.mulf %161, %169 : vector<256x256xf32>
    %171 = arith.index_cast %c1_i32 : i32 to index
    %c0_51 = arith.constant 0 : index
    %c0_52 = arith.constant 0 : index
    %172 = vector.load %arg2[%171, %c0_51, %c0_52] : memref<3x16x256xf32, #tpu.memory_space<vmem>>, vector<1x16x256xf32>
    %173 = vector.shape_cast %172 : vector<1x16x256xf32> to vector<16x256xf32>
    %cst_53 = arith.constant dense<0.000000e+00> : vector<16x256xf32>
    %174 = tpu.matmul %173, %170, %cst_53 {dimension_numbers = #tpu.dot_dimension_numbers<[1], [0], [0], [1], [0, 0, 1, 1], [], []>} : vector<16x256xf32>, vector<256x256xf32>, vector<16x256xf32> -> vector<16x256xf32>
    %175 = arith.addf %101, %174 : vector<16x256xf32>
    %c2_i32 = arith.constant 2 : i32
    %c256_i32_54 = arith.constant 256 : i32
    %176 = arith.muli %c2_i32, %c256_i32_54 : i32
    %177 = tpu.iota {dimensions = array<i32: 0>} : vector<256x1xi32>
    %178 = vector.broadcast %176 : i32 to vector<256x1xi32>
    %179 = arith.addi %177, %178 : vector<256x1xi32>
    %180 = arith.sitofp %179 : vector<256x1xi32> to vector<256x1xf32>
    %cst_55 = arith.constant 9.000000e+00 : f32
    %181 = vector.broadcast %cst_55 : f32 to vector<256x1xf32>
    %182 = arith.divf %180, %181 : vector<256x1xf32>
    %183 = math.floor %182 : vector<256x1xf32>
    %cst_56 = arith.constant 9.000000e+00 : f32
    %184 = vector.broadcast %cst_56 : f32 to vector<256x1xf32>
    %185 = arith.mulf %183, %184 : vector<256x1xf32>
    %186 = arith.subf %180, %185 : vector<256x1xf32>
    %cst_57 = arith.constant 9.000000e+00 : f32
    %187 = vector.broadcast %cst_57 : f32 to vector<256x1xf32>
    %188 = arith.cmpf oge, %186, %187 : vector<256x1xf32>
    %189 = arith.extui %188 : vector<256x1xi1> to vector<256x1xi32>
    %190 = arith.sitofp %189 : vector<256x1xi32> to vector<256x1xf32>
    %191 = arith.addf %183, %190 : vector<256x1xf32>
    %cst_58 = arith.constant 0.000000e+00 : f32
    %192 = vector.broadcast %cst_58 : f32 to vector<256x1xf32>
    %193 = arith.cmpf olt, %186, %192 : vector<256x1xf32>
    %194 = arith.extui %193 : vector<256x1xi1> to vector<256x1xi32>
    %195 = arith.sitofp %194 : vector<256x1xi32> to vector<256x1xf32>
    %196 = arith.subf %191, %195 : vector<256x1xf32>
    %cst_59 = arith.constant 9.000000e+00 : f32
    %197 = vector.broadcast %cst_59 : f32 to vector<256x1xf32>
    %198 = arith.mulf %196, %197 : vector<256x1xf32>
    %199 = arith.subf %180, %198 : vector<256x1xf32>
    %cst_60 = arith.constant 9.000000e+00 : f32
    %200 = vector.broadcast %cst_60 : f32 to vector<256x1xf32>
    %201 = arith.divf %196, %200 : vector<256x1xf32>
    %202 = math.floor %201 : vector<256x1xf32>
    %cst_61 = arith.constant 9.000000e+00 : f32
    %203 = vector.broadcast %cst_61 : f32 to vector<256x1xf32>
    %204 = arith.mulf %202, %203 : vector<256x1xf32>
    %205 = arith.subf %196, %204 : vector<256x1xf32>
    %cst_62 = arith.constant 9.000000e+00 : f32
    %206 = vector.broadcast %cst_62 : f32 to vector<256x1xf32>
    %207 = arith.cmpf oge, %205, %206 : vector<256x1xf32>
    %208 = arith.extui %207 : vector<256x1xi1> to vector<256x1xi32>
    %209 = arith.sitofp %208 : vector<256x1xi32> to vector<256x1xf32>
    %210 = arith.addf %202, %209 : vector<256x1xf32>
    %cst_63 = arith.constant 0.000000e+00 : f32
    %211 = vector.broadcast %cst_63 : f32 to vector<256x1xf32>
    %212 = arith.cmpf olt, %205, %211 : vector<256x1xf32>
    %213 = arith.extui %212 : vector<256x1xi1> to vector<256x1xi32>
    %214 = arith.sitofp %213 : vector<256x1xi32> to vector<256x1xf32>
    %215 = arith.subf %210, %214 : vector<256x1xf32>
    %cst_64 = arith.constant 9.000000e+00 : f32
    %216 = vector.broadcast %cst_64 : f32 to vector<256x1xf32>
    %217 = arith.mulf %215, %216 : vector<256x1xf32>
    %218 = arith.subf %196, %217 : vector<256x1xf32>
    %219 = vector.broadcast %199 : vector<256x1xf32> to vector<256x256xf32>
    %220 = vector.broadcast %8 : vector<1x256xf32> to vector<256x256xf32>
    %221 = arith.subf %219, %220 : vector<256x256xf32>
    %222 = math.absf %221 : vector<256x256xf32>
    %cst_65 = arith.constant 1.000000e+00 : f32
    %223 = vector.broadcast %cst_65 : f32 to vector<256x256xf32>
    %224 = arith.subf %223, %222 : vector<256x256xf32>
    %cst_66 = arith.constant 0.000000e+00 : f32
    %225 = vector.broadcast %cst_66 : f32 to vector<256x256xf32>
    %226 = arith.maximumf %224, %225 : vector<256x256xf32>
    %227 = vector.broadcast %218 : vector<256x1xf32> to vector<256x256xf32>
    %228 = vector.broadcast %17 : vector<1x256xf32> to vector<256x256xf32>
    %229 = arith.subf %227, %228 : vector<256x256xf32>
    %230 = math.absf %229 : vector<256x256xf32>
    %cst_67 = arith.constant 1.000000e+00 : f32
    %231 = vector.broadcast %cst_67 : f32 to vector<256x256xf32>
    %232 = arith.subf %231, %230 : vector<256x256xf32>
    %cst_68 = arith.constant 0.000000e+00 : f32
    %233 = vector.broadcast %cst_68 : f32 to vector<256x256xf32>
    %234 = arith.maximumf %232, %233 : vector<256x256xf32>
    %235 = arith.mulf %226, %234 : vector<256x256xf32>
    %236 = vector.broadcast %215 : vector<256x1xf32> to vector<256x256xf32>
    %237 = vector.broadcast %26 : vector<1x256xf32> to vector<256x256xf32>
    %238 = arith.subf %236, %237 : vector<256x256xf32>
    %239 = math.absf %238 : vector<256x256xf32>
    %cst_69 = arith.constant 1.000000e+00 : f32
    %240 = vector.broadcast %cst_69 : f32 to vector<256x256xf32>
    %241 = arith.subf %240, %239 : vector<256x256xf32>
    %cst_70 = arith.constant 0.000000e+00 : f32
    %242 = vector.broadcast %cst_70 : f32 to vector<256x256xf32>
    %243 = arith.maximumf %241, %242 : vector<256x256xf32>
    %244 = arith.mulf %235, %243 : vector<256x256xf32>
    %245 = arith.index_cast %c2_i32 : i32 to index
    %c0_71 = arith.constant 0 : index
    %c0_72 = arith.constant 0 : index
    %246 = vector.load %arg2[%245, %c0_71, %c0_72] : memref<3x16x256xf32, #tpu.memory_space<vmem>>, vector<1x16x256xf32>
    %247 = vector.shape_cast %246 : vector<1x16x256xf32> to vector<16x256xf32>
    %cst_73 = arith.constant dense<0.000000e+00> : vector<16x256xf32>
    %248 = tpu.matmul %247, %244, %cst_73 {dimension_numbers = #tpu.dot_dimension_numbers<[1], [0], [0], [1], [0, 0, 1, 1], [], []>} : vector<16x256xf32>, vector<256x256xf32>, vector<16x256xf32> -> vector<16x256xf32>
    %249 = arith.addf %175, %248 : vector<16x256xf32>
    %c3_i32 = arith.constant 3 : i32
    %c0_74 = arith.constant 0 : index
    %c0_75 = arith.constant 0 : index
    %250 = vector.load %arg3[%c0_74, %c0_75] : memref<16x256xf32, #tpu.memory_space<vmem>>, vector<16x256xf32>
    tpu.vector_store %arg3[%c0_74, %c0_75], %249 {strides = array<i32>} : memref<16x256xf32, #tpu.memory_space<vmem>>, vector<16x256xf32>,
    return
  }
  func.func @transform_0(%arg0: i32) -> (i32, i32) {
    %c0_i32 = arith.constant 0 : i32
    %c0_i32_0 = arith.constant 0 : i32
    return %c0_i32, %arg0 : i32, i32
  }
  func.func @transform_1(%arg0: i32) -> (i32, i32, i32) {
    %c0_i32 = arith.constant 0 : i32
    %c0_i32_0 = arith.constant 0 : i32
    %c0_i32_1 = arith.constant 0 : i32
    %c0_i32_2 = arith.constant 0 : i32
    return %c0_i32, %c0_i32_0, %c0_i32_1 : i32, i32, i32
  }
  func.func @transform_2(%arg0: i32) -> (i32, i32) {
    %c0_i32 = arith.constant 0 : i32
    %c0_i32_0 = arith.constant 0 : i32
    return %c0_i32, %arg0 : i32, i32
  }
}

</mosaic_0001>

<llo_original>
// kernel: tpu_custom_call.1
$region0: #{tpu_custom_call.1}
  #allocation0 [shape = 'u32[]', space=smem, size = 0x4, offset = 0x4, fixed_abs, tag = 'smem constant byte address 0x4 - core index']
  #allocation1 [shape = 'u32[144,128]{1,0:T(1,128)}', space=vmem, size = 0x12000, scoped, tag = 'internal scratch']
  %s0 = inlined_call_operand.hbm [shape: f32[3,512], index: 0, kind: input, shape index: {}]
  %s1 = inlined_call_operand.hbm [shape: f32[3,16,256], index: 1, kind: input, shape index: {}]
  %s2 = inlined_call_operand.hbm [shape: f32[16,512], index: 2, kind: output, shape index: {}]
  %s3 = sld [smem:[#allocation0]]
  $region49: #{tpu_custom_call.1} parent=0
    _
  %s5 = ssub.s32 1, %s3
  %s6 = scalar_select 0, %s5, %s3
  $region1: #{tpu_custom_call.1} parent=0
    #allocation2 [shape = 'u8[8192]{0}', space=vmem, size = 0x2000, scoped, tag = 'input window, operand 0']
    #allocation3 [shape = 's32[2]{0}', space=sflag, size = 0x8, scoped, tag = 'scoped memory for tpu_custom_call.1']
    #allocation4 [shape = 's32[2]{0}', space=sflag, size = 0x8, scoped, tag = 'scoped memory for tpu_custom_call.1']
    #allocation5 [shape = 'u8[49152]{0}', space=vmem, size = 0xc000, scoped, tag = 'input window, operand 1, single buffered']
    #allocation6 [shape = 's32[1]{0}', space=sflag, size = 0x4, scoped, tag = 'scoped memory for tpu_custom_call.1']
    #allocation7 [shape = 'u8[32768]{0}', space=vmem, size = 0x8000, scoped, tag = 'output window, operand 0']
    %7 = vsyncpa [#allocation3], 0
    %s8 = scalar_lea.sflag [#allocation3], 1
    %9 = vsyncpa %s8, 0
    %10 = vsyncpa [#allocation6], 0
    %11 = vsyncpa [#allocation4], 0
    %s12 = scalar_lea.sflag [#allocation4], 1
    %13 = vsyncpa %s12, 0
    loop: start=0, step=1, limit=4
    $region2: #{tpu_custom_call.1} parent=1 // loop_pre_header
      _
    $region3: #{tpu_custom_call.1} parent=1 // loop_header
      %s15 = sphi 0, %s19
      %p16 = scmp.ge.s32.totalorder %s15, 4
      %s25 = sphi 0, %s27
      %s28 = sphi 0, %s25
      %s29 = sphi 0, %s28
      %s45 = sphi 0, %s29
      %s49 = sphi 0, %s49
      %s51 = sphi 0, %s49
      %s52 = sphi 0, %s51
      %s66 = sphi 0, %s52
      %s72 = sphi 0, %s74
      %s75 = sphi 0, %s72
      %s76 = sphi 0, %s75
      %s92 = sphi 0, %s76
    $region4: #{tpu_custom_call.1} parent=1 // loop_header_branch
      %18 = sbr.rel (%p16) target = $region8
    $region5: #{tpu_custom_call.1} parent=1 // loop_body
      %s20 = ssub.s32 %s15, 1
      %s21 = ssub.s32 %s15, 2
      %s22 = sadd.s32 %s15, 1
      %s23 = ssub.s32 %s15, %s22
      %p24 = scmp.eq.s32.totalorder %s23, 0
      %s26 = sadd.s32 %s25, 1
      %s27 = scalar_select %p24, %s25, %s26
      %p30 = pneg %p24
      %p31 = scmp.eq.s32.totalorder %s15, 1
      %p32 = por %p30, %p31
      %p33 = scmp.ne.s32.totalorder %s25, %s28
      %p34 = scmp.eq.s32.totalorder %s15, 0
      %p35 = por %p33, %p34
      %p36 = scmp.ne.s32.totalorder %s25, %s28
      %p37 = scmp.eq.s32.totalorder %s20, 1
      %p38 = por %p36, %p37
      %p39 = scmp.ne.s32.totalorder %s28, %s29
      %p40 = scmp.eq.s32.totalorder %s20, 0
      %p41 = por %p39, %p40
      %p42 = scmp.ne.s32.totalorder %s28, %s29
      %p43 = scmp.eq.s32.totalorder %s21, 1
      %p44 = por %p42, %p43
      %p46 = scmp.ne.s32.totalorder %s29, %s45
      %p47 = scmp.eq.s32.totalorder %s21, 0
      %p48 = por %p46, %p47
      %s50 = sadd.s32 %s49, 1
      %p53 = scmp.eq.s32.totalorder %s15, 1
      %p54 = scmp.ne.s32.totalorder %s49, %s51
      %p55 = scmp.eq.s32.totalorder %s15, 0
      %p56 = por %p54, %p55
      %p57 = scmp.ne.s32.totalorder %s49, %s51
      %p58 = scmp.eq.s32.totalorder %s20, 1
      %p59 = por %p57, %p58
      %p60 = scmp.ne.s32.totalorder %s51, %s52
      %p61 = scmp.eq.s32.totalorder %s20, 0
      %p62 = por %p60, %p61
      %p63 = scmp.ne.s32.totalorder %s51, %s52
      %p64 = scmp.eq.s32.totalorder %s21, 1
      %p65 = por %p63, %p64
      %p67 = scmp.ne.s32.totalorder %s52, %s66
      %p68 = scmp.eq.s32.totalorder %s21, 0
      %p69 = por %p67, %p68
      %s70 = ssub.s32 %s15, %s22
      %p71 = scmp.eq.s32.totalorder %s70, 0
      %s73 = sadd.s32 %s72, 1
      %s74 = scalar_select %p71, %s72, %s73
      %p77 = pneg %p71
      %p78 = scmp.eq.s32.totalorder %s15, 1
      %p79 = por %p77, %p78
      %p80 = scmp.ne.s32.totalorder %s72, %s75
      %p81 = scmp.eq.s32.totalorder %s15, 0
      %p82 = por %p80, %p81
      %p83 = scmp.ne.s32.totalorder %s72, %s75
      %p84 = scmp.eq.s32.totalorder %s20, 1
      %p85 = por %p83, %p84
      %p86 = scmp.ne.s32.totalorder %s75, %s76
      %p87 = scmp.eq.s32.totalorder %s20, 0
      %p88 = por %p86, %p87
      %p89 = scmp.ne.s32.totalorder %s75, %s76
      %p90 = scmp.eq.s32.totalorder %s21, 1
      %p91 = por %p89, %p90
      %p93 = scmp.ne.s32.totalorder %s76, %s92
      %p94 = scmp.eq.s32.totalorder %s21, 0
      %p95 = por %p93, %p94
      %p96 = scmp.le.s32.totalorder 1, %s15
      %p97 = scmp.lt.s32.totalorder %s15, 3
      %p98 = pnand %p96, %p97
      %p99 = pneg %p98
      // Predicated region
      $region9: #{tpu_custom_call.1} parent=5 // pred_check
        _
      $region10: #{tpu_custom_call.1} parent=5 // pred_check_branch
        %101 = sbr.rel (%p98) target = $region12
      $region11: #{tpu_custom_call.1} parent=5 // pred_region
        %s102 = ssub.s32 %s15, 1
        // Predicated region
        $region13: #{tpu_custom_call.1} parent=11 // pred_check
          %p103 = pneg %p62
        $region14: #{tpu_custom_call.1} parent=11 // pred_check_branch
          %105 = sbr.rel (%p103) target = $region16
        $region15: #{tpu_custom_call.1} parent=11 // pred_region
          %s107 = ssub.s32 1536, 1536
          %108 = vsyncadd [#allocation6], %s107
          %s109 = sshll.u32 [#allocation5], 4
          %s110 = int_to_ptr.vmem [resolvable:$true] %s109
          %115 = dma.hbm_to_vmem [thread:$0]  %s1, 1536, %s110, [#allocation6], 256, 256, 16
        $region16: #{tpu_custom_call.1} parent=11 // pred_fallthru
          _
      $region12: #{tpu_custom_call.1} parent=5 // pred_fallthru
        _
      %p116 = scmp.lt.s32.totalorder %s15, 2
      // Predicated region
      $region17: #{tpu_custom_call.1} parent=5 // pred_check
        %p117 = pneg %p116
      $region18: #{tpu_custom_call.1} parent=5 // pred_check_branch
        %119 = sbr.rel (%p117) target = $region20
      $region19: #{tpu_custom_call.1} parent=5 // pred_region
        // Predicated region
        $region21: #{tpu_custom_call.1} parent=19 // pred_check
          %p120 = pneg %p35
        $region22: #{tpu_custom_call.1} parent=19 // pred_check_branch
          %122 = sbr.rel (%p120) target = $region24
        $region23: #{tpu_custom_call.1} parent=19 // pred_region
          %s123 = sand.u32 %s25, 1
          %s124 = scalar_lea.sflag [#allocation3], %s123
          %s125 = sand.u32 %s25, 1
          %s126 = smul.addr %s125, 8
          %s127 = scalar_lea.vmem [#allocation2], %s126
          %s128 = smul.u32 2, %s15
          %s130 = ssub.s32 128, 128
          %131 = vsyncadd %s124, %s130
          %s132 = smul.addr %s128, 64
          %s133 = scalar_lea.hbm %s0, %s132
          %s135 = sshll.u32 %s127, 4
          %s136 = int_to_ptr.vmem [resolvable:$true] %s135
          %138 = dma.hbm_to_vmem [thread:$0]  %s133, 128, %s136, %s124
        $region24: #{tpu_custom_call.1} parent=19 // pred_fallthru
          _
      $region20: #{tpu_custom_call.1} parent=5 // pred_fallthru
        _
      %p139 = scmp.le.s32.totalorder 1, %s15
      %p140 = scmp.lt.s32.totalorder %s15, 3
      %p141 = pnand %p139, %p140
      %p142 = pneg %p141
      // Predicated region
      $region25: #{tpu_custom_call.1} parent=5 // pred_check
        _
      $region26: #{tpu_custom_call.1} parent=5 // pred_check_branch
        %144 = sbr.rel (%p141) target = $region28
      $region27: #{tpu_custom_call.1} parent=5 // pred_region
        %s145 = ssub.s32 %s15, 1
        %s146 = sand.u32 %s28, 1
        %s147 = scalar_lea.sflag [#allocation3], %s146
        %s148 = sand.u32 %s28, 1
        %s149 = smul.addr %s148, 8
        %s150 = scalar_lea.vmem [#allocation2], %s149
        // Predicated region
        $region29: #{tpu_custom_call.1} parent=27 // pred_check
          %p151 = pneg %p41
        $region30: #{tpu_custom_call.1} parent=27 // pred_check_branch
          %153 = sbr.rel (%p151) target = $region32
        $region31: #{tpu_custom_call.1} parent=27 // pred_region
          %154 = dma.done %s147, 128
        $region32: #{tpu_custom_call.1} parent=27 // pred_fallthru
          _
        // Predicated region
        $region33: #{tpu_custom_call.1} parent=27 // pred_check
          %p155 = pneg %p62
        $region34: #{tpu_custom_call.1} parent=27 // pred_check_branch
          %157 = sbr.rel (%p155) target = $region36
        $region35: #{tpu_custom_call.1} parent=27 // pred_region
          %158 = dma.done [#allocation6], 1536
        $region36: #{tpu_custom_call.1} parent=27 // pred_fallthru
          _
        %s159 = sand.u32 %s28, 1
        %s160 = scalar_lea.sflag [#allocation3], %s159
        %s161 = sand.u32 %s28, 1
        %s162 = smul.addr %s161, 8
        %s163 = scalar_lea.vmem [#allocation2], %s162
        %p164 = pneg %p41
        %p165 = pneg %p38
        %p166 = pneg %p62
        %p167 = pneg %p59
        %p168 = pneg %p88
        %p169 = pneg %p85
        %s170 = sand.u32 %s75, 1
        %s171 = scalar_lea.sflag [#allocation4], %s170
        %s172 = sand.u32 %s75, 1
        %s173 = smul.addr %s172, 32
        %s174 = scalar_lea.vmem [#allocation7], %s173
        %s175 = smul.u32 2, %s20
        %s176 = smul.u32 2, %s20
        %v177 = vld [vmem:[%s150] ss:$4 sm:$0x3]
        %v178 = vadd.f32 %v177, 1.0
        %v179 = vmul.f32 %v178, 4.0
        %v180 = vmax.f32 %v179, 0.0
        %v181 = vmin.f32 %v180, 8.0
        %s182 = scalar_lea.vmem %s150, 1 [#allocation2]
        %v183 = vld [vmem:[%s182] ss:$4 sm:$0x3]
        %v184 = vadd.f32 %v183, 1.0
        %v185 = vmul.f32 %v184, 4.0
        %v186 = vmax.f32 %v185, 0.0
        %v187 = vmin.f32 %v186, 8.0
        %s188 = scalar_lea.vmem %s150, 2 [#allocation2]
        %v189 = vld [vmem:[%s188] ss:$4 sm:$0x3]
        %v190 = vadd.f32 %v189, 1.0
        %v191 = vmul.f32 %v190, 4.0
        %v192 = vmax.f32 %v191, 0.0
        %v193 = vmin.f32 %v192, 8.0
        %v194 = vlaneseq
        %v195 = vshrl.u32 %v194, 7
        %v196 = vadd.s32 %v195, 8
        %v197 = vadd.s32 %v195, 16
        %v198 = vadd.s32 %v195, 24
        %v199 = vadd.s32 %v195, 32
        %v200 = vadd.s32 %v195, 40
        %v201 = vadd.s32 %v195, 48
        %v202 = vadd.s32 %v195, 56
        %v203 = vadd.s32 %v195, 64
        %v204 = vadd.s32 %v195, 72
        %v205 = vadd.s32 %v195, 80
        %v206 = vadd.s32 %v195, 88
        %v207 = vadd.s32 %v195, 96
        %v208 = vadd.s32 %v195, 104
        %v209 = vadd.s32 %v195, 112
        %v210 = vadd.s32 %v195, 120
        %v211 = vadd.s32 %v195, 128
        %v212 = vadd.s32 %v195, 136
        %v213 = vadd.s32 %v195, 144
        %v214 = vadd.s32 %v195, 152
        %v215 = vadd.s32 %v195, 160
        %v216 = vadd.s32 %v195, 168
        %v217 = vadd.s32 %v195, 176
        %v218 = vadd.s32 %v195, 184
        %v219 = vadd.s32 %v195, 192
        %v220 = vadd.s32 %v195, 200
        %v221 = vadd.s32 %v195, 208
        %v222 = vadd.s32 %v195, 216
        %v223 = vadd.s32 %v195, 224
        %v224 = vadd.s32 %v195, 232
        %v225 = vadd.s32 %v195, 240
        %v226 = vadd.s32 %v195, 248
        %v227 = vcvt.s32.f32 %v195
        %v228 = vcvt.s32.f32 %v196
        %v229 = vcvt.s32.f32 %v197
        %v230 = vcvt.s32.f32 %v198
        %v231 = vcvt.s32.f32 %v199
        %v232 = vcvt.s32.f32 %v200
        %v233 = vcvt.s32.f32 %v201
        %v234 = vcvt.s32.f32 %v202
        %v235 = vcvt.s32.f32 %v203
        %v236 = vcvt.s32.f32 %v204
        %v237 = vcvt.s32.f32 %v205
        %v238 = vcvt.s32.f32 %v206
        %v239 = vcvt.s32.f32 %v207
        %v240 = vcvt.s32.f32 %v208
        %v241 = vcvt.s32.f32 %v209
        %v242 = vcvt.s32.f32 %v210
        %v243 = vcvt.s32.f32 %v211
        %v244 = vcvt.s32.f32 %v212
        %v245 = vcvt.s32.f32 %v213
        %v246 = vcvt.s32.f32 %v214
        %v247 = vcvt.s32.f32 %v215
        %v248 = vcvt.s32.f32 %v216
        %v249 = vcvt.s32.f32 %v217
        %v250 = vcvt.s32.f32 %v218
        %v251 = vcvt.s32.f32 %v219
        %v252 = vcvt.s32.f32 %v220
        %v253 = vcvt.s32.f32 %v221
        %v254 = vcvt.s32.f32 %v222
        %v255 = vcvt.s32.f32 %v223
        %v256 = vcvt.s32.f32 %v224
        %v257 = vcvt.s32.f32 %v225
        %v258 = vcvt.s32.f32 %v226
        %v259 = vrcp.pop 9.0
        %v260 = vmul.f32 %v227, %v259
        %v261 = vmul.f32 %v228, %v259
        %v262 = vmul.f32 %v229, %v259
        %v263 = vmul.f32 %v230, %v259
        %v264 = vmul.f32 %v231, %v259
        %v265 = vmul.f32 %v232, %v259
        %v266 = vmul.f32 %v233, %v259
        %v267 = vmul.f32 %v234, %v259
        %v268 = vmul.f32 %v235, %v259
        %v269 = vmul.f32 %v236, %v259
        %v270 = vmul.f32 %v237, %v259
        %v271 = vmul.f32 %v238, %v259
        %v272 = vmul.f32 %v239, %v259
        %v273 = vmul.f32 %v240, %v259
        %v274 = vmul.f32 %v241, %v259
        %v275 = vmul.f32 %v242, %v259
        %v276 = vmul.f32 %v243, %v259
        %v277 = vmul.f32 %v244, %v259
        %v278 = vmul.f32 %v245, %v259
        %v279 = vmul.f32 %v246, %v259
        %v280 = vmul.f32 %v247, %v259
        %v281 = vmul.f32 %v248, %v259
        %v282 = vmul.f32 %v249, %v259
        %v283 = vmul.f32 %v250, %v259
        %v284 = vmul.f32 %v251, %v259
        %v285 = vmul.f32 %v252, %v259
        %v286 = vmul.f32 %v253, %v259
        %v287 = vmul.f32 %v254, %v259
        %v288 = vmul.f32 %v255, %v259
        %v289 = vmul.f32 %v256, %v259
        %v290 = vmul.f32 %v257, %v259
        %v291 = vmul.f32 %v258, %v259
        %v292 = vfloor.f32 %v260
        %v293 = vfloor.f32 %v261
        %v294 = vfloor.f32 %v262
        %v295 = vfloor.f32 %v263
        %v296 = vfloor.f32 %v264
        %v297 = vfloor.f32 %v265
        %v298 = vfloor.f32 %v266
        %v299 = vfloor.f32 %v267
        %v300 = vfloor.f32 %v268
        %v301 = vfloor.f32 %v269
        %v302 = vfloor.f32 %v270
        %v303 = vfloor.f32 %v271
        %v304 = vfloor.f32 %v272
        %v305 = vfloor.f32 %v273
        %v306 = vfloor.f32 %v274
        %v307 = vfloor.f32 %v275
        %v308 = vfloor.f32 %v276
        %v309 = vfloor.f32 %v277
        %v310 = vfloor.f32 %v278
        %v311 = vfloor.f32 %v279
        %v312 = vfloor.f32 %v280
        %v313 = vfloor.f32 %v281
        %v314 = vfloor.f32 %v282
        %v315 = vfloor.f32 %v283
        %v316 = vfloor.f32 %v284
        %v317 = vfloor.f32 %v285
        %v318 = vfloor.f32 %v286
        %v319 = vfloor.f32 %v287
        %v320 = vfloor.f32 %v288
        %v321 = vfloor.f32 %v289
        %v322 = vfloor.f32 %v290
        %v323 = vfloor.f32 %v291
        %v324 = vmul.f32 %v292, 9.0
        %v325 = vmul.f32 %v293, 9.0
        %v326 = vmul.f32 %v294, 9.0
        %v327 = vmul.f32 %v295, 9.0
        %v328 = vmul.f32 %v296, 9.0
        %v329 = vmul.f32 %v297, 9.0
        %v330 = vmul.f32 %v298, 9.0
        %v331 = vmul.f32 %v299, 9.0
        %v332 = vmul.f32 %v300, 9.0
        %v333 = vmul.f32 %v301, 9.0
        %v334 = vmul.f32 %v302, 9.0
        %v335 = vmul.f32 %v303, 9.0
        %v336 = vmul.f32 %v304, 9.0
        %v337 = vmul.f32 %v305, 9.0
        %v338 = vmul.f32 %v306, 9.0
        %v339 = vmul.f32 %v307, 9.0
        %v340 = vmul.f32 %v308, 9.0
        %v341 = vmul.f32 %v309, 9.0
        %v342 = vmul.f32 %v310, 9.0
        %v343 = vmul.f32 %v311, 9.0
        %v344 = vmul.f32 %v312, 9.0
        %v345 = vmul.f32 %v313, 9.0
        %v346 = vmul.f32 %v314, 9.0
        %v347 = vmul.f32 %v315, 9.0
        %v348 = vmul.f32 %v316, 9.0
        %v349 = vmul.f32 %v317, 9.0
        %v350 = vmul.f32 %v318, 9.0
        %v351 = vmul.f32 %v319, 9.0
        %v352 = vmul.f32 %v320, 9.0
        %v353 = vmul.f32 %v321, 9.0
        %v354 = vmul.f32 %v322, 9.0
        %v355 = vmul.f32 %v323, 9.0
        %v356 = vsub.f32 %v227, %v324
        %v357 = vsub.f32 %v228, %v325
        %v358 = vsub.f32 %v229, %v326
        %v359 = vsub.f32 %v230, %v327
        %v360 = vsub.f32 %v231, %v328
        %v361 = vsub.f32 %v232, %v329
        %v362 = vsub.f32 %v233, %v330
        %v363 = vsub.f32 %v234, %v331
        %v364 = vsub.f32 %v235, %v332
        %v365 = vsub.f32 %v236, %v333
        %v366 = vsub.f32 %v237, %v334
        %v367 = vsub.f32 %v238, %v335
        %v368 = vsub.f32 %v239, %v336
        %v369 = vsub.f32 %v240, %v337
        %v370 = vsub.f32 %v241, %v338
        %v371 = vsub.f32 %v242, %v339
        %v372 = vsub.f32 %v243, %v340
        %v373 = vsub.f32 %v244, %v341
        %v374 = vsub.f32 %v245, %v342
        %v375 = vsub.f32 %v246, %v343
        %v376 = vsub.f32 %v247, %v344
        %v377 = vsub.f32 %v248, %v345
        %v378 = vsub.f32 %v249, %v346
        %v379 = vsub.f32 %v250, %v347
        %v380 = vsub.f32 %v251, %v348
        %v381 = vsub.f32 %v252, %v349
        %v382 = vsub.f32 %v253, %v350
        %v383 = vsub.f32 %v254, %v351
        %v384 = vsub.f32 %v255, %v352
        %v385 = vsub.f32 %v256, %v353
        %v386 = vsub.f32 %v257, %v354
        %v387 = vsub.f32 %v258, %v355
        %vm388 = vcmp.ge.f32.partialorder %v356, 9.0
        %vm389 = vcmp.ge.f32.partialorder %v357, 9.0
        %vm390 = vcmp.ge.f32.partialorder %v358, 9.0
        %vm391 = vcmp.ge.f32.partialorder %v359, 9.0
        %vm392 = vcmp.ge.f32.partialorder %v360, 9.0
        %vm393 = vcmp.ge.f32.partialorder %v361, 9.0
        %vm394 = vcmp.ge.f32.partialorder %v362, 9.0
        %vm395 = vcmp.ge.f32.partialorder %v363, 9.0
        %vm396 = vcmp.ge.f32.partialorder %v364, 9.0
        %vm397 = vcmp.ge.f32.partialorder %v365, 9.0
        %vm398 = vcmp.ge.f32.partialorder %v366, 9.0
        %vm399 = vcmp.ge.f32.partialorder %v367, 9.0
        %vm400 = vcmp.ge.f32.partialorder %v368, 9.0
        %vm401 = vcmp.ge.f32.partialorder %v369, 9.0
        %vm402 = vcmp.ge.f32.partialorder %v370, 9.0
        %vm403 = vcmp.ge.f32.partialorder %v371, 9.0
        %vm404 = vcmp.ge.f32.partialorder %v372, 9.0
        %vm405 = vcmp.ge.f32.partialorder %v373, 9.0
        %vm406 = vcmp.ge.f32.partialorder %v374, 9.0
        %vm407 = vcmp.ge.f32.partialorder %v375, 9.0
        %vm408 = vcmp.ge.f32.partialorder %v376, 9.0
        %vm409 = vcmp.ge.f32.partialorder %v377, 9.0
        %vm410 = vcmp.ge.f32.partialorder %v378, 9.0
        %vm411 = vcmp.ge.f32.partialorder %v379, 9.0
        %vm412 = vcmp.ge.f32.partialorder %v380, 9.0
        %vm413 = vcmp.ge.f32.partialorder %v381, 9.0
        %vm414 = vcmp.ge.f32.partialorder %v382, 9.0
        %vm415 = vcmp.ge.f32.partialorder %v383, 9.0
        %vm416 = vcmp.ge.f32.partialorder %v384, 9.0
        %vm417 = vcmp.ge.f32.partialorder %v385, 9.0
        %vm418 = vcmp.ge.f32.partialorder %v386, 9.0
        %vm419 = vcmp.ge.f32.partialorder %v387, 9.0
        %v420 = vsel %vm388, 1, 0
        %v421 = vsel %vm389, 1, 0
        %v422 = vsel %vm390, 1, 0
        %v423 = vsel %vm391, 1, 0
        %v424 = vsel %vm392, 1, 0
        %v425 = vsel %vm393, 1, 0
        %v426 = vsel %vm394, 1, 0
        %v427 = vsel %vm395, 1, 0
        %v428 = vsel %vm396, 1, 0
        %v429 = vsel %vm397, 1, 0
        %v430 = vsel %vm398, 1, 0
        %v431 = vsel %vm399, 1, 0
        %v432 = vsel %vm400, 1, 0
        %v433 = vsel %vm401, 1, 0
        %v434 = vsel %vm402, 1, 0
        %v435 = vsel %vm403, 1, 0
        %v436 = vsel %vm404, 1, 0
        %v437 = vsel %vm405, 1, 0
        %v438 = vsel %vm406, 1, 0
        %v439 = vsel %vm407, 1, 0
        %v440 = vsel %vm408, 1, 0
        %v441 = vsel %vm409, 1, 0
        %v442 = vsel %vm410, 1, 0
        %v443 = vsel %vm411, 1, 0
        %v444 = vsel %vm412, 1, 0
        %v445 = vsel %vm413, 1, 0
        %v446 = vsel %vm414, 1, 0
        %v447 = vsel %vm415, 1, 0
        %v448 = vsel %vm416, 1, 0
        %v449 = vsel %vm417, 1, 0
        %v450 = vsel %vm418, 1, 0
        %v451 = vsel %vm419, 1, 0
        %v452 = vcvt.s32.f32 %v420
        %v453 = vcvt.s32.f32 %v421
        %v454 = vcvt.s32.f32 %v422
        %v455 = vcvt.s32.f32 %v423
        %v456 = vcvt.s32.f32 %v424
        %v457 = vcvt.s32.f32 %v425
        %v458 = vcvt.s32.f32 %v426
        %v459 = vcvt.s32.f32 %v427
        %v460 = vcvt.s32.f32 %v428
        %v461 = vcvt.s32.f32 %v429
        %v462 = vcvt.s32.f32 %v430
        %v463 = vcvt.s32.f32 %v431
        %v464 = vcvt.s32.f32 %v432
        %v465 = vcvt.s32.f32 %v433
        %v466 = vcvt.s32.f32 %v434
        %v467 = vcvt.s32.f32 %v435
        %v468 = vcvt.s32.f32 %v436
        %v469 = vcvt.s32.f32 %v437
        %v470 = vcvt.s32.f32 %v438
        %v471 = vcvt.s32.f32 %v439
        %v472 = vcvt.s32.f32 %v440
        %v473 = vcvt.s32.f32 %v441
        %v474 = vcvt.s32.f32 %v442
        %v475 = vcvt.s32.f32 %v443
        %v476 = vcvt.s32.f32 %v444
        %v477 = vcvt.s32.f32 %v445
        %v478 = vcvt.s32.f32 %v446
        %v479 = vcvt.s32.f32 %v447
        %v480 = vcvt.s32.f32 %v448
        %v481 = vcvt.s32.f32 %v449
        %v482 = vcvt.s32.f32 %v450
        %v483 = vcvt.s32.f32 %v451
        %v484 = vadd.f32 %v292, %v452
        %v485 = vadd.f32 %v293, %v453
        %v486 = vadd.f32 %v294, %v454
        %v487 = vadd.f32 %v295, %v455
        %v488 = vadd.f32 %v296, %v456
        %v489 = vadd.f32 %v297, %v457
        %v490 = vadd.f32 %v298, %v458
        %v491 = vadd.f32 %v299, %v459
        %v492 = vadd.f32 %v300, %v460
        %v493 = vadd.f32 %v301, %v461
        %v494 = vadd.f32 %v302, %v462
        %v495 = vadd.f32 %v303, %v463
        %v496 = vadd.f32 %v304, %v464
        %v497 = vadd.f32 %v305, %v465
        %v498 = vadd.f32 %v306, %v466
        %v499 = vadd.f32 %v307, %v467
        %v500 = vadd.f32 %v308, %v468
        %v501 = vadd.f32 %v309, %v469
        %v502 = vadd.f32 %v310, %v470
        %v503 = vadd.f32 %v311, %v471
        %v504 = vadd.f32 %v312, %v472
        %v505 = vadd.f32 %v313, %v473
        %v506 = vadd.f32 %v314, %v474
        %v507 = vadd.f32 %v315, %v475
        %v508 = vadd.f32 %v316, %v476
        %v509 = vadd.f32 %v317, %v477
        %v510 = vadd.f32 %v318, %v478
        %v511 = vadd.f32 %v319, %v479
        %v512 = vadd.f32 %v320, %v480
        %v513 = vadd.f32 %v321, %v481
        %v514 = vadd.f32 %v322, %v482
        %v515 = vadd.f32 %v323, %v483
        %vm516 = vcmp.lt.f32.partialorder %v356, 0.0
        %vm517 = vcmp.lt.f32.partialorder %v357, 0.0
        %vm518 = vcmp.lt.f32.partialorder %v358, 0.0
        %vm519 = vcmp.lt.f32.partialorder %v359, 0.0
        %vm520 = vcmp.lt.f32.partialorder %v360, 0.0
        %vm521 = vcmp.lt.f32.partialorder %v361, 0.0
        %vm522 = vcmp.lt.f32.partialorder %v362, 0.0
        %vm523 = vcmp.lt.f32.partialorder %v363, 0.0
        %vm524 = vcmp.lt.f32.partialorder %v364, 0.0
        %vm525 = vcmp.lt.f32.partialorder %v365, 0.0
        %vm526 = vcmp.lt.f32.partialorder %v366, 0.0
        %vm527 = vcmp.lt.f32.partialorder %v367, 0.0
        %vm528 = vcmp.lt.f32.partialorder %v368, 0.0
        %vm529 = vcmp.lt.f32.partialorder %v369, 0.0
        %vm530 = vcmp.lt.f32.partialorder %v370, 0.0
        %vm531 = vcmp.lt.f32.partialorder %v371, 0.0
        %vm532 = vcmp.lt.f32.partialorder %v372, 0.0
        %vm533 = vcmp.lt.f32.partialorder %v373, 0.0
        %vm534 = vcmp.lt.f32.partialorder %v374, 0.0
        %vm535 = vcmp.lt.f32.partialorder %v375, 0.0
        %vm536 = vcmp.lt.f32.partialorder %v376, 0.0
        %vm537 = vcmp.lt.f32.partialorder %v377, 0.0
        %vm538 = vcmp.lt.f32.partialorder %v378, 0.0
        %vm539 = vcmp.lt.f32.partialorder %v379, 0.0
        %vm540 = vcmp.lt.f32.partialorder %v380, 0.0
        %vm541 = vcmp.lt.f32.partialorder %v381, 0.0
        %vm542 = vcmp.lt.f32.partialorder %v382, 0.0
        %vm543 = vcmp.lt.f32.partialorder %v383, 0.0
        %vm544 = vcmp.lt.f32.partialorder %v384, 0.0
        %vm545 = vcmp.lt.f32.partialorder %v385, 0.0
        %vm546 = vcmp.lt.f32.partialorder %v386, 0.0
        %vm547 = vcmp.lt.f32.partialorder %v387, 0.0
        %v548 = vsel %vm516, 1, 0
        %v549 = vsel %vm517, 1, 0
        %v550 = vsel %vm518, 1, 0
        %v551 = vsel %vm519, 1, 0
        %v552 = vsel %vm520, 1, 0
        %v553 = vsel %vm521, 1, 0
        %v554 = vsel %vm522, 1, 0
        %v555 = vsel %vm523, 1, 0
        %v556 = vsel %vm524, 1, 0
        %v557 = vsel %vm525, 1, 0
        %v558 = vsel %vm526, 1, 0
        %v559 = vsel %vm527, 1, 0
        %v560 = vsel %vm528, 1, 0
        %v561 = vsel %vm529, 1, 0
        %v562 = vsel %vm530, 1, 0
        %v563 = vsel %vm531, 1, 0
        %v564 = vsel %vm532, 1, 0
        %v565 = vsel %vm533, 1, 0
        %v566 = vsel %vm534, 1, 0
        %v567 = vsel %vm535, 1, 0
        %v568 = vsel %vm536, 1, 0
        %v569 = vsel %vm537, 1, 0
        %v570 = vsel %vm538, 1, 0
        %v571 = vsel %vm539, 1, 0
        %v572 = vsel %vm540, 1, 0
        %v573 = vsel %vm541, 1, 0
        %v574 = vsel %vm542, 1, 0
        %v575 = vsel %vm543, 1, 0
        %v576 = vsel %vm544, 1, 0
        %v577 = vsel %vm545, 1, 0
        %v578 = vsel %vm546, 1, 0
        %v579 = vsel %vm547, 1, 0
        %v580 = vcvt.s32.f32 %v548
        %v581 = vcvt.s32.f32 %v549
        %v582 = vcvt.s32.f32 %v550
        %v583 = vcvt.s32.f32 %v551
        %v584 = vcvt.s32.f32 %v552
        %v585 = vcvt.s32.f32 %v553
        %v586 = vcvt.s32.f32 %v554
        %v587 = vcvt.s32.f32 %v555
        %v588 = vcvt.s32.f32 %v556
        %v589 = vcvt.s32.f32 %v557
        %v590 = vcvt.s32.f32 %v558
        %v591 = vcvt.s32.f32 %v559
        %v592 = vcvt.s32.f32 %v560
        %v593 = vcvt.s32.f32 %v561
        %v594 = vcvt.s32.f32 %v562
        %v595 = vcvt.s32.f32 %v563
        %v596 = vcvt.s32.f32 %v564
        %v597 = vcvt.s32.f32 %v565
        %v598 = vcvt.s32.f32 %v566
        %v599 = vcvt.s32.f32 %v567
        %v600 = vcvt.s32.f32 %v568
        %v601 = vcvt.s32.f32 %v569
        %v602 = vcvt.s32.f32 %v570
        %v603 = vcvt.s32.f32 %v571
        %v604 = vcvt.s32.f32 %v572
        %v605 = vcvt.s32.f32 %v573
        %v606 = vcvt.s32.f32 %v574
        %v607 = vcvt.s32.f32 %v575
        %v608 = vcvt.s32.f32 %v576
        %v609 = vcvt.s32.f32 %v577
        %v610 = vcvt.s32.f32 %v578
        %v611 = vcvt.s32.f32 %v579
        %v612 = vsub.f32 %v484, %v580
        %v613 = vsub.f32 %v485, %v581
        %v614 = vsub.f32 %v486, %v582
        %v615 = vsub.f32 %v487, %v583
        %v616 = vsub.f32 %v488, %v584
        %v617 = vsub.f32 %v489, %v585
        %v618 = vsub.f32 %v490, %v586
        %v619 = vsub.f32 %v491, %v587
        %v620 = vsub.f32 %v492, %v588
        %v621 = vsub.f32 %v493, %v589
        %v622 = vsub.f32 %v494, %v590
        %v623 = vsub.f32 %v495, %v591
        %v624 = vsub.f32 %v496, %v592
        %v625 = vsub.f32 %v497, %v593
        %v626 = vsub.f32 %v498, %v594
        %v627 = vsub.f32 %v499, %v595
        %v628 = vsub.f32 %v500, %v596
        %v629 = vsub.f32 %v501, %v597
        %v630 = vsub.f32 %v502, %v598
        %v631 = vsub.f32 %v503, %v599
        %v632 = vsub.f32 %v504, %v600
        %v633 = vsub.f32 %v505, %v601
        %v634 = vsub.f32 %v506, %v602
        %v635 = vsub.f32 %v507, %v603
        %v636 = vsub.f32 %v508, %v604
        %v637 = vsub.f32 %v509, %v605
        %v638 = vsub.f32 %v510, %v606
        %v639 = vsub.f32 %v511, %v607
        %v640 = vsub.f32 %v512, %v608
        %v641 = vsub.f32 %v513, %v609
        %v642 = vsub.f32 %v514, %v610
        %v643 = vsub.f32 %v515, %v611
        %v644 = vmul.f32 %v612, 9.0
        %v645 = vmul.f32 %v613, 9.0
        %v646 = vmul.f32 %v614, 9.0
        %v647 = vmul.f32 %v615, 9.0
        %v648 = vmul.f32 %v616, 9.0
        %v649 = vmul.f32 %v617, 9.0
        %v650 = vmul.f32 %v618, 9.0
        %v651 = vmul.f32 %v619, 9.0
        %v652 = vmul.f32 %v620, 9.0
        %v653 = vmul.f32 %v621, 9.0
        %v654 = vmul.f32 %v622, 9.0
        %v655 = vmul.f32 %v623, 9.0
        %v656 = vmul.f32 %v624, 9.0
        %v657 = vmul.f32 %v625, 9.0
        %v658 = vmul.f32 %v626, 9.0
        %v659 = vmul.f32 %v627, 9.0
        %v660 = vmul.f32 %v628, 9.0
        %v661 = vmul.f32 %v629, 9.0
        %v662 = vmul.f32 %v630, 9.0
        %v663 = vmul.f32 %v631, 9.0
        %v664 = vmul.f32 %v632, 9.0
        %v665 = vmul.f32 %v633, 9.0
        %v666 = vmul.f32 %v634, 9.0
        %v667 = vmul.f32 %v635, 9.0
        %v668 = vmul.f32 %v636, 9.0
        %v669 = vmul.f32 %v637, 9.0
        %v670 = vmul.f32 %v638, 9.0
        %v671 = vmul.f32 %v639, 9.0
        %v672 = vmul.f32 %v640, 9.0
        %v673 = vmul.f32 %v641, 9.0
        %v674 = vmul.f32 %v642, 9.0
        %v675 = vmul.f32 %v643, 9.0
        %v676 = vsub.f32 %v227, %v644
        %v677 = vsub.f32 %v228, %v645
        %v678 = vsub.f32 %v229, %v646
        %v679 = vsub.f32 %v230, %v647
        %v680 = vsub.f32 %v231, %v648
        %v681 = vsub.f32 %v232, %v649
        %v682 = vsub.f32 %v233, %v650
        %v683 = vsub.f32 %v234, %v651
        %v684 = vsub.f32 %v235, %v652
        %v685 = vsub.f32 %v236, %v653
        %v686 = vsub.f32 %v237, %v654
        %v687 = vsub.f32 %v238, %v655
        %v688 = vsub.f32 %v239, %v656
        %v689 = vsub.f32 %v240, %v657
        %v690 = vsub.f32 %v241, %v658
        %v691 = vsub.f32 %v242, %v659
        %v692 = vsub.f32 %v243, %v660
        %v693 = vsub.f32 %v244, %v661
        %v694 = vsub.f32 %v245, %v662
        %v695 = vsub.f32 %v246, %v663
        %v696 = vsub.f32 %v247, %v664
        %v697 = vsub.f32 %v248, %v665
        %v698 = vsub.f32 %v249, %v666
        %v699 = vsub.f32 %v250, %v667
        %v700 = vsub.f32 %v251, %v668
        %v701 = vsub.f32 %v252, %v669
        %v702 = vsub.f32 %v253, %v670
        %v703 = vsub.f32 %v254, %v671
        %v704 = vsub.f32 %v255, %v672
        %v705 = vsub.f32 %v256, %v673
        %v706 = vsub.f32 %v257, %v674
        %v707 = vsub.f32 %v258, %v675
        %v708 = vmul.f32 %v612, %v259
        %v709 = vmul.f32 %v613, %v259
        %v710 = vmul.f32 %v614, %v259
        %v711 = vmul.f32 %v615, %v259
        %v712 = vmul.f32 %v616, %v259
        %v713 = vmul.f32 %v617, %v259
        %v714 = vmul.f32 %v618, %v259
        %v715 = vmul.f32 %v619, %v259
        %v716 = vmul.f32 %v620, %v259
        %v717 = vmul.f32 %v621, %v259
        %v718 = vmul.f32 %v622, %v259
        %v719 = vmul.f32 %v623, %v259
        %v720 = vmul.f32 %v624, %v259
        %v721 = vmul.f32 %v625, %v259
        %v722 = vmul.f32 %v626, %v259
        %v723 = vmul.f32 %v627, %v259
        %v724 = vmul.f32 %v628, %v259
        %v725 = vmul.f32 %v629, %v259
        %v726 = vmul.f32 %v630, %v259
        %v727 = vmul.f32 %v631, %v259
        %v728 = vmul.f32 %v632, %v259
        %v729 = vmul.f32 %v633, %v259
        %v730 = vmul.f32 %v634, %v259
        %v731 = vmul.f32 %v635, %v259
        %v732 = vmul.f32 %v636, %v259
        %v733 = vmul.f32 %v637, %v259
        %v734 = vmul.f32 %v638, %v259
        %v735 = vmul.f32 %v639, %v259
        %v736 = vmul.f32 %v640, %v259
        %v737 = vmul.f32 %v641, %v259
        %v738 = vmul.f32 %v642, %v259
        %v739 = vmul.f32 %v643, %v259
        %v740 = vfloor.f32 %v708
        %v741 = vfloor.f32 %v709
        %v742 = vfloor.f32 %v710
        %v743 = vfloor.f32 %v711
        %v744 = vfloor.f32 %v712
        %v745 = vfloor.f32 %v713
        %v746 = vfloor.f32 %v714
        %v747 = vfloor.f32 %v715
        %v748 = vfloor.f32 %v716
        %v749 = vfloor.f32 %v717
        %v750 = vfloor.f32 %v718
        %v751 = vfloor.f32 %v719
        %v752 = vfloor.f32 %v720
        %v753 = vfloor.f32 %v721
        %v754 = vfloor.f32 %v722
        %v755 = vfloor.f32 %v723
        %v756 = vfloor.f32 %v724
        %v757 = vfloor.f32 %v725
        %v758 = vfloor.f32 %v726
        %v759 = vfloor.f32 %v727
        %v760 = vfloor.f32 %v728
        %v761 = vfloor.f32 %v729
        %v762 = vfloor.f32 %v730
        %v763 = vfloor.f32 %v731
        %v764 = vfloor.f32 %v732
        %v765 = vfloor.f32 %v733
        %v766 = vfloor.f32 %v734
        %v767 = vfloor.f32 %v735
        %v768 = vfloor.f32 %v736
        %v769 = vfloor.f32 %v737
        %v770 = vfloor.f32 %v738
        %v771 = vfloor.f32 %v739
        %v772 = vmul.f32 %v740, 9.0
        %v773 = vmul.f32 %v741, 9.0
        %v774 = vmul.f32 %v742, 9.0
        %v775 = vmul.f32 %v743, 9.0
        %v776 = vmul.f32 %v744, 9.0
        %v777 = vmul.f32 %v745, 9.0
        %v778 = vmul.f32 %v746, 9.0
        %v779 = vmul.f32 %v747, 9.0
        %v780 = vmul.f32 %v748, 9.0
        %v781 = vmul.f32 %v749, 9.0
        %v782 = vmul.f32 %v750, 9.0
        %v783 = vmul.f32 %v751, 9.0
        %v784 = vmul.f32 %v752, 9.0
        %v785 = vmul.f32 %v753, 9.0
        %v786 = vmul.f32 %v754, 9.0
        %v787 = vmul.f32 %v755, 9.0
        %v788 = vmul.f32 %v756, 9.0
        %v789 = vmul.f32 %v757, 9.0
        %v790 = vmul.f32 %v758, 9.0
        %v791 = vmul.f32 %v759, 9.0
        %v792 = vmul.f32 %v760, 9.0
        %v793 = vmul.f32 %v761, 9.0
        %v794 = vmul.f32 %v762, 9.0
        %v795 = vmul.f32 %v763, 9.0
        %v796 = vmul.f32 %v764, 9.0
        %v797 = vmul.f32 %v765, 9.0
        %v798 = vmul.f32 %v766, 9.0
        %v799 = vmul.f32 %v767, 9.0
        %v800 = vmul.f32 %v768, 9.0
        %v801 = vmul.f32 %v769, 9.0
        %v802 = vmul.f32 %v770, 9.0
        %v803 = vmul.f32 %v771, 9.0
        %v804 = vsub.f32 %v612, %v772
        %v805 = vsub.f32 %v613, %v773
        %v806 = vsub.f32 %v614, %v774
        %v807 = vsub.f32 %v615, %v775
        %v808 = vsub.f32 %v616, %v776
        %v809 = vsub.f32 %v617, %v777
        %v810 = vsub.f32 %v618, %v778
        %v811 = vsub.f32 %v619, %v779
        %v812 = vsub.f32 %v620, %v780
        %v813 = vsub.f32 %v621, %v781
        %v814 = vsub.f32 %v622, %v782
        %v815 = vsub.f32 %v623, %v783
        %v816 = vsub.f32 %v624, %v784
        %v817 = vsub.f32 %v625, %v785
        %v818 = vsub.f32 %v626, %v786
        %v819 = vsub.f32 %v627, %v787
        %v820 = vsub.f32 %v628, %v788
        %v821 = vsub.f32 %v629, %v789
        %v822 = vsub.f32 %v630, %v790
        %v823 = vsub.f32 %v631, %v791
        %v824 = vsub.f32 %v632, %v792
        %v825 = vsub.f32 %v633, %v793
        %v826 = vsub.f32 %v634, %v794
        %v827 = vsub.f32 %v635, %v795
        %v828 = vsub.f32 %v636, %v796
        %v829 = vsub.f32 %v637, %v797
        %v830 = vsub.f32 %v638, %v798
        %v831 = vsub.f32 %v639, %v799
        %v832 = vsub.f32 %v640, %v800
        %v833 = vsub.f32 %v641, %v801
        %v834 = vsub.f32 %v642, %v802
        %v835 = vsub.f32 %v643, %v803
        %vm836 = vcmp.ge.f32.partialorder %v804, 9.0
        %vm837 = vcmp.ge.f32.partialorder %v805, 9.0
        %vm838 = vcmp.ge.f32.partialorder %v806, 9.0
        %vm839 = vcmp.ge.f32.partialorder %v807, 9.0
        %vm840 = vcmp.ge.f32.partialorder %v808, 9.0
        %vm841 = vcmp.ge.f32.partialorder %v809, 9.0
        %vm842 = vcmp.ge.f32.partialorder %v810, 9.0
        %vm843 = vcmp.ge.f32.partialorder %v811, 9.0
        %vm844 = vcmp.ge.f32.partialorder %v812, 9.0
        %vm845 = vcmp.ge.f32.partialorder %v813, 9.0
        %vm846 = vcmp.ge.f32.partialorder %v814, 9.0
        %vm847 = vcmp.ge.f32.partialorder %v815, 9.0
        %vm848 = vcmp.ge.f32.partialorder %v816, 9.0
        %vm849 = vcmp.ge.f32.partialorder %v817, 9.0
        %vm850 = vcmp.ge.f32.partialorder %v818, 9.0
        %vm851 = vcmp.ge.f32.partialorder %v819, 9.0
        %vm852 = vcmp.ge.f32.partialorder %v820, 9.0
        %vm853 = vcmp.ge.f32.partialorder %v821, 9.0
        %vm854 = vcmp.ge.f32.partialorder %v822, 9.0
        %vm855 = vcmp.ge.f32.partialorder %v823, 9.0
        %vm856 = vcmp.ge.f32.partialorder %v824, 9.0
        %vm857 = vcmp.ge.f32.partialorder %v825, 9.0
        %vm858 = vcmp.ge.f32.partialorder %v826, 9.0
        %vm859 = vcmp.ge.f32.partialorder %v827, 9.0
        %vm860 = vcmp.ge.f32.partialorder %v828, 9.0
        %vm861 = vcmp.ge.f32.partialorder %v829, 9.0
        %vm862 = vcmp.ge.f32.partialorder %v830, 9.0
        %vm863 = vcmp.ge.f32.partialorder %v831, 9.0
        %vm864 = vcmp.ge.f32.partialorder %v832, 9.0
        %vm865 = vcmp.ge.f32.partialorder %v833, 9.0
        %vm866 = vcmp.ge.f32.partialorder %v834, 9.0
        %vm867 = vcmp.ge.f32.partialorder %v835, 9.0
        %v868 = vsel %vm836, 1, 0
        %v869 = vsel %vm837, 1, 0
        %v870 = vsel %vm838, 1, 0
        %v871 = vsel %vm839, 1, 0
        %v872 = vsel %vm840, 1, 0
        %v873 = vsel %vm841, 1, 0
        %v874 = vsel %vm842, 1, 0
        %v875 = vsel %vm843, 1, 0
        %v876 = vsel %vm844, 1, 0
        %v877 = vsel %vm845, 1, 0
        %v878 = vsel %vm846, 1, 0
        %v879 = vsel %vm847, 1, 0
        %v880 = vsel %vm848, 1, 0
        %v881 = vsel %vm849, 1, 0
        %v882 = vsel %vm850, 1, 0
        %v883 = vsel %vm851, 1, 0
        %v884 = vsel %vm852, 1, 0
        %v885 = vsel %vm853, 1, 0
        %v886 = vsel %vm854, 1, 0
        %v887 = vsel %vm855, 1, 0
        %v888 = vsel %vm856, 1, 0
        %v889 = vsel %vm857, 1, 0
        %v890 = vsel %vm858, 1, 0
        %v891 = vsel %vm859, 1, 0
        %v892 = vsel %vm860, 1, 0
        %v893 = vsel %vm861, 1, 0
        %v894 = vsel %vm862, 1, 0
        %v895 = vsel %vm863, 1, 0
        %v896 = vsel %vm864, 1, 0
        %v897 = vsel %vm865, 1, 0
        %v898 = vsel %vm866, 1, 0
        %v899 = vsel %vm867, 1, 0
        %v900 = vcvt.s32.f32 %v868
        %v901 = vcvt.s32.f32 %v869
        %v902 = vcvt.s32.f32 %v870
        %v903 = vcvt.s32.f32 %v871
        %v904 = vcvt.s32.f32 %v872
        %v905 = vcvt.s32.f32 %v873
        %v906 = vcvt.s32.f32 %v874
        %v907 = vcvt.s32.f32 %v875
        %v908 = vcvt.s32.f32 %v876
        %v909 = vcvt.s32.f32 %v877
        %v910 = vcvt.s32.f32 %v878
        %v911 = vcvt.s32.f32 %v879
        %v912 = vcvt.s32.f32 %v880
        %v913 = vcvt.s32.f32 %v881
        %v914 = vcvt.s32.f32 %v882
        %v915 = vcvt.s32.f32 %v883
        %v916 = vcvt.s32.f32 %v884
        %v917 = vcvt.s32.f32 %v885
        %v918 = vcvt.s32.f32 %v886
        %v919 = vcvt.s32.f32 %v887
        %v920 = vcvt.s32.f32 %v888
        %v921 = vcvt.s32.f32 %v889
        %v922 = vcvt.s32.f32 %v890
        %v923 = vcvt.s32.f32 %v891
        %v924 = vcvt.s32.f32 %v892
        %v925 = vcvt.s32.f32 %v893
        %v926 = vcvt.s32.f32 %v894
        %v927 = vcvt.s32.f32 %v895
        %v928 = vcvt.s32.f32 %v896
        %v929 = vcvt.s32.f32 %v897
        %v930 = vcvt.s32.f32 %v898
        %v931 = vcvt.s32.f32 %v899
        %v932 = vadd.f32 %v740, %v900
        %v933 = vadd.f32 %v741, %v901
        %v934 = vadd.f32 %v742, %v902
        %v935 = vadd.f32 %v743, %v903
        %v936 = vadd.f32 %v744, %v904
        %v937 = vadd.f32 %v745, %v905
        %v938 = vadd.f32 %v746, %v906
        %v939 = vadd.f32 %v747, %v907
        %v940 = vadd.f32 %v748, %v908
        %v941 = vadd.f32 %v749, %v909
        %v942 = vadd.f32 %v750, %v910
        %v943 = vadd.f32 %v751, %v911
        %v944 = vadd.f32 %v752, %v912
        %v945 = vadd.f32 %v753, %v913
        %v946 = vadd.f32 %v754, %v914
        %v947 = vadd.f32 %v755, %v915
        %v948 = vadd.f32 %v756, %v916
        %v949 = vadd.f32 %v757, %v917
        %v950 = vadd.f32 %v758, %v918
        %v951 = vadd.f32 %v759, %v919
        %v952 = vadd.f32 %v760, %v920
        %v953 = vadd.f32 %v761, %v921
        %v954 = vadd.f32 %v762, %v922
        %v955 = vadd.f32 %v763, %v923
        %v956 = vadd.f32 %v764, %v924
        %v957 = vadd.f32 %v765, %v925
        %v958 = vadd.f32 %v766, %v926
        %v959 = vadd.f32 %v767, %v927
        %v960 = vadd.f32 %v768, %v928
        %v961 = vadd.f32 %v769, %v929
        %v962 = vadd.f32 %v770, %v930
        %v963 = vadd.f32 %v771, %v931
        %vm964 = vcmp.lt.f32.partialorder %v804, 0.0
        %vm965 = vcmp.lt.f32.partialorder %v805, 0.0
        %vm966 = vcmp.lt.f32.partialorder %v806, 0.0
        %vm967 = vcmp.lt.f32.partialorder %v807, 0.0
        %vm968 = vcmp.lt.f32.partialorder %v808, 0.0
        %vm969 = vcmp.lt.f32.partialorder %v809, 0.0
        %vm970 = vcmp.lt.f32.partialorder %v810, 0.0
        %vm971 = vcmp.lt.f32.partialorder %v811, 0.0
        %vm972 = vcmp.lt.f32.partialorder %v812, 0.0
        %vm973 = vcmp.lt.f32.partialorder %v813, 0.0
        %vm974 = vcmp.lt.f32.partialorder %v814, 0.0
        %vm975 = vcmp.lt.f32.partialorder %v815, 0.0
        %vm976 = vcmp.lt.f32.partialorder %v816, 0.0
        %vm977 = vcmp.lt.f32.partialorder %v817, 0.0
        %vm978 = vcmp.lt.f32.partialorder %v818, 0.0
        %vm979 = vcmp.lt.f32.partialorder %v819, 0.0
        %vm980 = vcmp.lt.f32.partialorder %v820, 0.0
        %vm981 = vcmp.lt.f32.partialorder %v821, 0.0
        %vm982 = vcmp.lt.f32.partialorder %v822, 0.0
        %vm983 = vcmp.lt.f32.partialorder %v823, 0.0
        %vm984 = vcmp.lt.f32.partialorder %v824, 0.0
        %vm985 = vcmp.lt.f32.partialorder %v825, 0.0
        %vm986 = vcmp.lt.f32.partialorder %v826, 0.0
        %vm987 = vcmp.lt.f32.partialorder %v827, 0.0
        %vm988 = vcmp.lt.f32.partialorder %v828, 0.0
        %vm989 = vcmp.lt.f32.partialorder %v829, 0.0
        %vm990 = vcmp.lt.f32.partialorder %v830, 0.0
        %vm991 = vcmp.lt.f32.partialorder %v831, 0.0
        %vm992 = vcmp.lt.f32.partialorder %v832, 0.0
        %vm993 = vcmp.lt.f32.partialorder %v833, 0.0
        %vm994 = vcmp.lt.f32.partialorder %v834, 0.0
        %vm995 = vcmp.lt.f32.partialorder %v835, 0.0
        %v996 = vsel %vm964, 1, 0
        %v997 = vsel %vm965, 1, 0
        %v998 = vsel %vm966, 1, 0
        %v999 = vsel %vm967, 1, 0
        %v1000 = vsel %vm968, 1, 0
        %v1001 = vsel %vm969, 1, 0
        %v1002 = vsel %vm970, 1, 0
        %v1003 = vsel %vm971, 1, 0
        %v1004 = vsel %vm972, 1, 0
        %v1005 = vsel %vm973, 1, 0
        %v1006 = vsel %vm974, 1, 0
        %v1007 = vsel %vm975, 1, 0
        %v1008 = vsel %vm976, 1, 0
        %v1009 = vsel %vm977, 1, 0
        %v1010 = vsel %vm978, 1, 0
        %v1011 = vsel %vm979, 1, 0
        %v1012 = vsel %vm980, 1, 0
        %v1013 = vsel %vm981, 1, 0
        %v1014 = vsel %vm982, 1, 0
        %v1015 = vsel %vm983, 1, 0
        %v1016 = vsel %vm984, 1, 0
        %v1017 = vsel %vm985, 1, 0
        %v1018 = vsel %vm986, 1, 0
        %v1019 = vsel %vm987, 1, 0
        %v1020 = vsel %vm988, 1, 0
        %v1021 = vsel %vm989, 1, 0
        %v1022 = vsel %vm990, 1, 0
        %v1023 = vsel %vm991, 1, 0
        %v1024 = vsel %vm992, 1, 0
        %v1025 = vsel %vm993, 1, 0
        %v1026 = vsel %vm994, 1, 0
        %v1027 = vsel %vm995, 1, 0
        %v1028 = vcvt.s32.f32 %v996
        %v1029 = vcvt.s32.f32 %v997
        %v1030 = vcvt.s32.f32 %v998
        %v1031 = vcvt.s32.f32 %v999
        %v1032 = vcvt.s32.f32 %v1000
        %v1033 = vcvt.s32.f32 %v1001
        %v1034 = vcvt.s32.f32 %v1002
        %v1035 = vcvt.s32.f32 %v1003
        %v1036 = vcvt.s32.f32 %v1004
        %v1037 = vcvt.s32.f32 %v1005
        %v1038 = vcvt.s32.f32 %v1006
        %v1039 = vcvt.s32.f32 %v1007
        %v1040 = vcvt.s32.f32 %v1008
        %v1041 = vcvt.s32.f32 %v1009
        %v1042 = vcvt.s32.f32 %v1010
        %v1043 = vcvt.s32.f32 %v1011
        %v1044 = vcvt.s32.f32 %v1012
        %v1045 = vcvt.s32.f32 %v1013
        %v1046 = vcvt.s32.f32 %v1014
        %v1047 = vcvt.s32.f32 %v1015
        %v1048 = vcvt.s32.f32 %v1016
        %v1049 = vcvt.s32.f32 %v1017
        %v1050 = vcvt.s32.f32 %v1018
        %v1051 = vcvt.s32.f32 %v1019
        %v1052 = vcvt.s32.f32 %v1020
        %v1053 = vcvt.s32.f32 %v1021
        %v1054 = vcvt.s32.f32 %v1022
        %v1055 = vcvt.s32.f32 %v1023
        %v1056 = vcvt.s32.f32 %v1024
        %v1057 = vcvt.s32.f32 %v1025
        %v1058 = vcvt.s32.f32 %v1026
        %v1059 = vcvt.s32.f32 %v1027
        %v1060 = vsub.f32 %v932, %v1028
        %v1061 = vsub.f32 %v933, %v1029
        %v1062 = vsub.f32 %v934, %v1030
        %v1063 = vsub.f32 %v935, %v1031
        %v1064 = vsub.f32 %v936, %v1032
        %v1065 = vsub.f32 %v937, %v1033
        %v1066 = vsub.f32 %v938, %v1034
        %v1067 = vsub.f32 %v939, %v1035
        %v1068 = vsub.f32 %v940, %v1036
        %v1069 = vsub.f32 %v941, %v1037
        %v1070 = vsub.f32 %v942, %v1038
        %v1071 = vsub.f32 %v943, %v1039
        %v1072 = vsub.f32 %v944, %v1040
        %v1073 = vsub.f32 %v945, %v1041
        %v1074 = vsub.f32 %v946, %v1042
        %v1075 = vsub.f32 %v947, %v1043
        %v1076 = vsub.f32 %v948, %v1044
        %v1077 = vsub.f32 %v949, %v1045
        %v1078 = vsub.f32 %v950, %v1046
        %v1079 = vsub.f32 %v951, %v1047
        %v1080 = vsub.f32 %v952, %v1048
        %v1081 = vsub.f32 %v953, %v1049
        %v1082 = vsub.f32 %v954, %v1050
        %v1083 = vsub.f32 %v955, %v1051
        %v1084 = vsub.f32 %v956, %v1052
        %v1085 = vsub.f32 %v957, %v1053
        %v1086 = vsub.f32 %v958, %v1054
        %v1087 = vsub.f32 %v959, %v1055
        %v1088 = vsub.f32 %v960, %v1056
        %v1089 = vsub.f32 %v961, %v1057
        %v1090 = vsub.f32 %v962, %v1058
        %v1091 = vsub.f32 %v963, %v1059
        %v1092 = vmul.f32 %v1060, 9.0
        %v1093 = vmul.f32 %v1061, 9.0
        %v1094 = vmul.f32 %v1062, 9.0
        %v1095 = vmul.f32 %v1063, 9.0
        %v1096 = vmul.f32 %v1064, 9.0
        %v1097 = vmul.f32 %v1065, 9.0
        %v1098 = vmul.f32 %v1066, 9.0
        %v1099 = vmul.f32 %v1067, 9.0
        %v1100 = vmul.f32 %v1068, 9.0
        %v1101 = vmul.f32 %v1069, 9.0
        %v1102 = vmul.f32 %v1070, 9.0
        %v1103 = vmul.f32 %v1071, 9.0
        %v1104 = vmul.f32 %v1072, 9.0
        %v1105 = vmul.f32 %v1073, 9.0
        %v1106 = vmul.f32 %v1074, 9.0
        %v1107 = vmul.f32 %v1075, 9.0
        %v1108 = vmul.f32 %v1076, 9.0
        %v1109 = vmul.f32 %v1077, 9.0
        %v1110 = vmul.f32 %v1078, 9.0
        %v1111 = vmul.f32 %v1079, 9.0
        %v1112 = vmul.f32 %v1080, 9.0
        %v1113 = vmul.f32 %v1081, 9.0
        %v1114 = vmul.f32 %v1082, 9.0
        %v1115 = vmul.f32 %v1083, 9.0
        %v1116 = vmul.f32 %v1084, 9.0
        %v1117 = vmul.f32 %v1085, 9.0
        %v1118 = vmul.f32 %v1086, 9.0
        %v1119 = vmul.f32 %v1087, 9.0
        %v1120 = vmul.f32 %v1088, 9.0
        %v1121 = vmul.f32 %v1089, 9.0
        %v1122 = vmul.f32 %v1090, 9.0
        %v1123 = vmul.f32 %v1091, 9.0
        %v1124 = vsub.f32 %v612, %v1092
        %v1125 = vsub.f32 %v613, %v1093
        %v1126 = vsub.f32 %v614, %v1094
        %v1127 = vsub.f32 %v615, %v1095
        %v1128 = vsub.f32 %v616, %v1096
        %v1129 = vsub.f32 %v617, %v1097
        %v1130 = vsub.f32 %v618, %v1098
        %v1131 = vsub.f32 %v619, %v1099
        %v1132 = vsub.f32 %v620, %v1100
        %v1133 = vsub.f32 %v621, %v1101
        %v1134 = vsub.f32 %v622, %v1102
        %v1135 = vsub.f32 %v623, %v1103
        %v1136 = vsub.f32 %v624, %v1104
        %v1137 = vsub.f32 %v625, %v1105
        %v1138 = vsub.f32 %v626, %v1106
        %v1139 = vsub.f32 %v627, %v1107
        %v1140 = vsub.f32 %v628, %v1108
        %v1141 = vsub.f32 %v629, %v1109
        %v1142 = vsub.f32 %v630, %v1110
        %v1143 = vsub.f32 %v631, %v1111
        %v1144 = vsub.f32 %v632, %v1112
        %v1145 = vsub.f32 %v633, %v1113
        %v1146 = vsub.f32 %v634, %v1114
        %v1147 = vsub.f32 %v635, %v1115
        %v1148 = vsub.f32 %v636, %v1116
        %v1149 = vsub.f32 %v637, %v1117
        %v1150 = vsub.f32 %v638, %v1118
        %v1151 = vsub.f32 %v639, %v1119
        %v1152 = vsub.f32 %v640, %v1120
        %v1153 = vsub.f32 %v641, %v1121
        %v1154 = vsub.f32 %v642, %v1122
        %v1155 = vsub.f32 %v643, %v1123
        %v1157 = vlaneseq
        %v1158 = vshrl.u32 %v1157, 7
        %v1159 = vsub.s32 0, %v1158
        %v1160 = vrot.slane %v181, %v1159
        %v1161 = vlaneseq
        %v1162 = vshrl.u32 %v1161, 7
        %v1163 = vsub.s32 1, %v1162
        %v1164 = vrot.slane %v181, %v1163
        %v1167 = vsub.f32 %v676, %v1160
        %v1168 = vsub.f32 %v676, %v1164
        %v1169 = vsub.f32 %v677, %v1160
        %v1170 = vsub.f32 %v677, %v1164
        %v1171 = vsub.f32 %v678, %v1160
        %v1172 = vsub.f32 %v678, %v1164
        %v1173 = vsub.f32 %v679, %v1160
        %v1174 = vsub.f32 %v679, %v1164
        %v1175 = vsub.f32 %v680, %v1160
        %v1176 = vsub.f32 %v680, %v1164
        %v1177 = vsub.f32 %v681, %v1160
        %v1178 = vsub.f32 %v681, %v1164
        %v1179 = vsub.f32 %v682, %v1160
        %v1180 = vsub.f32 %v682, %v1164
        %v1181 = vsub.f32 %v683, %v1160
        %v1182 = vsub.f32 %v683, %v1164
        %v1183 = vsub.f32 %v684, %v1160
        %v1184 = vsub.f32 %v684, %v1164
        %v1185 = vsub.f32 %v685, %v1160
        %v1186 = vsub.f32 %v685, %v1164
        %v1187 = vsub.f32 %v686, %v1160
        %v1188 = vsub.f32 %v686, %v1164
        %v1189 = vsub.f32 %v687, %v1160
        %v1190 = vsub.f32 %v687, %v1164
        %v1191 = vsub.f32 %v688, %v1160
        %v1192 = vsub.f32 %v688, %v1164
        %v1193 = vsub.f32 %v689, %v1160
        %v1194 = vsub.f32 %v689, %v1164
        %v1195 = vsub.f32 %v690, %v1160
        %v1196 = vsub.f32 %v690, %v1164
        %v1197 = vsub.f32 %v691, %v1160
        %v1198 = vsub.f32 %v691, %v1164
        %v1199 = vsub.f32 %v692, %v1160
        %v1200 = vsub.f32 %v692, %v1164
        %v1201 = vsub.f32 %v693, %v1160
        %v1202 = vsub.f32 %v693, %v1164
        %v1203 = vsub.f32 %v694, %v1160
        %v1204 = vsub.f32 %v694, %v1164
        %v1205 = vsub.f32 %v695, %v1160
        %v1206 = vsub.f32 %v695, %v1164
        %v1207 = vsub.f32 %v696, %v1160
        %v1208 = vsub.f32 %v696, %v1164
        %v1209 = vsub.f32 %v697, %v1160
        %v1210 = vsub.f32 %v697, %v1164
        %v1211 = vsub.f32 %v698, %v1160
        %v1212 = vsub.f32 %v698, %v1164
        %v1213 = vsub.f32 %v699, %v1160
        %v1214 = vsub.f32 %v699, %v1164
        %v1215 = vsub.f32 %v700, %v1160
        %v1216 = vsub.f32 %v700, %v1164
        %v1217 = vsub.f32 %v701, %v1160
        %v1218 = vsub.f32 %v701, %v1164
        %v1219 = vsub.f32 %v702, %v1160
        %v1220 = vsub.f32 %v702, %v1164
        %v1221 = vsub.f32 %v703, %v1160
        %v1222 = vsub.f32 %v703, %v1164
        %v1223 = vsub.f32 %v704, %v1160
        %v1224 = vsub.f32 %v704, %v1164
        %v1225 = vsub.f32 %v705, %v1160
        %v1226 = vsub.f32 %v705, %v1164
        %v1227 = vsub.f32 %v706, %v1160
        %v1228 = vsub.f32 %v706, %v1164
        %v1229 = vsub.f32 %v707, %v1160
        %v1230 = vsub.f32 %v707, %v1164
        %v1231 = vand.u32 2147483647, %v1167
        %v1232 = vand.u32 2147483647, %v1168
        %v1233 = vand.u32 2147483647, %v1169
        %v1234 = vand.u32 2147483647, %v1170
        %v1235 = vand.u32 2147483647, %v1171
        %v1236 = vand.u32 2147483647, %v1172
        %v1237 = vand.u32 2147483647, %v1173
        %v1238 = vand.u32 2147483647, %v1174
        %v1239 = vand.u32 2147483647, %v1175
        %v1240 = vand.u32 2147483647, %v1176
        %v1241 = vand.u32 2147483647, %v1177
        %v1242 = vand.u32 2147483647, %v1178
        %v1243 = vand.u32 2147483647, %v1179
        %v1244 = vand.u32 2147483647, %v1180
        %v1245 = vand.u32 2147483647, %v1181
        %v1246 = vand.u32 2147483647, %v1182
        %v1247 = vand.u32 2147483647, %v1183
        %v1248 = vand.u32 2147483647, %v1184
        %v1249 = vand.u32 2147483647, %v1185
        %v1250 = vand.u32 2147483647, %v1186
        %v1251 = vand.u32 2147483647, %v1187
        %v1252 = vand.u32 2147483647, %v1188
        %v1253 = vand.u32 2147483647, %v1189
        %v1254 = vand.u32 2147483647, %v1190
        %v1255 = vand.u32 2147483647, %v1191
        %v1256 = vand.u32 2147483647, %v1192
        %v1257 = vand.u32 2147483647, %v1193
        %v1258 = vand.u32 2147483647, %v1194
        %v1259 = vand.u32 2147483647, %v1195
        %v1260 = vand.u32 2147483647, %v1196
        %v1261 = vand.u32 2147483647, %v1197
        %v1262 = vand.u32 2147483647, %v1198
        %v1263 = vand.u32 2147483647, %v1199
        %v1264 = vand.u32 2147483647, %v1200
        %v1265 = vand.u32 2147483647, %v1201
        %v1266 = vand.u32 2147483647, %v1202
        %v1267 = vand.u32 2147483647, %v1203
        %v1268 = vand.u32 2147483647, %v1204
        %v1269 = vand.u32 2147483647, %v1205
        %v1270 = vand.u32 2147483647, %v1206
        %v1271 = vand.u32 2147483647, %v1207
        %v1272 = vand.u32 2147483647, %v1208
        %v1273 = vand.u32 2147483647, %v1209
        %v1274 = vand.u32 2147483647, %v1210
        %v1275 = vand.u32 2147483647, %v1211
        %v1276 = vand.u32 2147483647, %v1212
        %v1277 = vand.u32 2147483647, %v1213
        %v1278 = vand.u32 2147483647, %v1214
        %v1279 = vand.u32 2147483647, %v1215
        %v1280 = vand.u32 2147483647, %v1216
        %v1281 = vand.u32 2147483647, %v1217
        %v1282 = vand.u32 2147483647, %v1218
        %v1283 = vand.u32 2147483647, %v1219
        %v1284 = vand.u32 2147483647, %v1220
        %v1285 = vand.u32 2147483647, %v1221
        %v1286 = vand.u32 2147483647, %v1222
        %v1287 = vand.u32 2147483647, %v1223
        %v1288 = vand.u32 2147483647, %v1224
        %v1289 = vand.u32 2147483647, %v1225
        %v1290 = vand.u32 2147483647, %v1226
        %v1291 = vand.u32 2147483647, %v1227
        %v1292 = vand.u32 2147483647, %v1228
        %v1293 = vand.u32 2147483647, %v1229
        %v1294 = vand.u32 2147483647, %v1230
        %v1295 = vsub.f32 1.0, %v1231
        %v1296 = vsub.f32 1.0, %v1232
        %v1297 = vsub.f32 1.0, %v1233
        %v1298 = vsub.f32 1.0, %v1234
        %v1299 = vsub.f32 1.0, %v1235
        %v1300 = vsub.f32 1.0, %v1236
        %v1301 = vsub.f32 1.0, %v1237
        %v1302 = vsub.f32 1.0, %v1238
        %v1303 = vsub.f32 1.0, %v1239
        %v1304 = vsub.f32 1.0, %v1240
        %v1305 = vsub.f32 1.0, %v1241
        %v1306 = vsub.f32 1.0, %v1242
        %v1307 = vsub.f32 1.0, %v1243
        %v1308 = vsub.f32 1.0, %v1244
        %v1309 = vsub.f32 1.0, %v1245
        %v1310 = vsub.f32 1.0, %v1246
        %v1311 = vsub.f32 1.0, %v1247
        %v1312 = vsub.f32 1.0, %v1248
        %v1313 = vsub.f32 1.0, %v1249
        %v1314 = vsub.f32 1.0, %v1250
        %v1315 = vsub.f32 1.0, %v1251
        %v1316 = vsub.f32 1.0, %v1252
        %v1317 = vsub.f32 1.0, %v1253
        %v1318 = vsub.f32 1.0, %v1254
        %v1319 = vsub.f32 1.0, %v1255
        %v1320 = vsub.f32 1.0, %v1256
        %v1321 = vsub.f32 1.0, %v1257
        %v1322 = vsub.f32 1.0, %v1258
        %v1323 = vsub.f32 1.0, %v1259
        %v1324 = vsub.f32 1.0, %v1260
        %v1325 = vsub.f32 1.0, %v1261
        %v1326 = vsub.f32 1.0, %v1262
        %v1327 = vsub.f32 1.0, %v1263
        %v1328 = vsub.f32 1.0, %v1264
        %v1329 = vsub.f32 1.0, %v1265
        %v1330 = vsub.f32 1.0, %v1266
        %v1331 = vsub.f32 1.0, %v1267
        %v1332 = vsub.f32 1.0, %v1268
        %v1333 = vsub.f32 1.0, %v1269
        %v1334 = vsub.f32 1.0, %v1270
        %v1335 = vsub.f32 1.0, %v1271
        %v1336 = vsub.f32 1.0, %v1272
        %v1337 = vsub.f32 1.0, %v1273
        %v1338 = vsub.f32 1.0, %v1274
        %v1339 = vsub.f32 1.0, %v1275
        %v1340 = vsub.f32 1.0, %v1276
        %v1341 = vsub.f32 1.0, %v1277
        %v1342 = vsub.f32 1.0, %v1278
        %v1343 = vsub.f32 1.0, %v1279
        %v1344 = vsub.f32 1.0, %v1280
        %v1345 = vsub.f32 1.0, %v1281
        %v1346 = vsub.f32 1.0, %v1282
        %v1347 = vsub.f32 1.0, %v1283
        %v1348 = vsub.f32 1.0, %v1284
        %v1349 = vsub.f32 1.0, %v1285
        %v1350 = vsub.f32 1.0, %v1286
        %v1351 = vsub.f32 1.0, %v1287
        %v1352 = vsub.f32 1.0, %v1288
        %v1353 = vsub.f32 1.0, %v1289
        %v1354 = vsub.f32 1.0, %v1290
        %v1355 = vsub.f32 1.0, %v1291
        %v1356 = vsub.f32 1.0, %v1292
        %v1357 = vsub.f32 1.0, %v1293
        %v1358 = vsub.f32 1.0, %v1294
        %v1359 = vmax.f32 %v1295, 0.0
        %v1360 = vmax.f32 %v1296, 0.0
        %v1361 = vmax.f32 %v1297, 0.0
        %v1362 = vmax.f32 %v1298, 0.0
        %v1363 = vmax.f32 %v1299, 0.0
        %v1364 = vmax.f32 %v1300, 0.0
        %v1365 = vmax.f32 %v1301, 0.0
        %v1366 = vmax.f32 %v1302, 0.0
        %v1367 = vmax.f32 %v1303, 0.0
        %v1368 = vmax.f32 %v1304, 0.0
        %v1369 = vmax.f32 %v1305, 0.0
        %v1370 = vmax.f32 %v1306, 0.0
        %v1371 = vmax.f32 %v1307, 0.0
        %v1372 = vmax.f32 %v1308, 0.0
        %v1373 = vmax.f32 %v1309, 0.0
        %v1374 = vmax.f32 %v1310, 0.0
        %v1375 = vmax.f32 %v1311, 0.0
        %v1376 = vmax.f32 %v1312, 0.0
        %v1377 = vmax.f32 %v1313, 0.0
        %v1378 = vmax.f32 %v1314, 0.0
        %v1379 = vmax.f32 %v1315, 0.0
        %v1380 = vmax.f32 %v1316, 0.0
        %v1381 = vmax.f32 %v1317, 0.0
        %v1382 = vmax.f32 %v1318, 0.0
        %v1383 = vmax.f32 %v1319, 0.0
        %v1384 = vmax.f32 %v1320, 0.0
        %v1385 = vmax.f32 %v1321, 0.0
        %v1386 = vmax.f32 %v1322, 0.0
        %v1387 = vmax.f32 %v1323, 0.0
        %v1388 = vmax.f32 %v1324, 0.0
        %v1389 = vmax.f32 %v1325, 0.0
        %v1390 = vmax.f32 %v1326, 0.0
        %v1391 = vmax.f32 %v1327, 0.0
        %v1392 = vmax.f32 %v1328, 0.0
        %v1393 = vmax.f32 %v1329, 0.0
        %v1394 = vmax.f32 %v1330, 0.0
        %v1395 = vmax.f32 %v1331, 0.0
        %v1396 = vmax.f32 %v1332, 0.0
        %v1397 = vmax.f32 %v1333, 0.0
        %v1398 = vmax.f32 %v1334, 0.0
        %v1399 = vmax.f32 %v1335, 0.0
        %v1400 = vmax.f32 %v1336, 0.0
        %v1401 = vmax.f32 %v1337, 0.0
        %v1402 = vmax.f32 %v1338, 0.0
        %v1403 = vmax.f32 %v1339, 0.0
        %v1404 = vmax.f32 %v1340, 0.0
        %v1405 = vmax.f32 %v1341, 0.0
        %v1406 = vmax.f32 %v1342, 0.0
        %v1407 = vmax.f32 %v1343, 0.0
        %v1408 = vmax.f32 %v1344, 0.0
        %v1409 = vmax.f32 %v1345, 0.0
        %v1410 = vmax.f32 %v1346, 0.0
        %v1411 = vmax.f32 %v1347, 0.0
        %v1412 = vmax.f32 %v1348, 0.0
        %v1413 = vmax.f32 %v1349, 0.0
        %v1414 = vmax.f32 %v1350, 0.0
        %v1415 = vmax.f32 %v1351, 0.0
        %v1416 = vmax.f32 %v1352, 0.0
        %v1417 = vmax.f32 %v1353, 0.0
        %v1418 = vmax.f32 %v1354, 0.0
        %v1419 = vmax.f32 %v1355, 0.0
        %v1420 = vmax.f32 %v1356, 0.0
        %v1421 = vmax.f32 %v1357, 0.0
        %v1422 = vmax.f32 %v1358, 0.0
        %v1424 = vlaneseq
        %v1425 = vshrl.u32 %v1424, 7
        %v1426 = vsub.s32 0, %v1425
        %v1427 = vrot.slane %v187, %v1426
        %v1428 = vlaneseq
        %v1429 = vshrl.u32 %v1428, 7
        %v1430 = vsub.s32 1, %v1429
        %v1431 = vrot.slane %v187, %v1430
        %v1434 = vsub.f32 %v1124, %v1427
        %v1435 = vsub.f32 %v1124, %v1431
        %v1436 = vsub.f32 %v1125, %v1427
        %v1437 = vsub.f32 %v1125, %v1431
        %v1438 = vsub.f32 %v1126, %v1427
        %v1439 = vsub.f32 %v1126, %v1431
        %v1440 = vsub.f32 %v1127, %v1427
        %v1441 = vsub.f32 %v1127, %v1431
        %v1442 = vsub.f32 %v1128, %v1427
        %v1443 = vsub.f32 %v1128, %v1431
        %v1444 = vsub.f32 %v1129, %v1427
        %v1445 = vsub.f32 %v1129, %v1431
        %v1446 = vsub.f32 %v1130, %v1427
        %v1447 = vsub.f32 %v1130, %v1431
        %v1448 = vsub.f32 %v1131, %v1427
        %v1449 = vsub.f32 %v1131, %v1431
        %v1450 = vsub.f32 %v1132, %v1427
        %v1451 = vsub.f32 %v1132, %v1431
        %v1452 = vsub.f32 %v1133, %v1427
        %v1453 = vsub.f32 %v1133, %v1431
        %v1454 = vsub.f32 %v1134, %v1427
        %v1455 = vsub.f32 %v1134, %v1431
        %v1456 = vsub.f32 %v1135, %v1427
        %v1457 = vsub.f32 %v1135, %v1431
        %v1458 = vsub.f32 %v1136, %v1427
        %v1459 = vsub.f32 %v1136, %v1431
        %v1460 = vsub.f32 %v1137, %v1427
        %v1461 = vsub.f32 %v1137, %v1431
        %v1462 = vsub.f32 %v1138, %v1427
        %v1463 = vsub.f32 %v1138, %v1431
        %v1464 = vsub.f32 %v1139, %v1427
        %v1465 = vsub.f32 %v1139, %v1431
        %v1466 = vsub.f32 %v1140, %v1427
        %v1467 = vsub.f32 %v1140, %v1431
        %v1468 = vsub.f32 %v1141, %v1427
        %v1469 = vsub.f32 %v1141, %v1431
        %v1470 = vsub.f32 %v1142, %v1427
        %v1471 = vsub.f32 %v1142, %v1431
        %v1472 = vsub.f32 %v1143, %v1427
        %v1473 = vsub.f32 %v1143, %v1431
        %v1474 = vsub.f32 %v1144, %v1427
        %v1475 = vsub.f32 %v1144, %v1431
        %v1476 = vsub.f32 %v1145, %v1427
        %v1477 = vsub.f32 %v1145, %v1431
        %v1478 = vsub.f32 %v1146, %v1427
        %v1479 = vsub.f32 %v1146, %v1431
        %v1480 = vsub.f32 %v1147, %v1427
        %v1481 = vsub.f32 %v1147, %v1431
        %v1482 = vsub.f32 %v1148, %v1427
        %v1483 = vsub.f32 %v1148, %v1431
        %v1484 = vsub.f32 %v1149, %v1427
        %v1485 = vsub.f32 %v1149, %v1431
        %v1486 = vsub.f32 %v1150, %v1427
        %v1487 = vsub.f32 %v1150, %v1431
        %v1488 = vsub.f32 %v1151, %v1427
        %v1489 = vsub.f32 %v1151, %v1431
        %v1490 = vsub.f32 %v1152, %v1427
        %v1491 = vsub.f32 %v1152, %v1431
        %v1492 = vsub.f32 %v1153, %v1427
        %v1493 = vsub.f32 %v1153, %v1431
        %v1494 = vsub.f32 %v1154, %v1427
        %v1495 = vsub.f32 %v1154, %v1431
        %v1496 = vsub.f32 %v1155, %v1427
        %v1497 = vsub.f32 %v1155, %v1431
        %v1498 = vand.u32 2147483647, %v1434
        %v1499 = vand.u32 2147483647, %v1435
        %v1500 = vand.u32 2147483647, %v1436
        %v1501 = vand.u32 2147483647, %v1437
        %v1502 = vand.u32 2147483647, %v1438
        %v1503 = vand.u32 2147483647, %v1439
        %v1504 = vand.u32 2147483647, %v1440
        %v1505 = vand.u32 2147483647, %v1441
        %v1506 = vand.u32 2147483647, %v1442
        %v1507 = vand.u32 2147483647, %v1443
        %v1508 = vand.u32 2147483647, %v1444
        %v1509 = vand.u32 2147483647, %v1445
        %v1510 = vand.u32 2147483647, %v1446
        %v1511 = vand.u32 2147483647, %v1447
        %v1512 = vand.u32 2147483647, %v1448
        %v1513 = vand.u32 2147483647, %v1449
        %v1514 = vand.u32 2147483647, %v1450
        %v1515 = vand.u32 2147483647, %v1451
        %v1516 = vand.u32 2147483647, %v1452
        %v1517 = vand.u32 2147483647, %v1453
        %v1518 = vand.u32 2147483647, %v1454
        %v1519 = vand.u32 2147483647, %v1455
        %v1520 = vand.u32 2147483647, %v1456
        %v1521 = vand.u32 2147483647, %v1457
        %v1522 = vand.u32 2147483647, %v1458
        %v1523 = vand.u32 2147483647, %v1459
        %v1524 = vand.u32 2147483647, %v1460
        %v1525 = vand.u32 2147483647, %v1461
        %v1526 = vand.u32 2147483647, %v1462
        %v1527 = vand.u32 2147483647, %v1463
        %v1528 = vand.u32 2147483647, %v1464
        %v1529 = vand.u32 2147483647, %v1465
        %v1530 = vand.u32 2147483647, %v1466
        %v1531 = vand.u32 2147483647, %v1467
        %v1532 = vand.u32 2147483647, %v1468
        %v1533 = vand.u32 2147483647, %v1469
        %v1534 = vand.u32 2147483647, %v1470
        %v1535 = vand.u32 2147483647, %v1471
        %v1536 = vand.u32 2147483647, %v1472
        %v1537 = vand.u32 2147483647, %v1473
        %v1538 = vand.u32 2147483647, %v1474
        %v1539 = vand.u32 2147483647, %v1475
        %v1540 = vand.u32 2147483647, %v1476
        %v1541 = vand.u32 2147483647, %v1477
        %v1542 = vand.u32 2147483647, %v1478
        %v1543 = vand.u32 2147483647, %v1479
        %v1544 = vand.u32 2147483647, %v1480
        %v1545 = vand.u32 2147483647, %v1481
        %v1546 = vand.u32 2147483647, %v1482
        %v1547 = vand.u32 2147483647, %v1483
        %v1548 = vand.u32 2147483647, %v1484
        %v1549 = vand.u32 2147483647, %v1485
        %v1550 = vand.u32 2147483647, %v1486
        %v1551 = vand.u32 2147483647, %v1487
        %v1552 = vand.u32 2147483647, %v1488
        %v1553 = vand.u32 2147483647, %v1489
        %v1554 = vand.u32 2147483647, %v1490
        %v1555 = vand.u32 2147483647, %v1491
        %v1556 = vand.u32 2147483647, %v1492
        %v1557 = vand.u32 2147483647, %v1493
        %v1558 = vand.u32 2147483647, %v1494
        %v1559 = vand.u32 2147483647, %v1495
        %v1560 = vand.u32 2147483647, %v1496
        %v1561 = vand.u32 2147483647, %v1497
        %v1562 = vsub.f32 1.0, %v1498
        %v1563 = vsub.f32 1.0, %v1499
        %v1564 = vsub.f32 1.0, %v1500
        %v1565 = vsub.f32 1.0, %v1501
        %v1566 = vsub.f32 1.0, %v1502
        %v1567 = vsub.f32 1.0, %v1503
        %v1568 = vsub.f32 1.0, %v1504
        %v1569 = vsub.f32 1.0, %v1505
        %v1570 = vsub.f32 1.0, %v1506
        %v1571 = vsub.f32 1.0, %v1507
        %v1572 = vsub.f32 1.0, %v1508
        %v1573 = vsub.f32 1.0, %v1509
        %v1574 = vsub.f32 1.0, %v1510
        %v1575 = vsub.f32 1.0, %v1511
        %v1576 = vsub.f32 1.0, %v1512
        %v1577 = vsub.f32 1.0, %v1513
        %v1578 = vsub.f32 1.0, %v1514
        %v1579 = vsub.f32 1.0, %v1515
        %v1580 = vsub.f32 1.0, %v1516
        %v1581 = vsub.f32 1.0, %v1517
        %v1582 = vsub.f32 1.0, %v1518
        %v1583 = vsub.f32 1.0, %v1519
        %v1584 = vsub.f32 1.0, %v1520
        %v1585 = vsub.f32 1.0, %v1521
        %v1586 = vsub.f32 1.0, %v1522
        %v1587 = vsub.f32 1.0, %v1523
        %v1588 = vsub.f32 1.0, %v1524
        %v1589 = vsub.f32 1.0, %v1525
        %v1590 = vsub.f32 1.0, %v1526
        %v1591 = vsub.f32 1.0, %v1527
        %v1592 = vsub.f32 1.0, %v1528
        %v1593 = vsub.f32 1.0, %v1529
        %v1594 = vsub.f32 1.0, %v1530
        %v1595 = vsub.f32 1.0, %v1531
        %v1596 = vsub.f32 1.0, %v1532
        %v1597 = vsub.f32 1.0, %v1533
        %v1598 = vsub.f32 1.0, %v1534
        %v1599 = vsub.f32 1.0, %v1535
        %v1600 = vsub.f32 1.0, %v1536
        %v1601 = vsub.f32 1.0, %v1537
        %v1602 = vsub.f32 1.0, %v1538
        %v1603 = vsub.f32 1.0, %v1539
        %v1604 = vsub.f32 1.0, %v1540
        %v1605 = vsub.f32 1.0, %v1541
        %v1606 = vsub.f32 1.0, %v1542
        %v1607 = vsub.f32 1.0, %v1543
        %v1608 = vsub.f32 1.0, %v1544
        %v1609 = vsub.f32 1.0, %v1545
        %v1610 = vsub.f32 1.0, %v1546
        %v1611 = vsub.f32 1.0, %v1547
        %v1612 = vsub.f32 1.0, %v1548
        %v1613 = vsub.f32 1.0, %v1549
        %v1614 = vsub.f32 1.0, %v1550
        %v1615 = vsub.f32 1.0, %v1551
        %v1616 = vsub.f32 1.0, %v1552
        %v1617 = vsub.f32 1.0, %v1553
        %v1618 = vsub.f32 1.0, %v1554
        %v1619 = vsub.f32 1.0, %v1555
        %v1620 = vsub.f32 1.0, %v1556
        %v1621 = vsub.f32 1.0, %v1557
        %v1622 = vsub.f32 1.0, %v1558
        %v1623 = vsub.f32 1.0, %v1559
        %v1624 = vsub.f32 1.0, %v1560
        %v1625 = vsub.f32 1.0, %v1561
        %v1626 = vmax.f32 %v1562, 0.0
        %v1627 = vmax.f32 %v1563, 0.0
        %v1628 = vmax.f32 %v1564, 0.0
        %v1629 = vmax.f32 %v1565, 0.0
        %v1630 = vmax.f32 %v1566, 0.0
        %v1631 = vmax.f32 %v1567, 0.0
        %v1632 = vmax.f32 %v1568, 0.0
        %v1633 = vmax.f32 %v1569, 0.0
        %v1634 = vmax.f32 %v1570, 0.0
        %v1635 = vmax.f32 %v1571, 0.0
        %v1636 = vmax.f32 %v1572, 0.0
        %v1637 = vmax.f32 %v1573, 0.0
        %v1638 = vmax.f32 %v1574, 0.0
        %v1639 = vmax.f32 %v1575, 0.0
        %v1640 = vmax.f32 %v1576, 0.0
        %v1641 = vmax.f32 %v1577, 0.0
        %v1642 = vmax.f32 %v1578, 0.0
        %v1643 = vmax.f32 %v1579, 0.0
        %v1644 = vmax.f32 %v1580, 0.0
        %v1645 = vmax.f32 %v1581, 0.0
        %v1646 = vmax.f32 %v1582, 0.0
        %v1647 = vmax.f32 %v1583, 0.0
        %v1648 = vmax.f32 %v1584, 0.0
        %v1649 = vmax.f32 %v1585, 0.0
        %v1650 = vmax.f32 %v1586, 0.0
        %v1651 = vmax.f32 %v1587, 0.0
        %v1652 = vmax.f32 %v1588, 0.0
        %v1653 = vmax.f32 %v1589, 0.0
        %v1654 = vmax.f32 %v1590, 0.0
        %v1655 = vmax.f32 %v1591, 0.0
        %v1656 = vmax.f32 %v1592, 0.0
        %v1657 = vmax.f32 %v1593, 0.0
        %v1658 = vmax.f32 %v1594, 0.0
        %v1659 = vmax.f32 %v1595, 0.0
        %v1660 = vmax.f32 %v1596, 0.0
        %v1661 = vmax.f32 %v1597, 0.0
        %v1662 = vmax.f32 %v1598, 0.0
        %v1663 = vmax.f32 %v1599, 0.0
        %v1664 = vmax.f32 %v1600, 0.0
        %v1665 = vmax.f32 %v1601, 0.0
        %v1666 = vmax.f32 %v1602, 0.0
        %v1667 = vmax.f32 %v1603, 0.0
        %v1668 = vmax.f32 %v1604, 0.0
        %v1669 = vmax.f32 %v1605, 0.0
        %v1670 = vmax.f32 %v1606, 0.0
        %v1671 = vmax.f32 %v1607, 0.0
        %v1672 = vmax.f32 %v1608, 0.0
        %v1673 = vmax.f32 %v1609, 0.0
        %v1674 = vmax.f32 %v1610, 0.0
        %v1675 = vmax.f32 %v1611, 0.0
        %v1676 = vmax.f32 %v1612, 0.0
        %v1677 = vmax.f32 %v1613, 0.0
        %v1678 = vmax.f32 %v1614, 0.0
        %v1679 = vmax.f32 %v1615, 0.0
        %v1680 = vmax.f32 %v1616, 0.0
        %v1681 = vmax.f32 %v1617, 0.0
        %v1682 = vmax.f32 %v1618, 0.0
        %v1683 = vmax.f32 %v1619, 0.0
        %v1684 = vmax.f32 %v1620, 0.0
        %v1685 = vmax.f32 %v1621, 0.0
        %v1686 = vmax.f32 %v1622, 0.0
        %v1687 = vmax.f32 %v1623, 0.0
        %v1688 = vmax.f32 %v1624, 0.0
        %v1689 = vmax.f32 %v1625, 0.0
        %v1690 = vmul.f32 %v1359, %v1626
        %v1691 = vmul.f32 %v1360, %v1627
        %v1692 = vmul.f32 %v1361, %v1628
        %v1693 = vmul.f32 %v1362, %v1629
        %v1694 = vmul.f32 %v1363, %v1630
        %v1695 = vmul.f32 %v1364, %v1631
        %v1696 = vmul.f32 %v1365, %v1632
        %v1697 = vmul.f32 %v1366, %v1633
        %v1698 = vmul.f32 %v1367, %v1634
        %v1699 = vmul.f32 %v1368, %v1635
        %v1700 = vmul.f32 %v1369, %v1636
        %v1701 = vmul.f32 %v1370, %v1637
        %v1702 = vmul.f32 %v1371, %v1638
        %v1703 = vmul.f32 %v1372, %v1639
        %v1704 = vmul.f32 %v1373, %v1640
        %v1705 = vmul.f32 %v1374, %v1641
        %v1706 = vmul.f32 %v1375, %v1642
        %v1707 = vmul.f32 %v1376, %v1643
        %v1708 = vmul.f32 %v1377, %v1644
        %v1709 = vmul.f32 %v1378, %v1645
        %v1710 = vmul.f32 %v1379, %v1646
        %v1711 = vmul.f32 %v1380, %v1647
        %v1712 = vmul.f32 %v1381, %v1648
        %v1713 = vmul.f32 %v1382, %v1649
        %v1714 = vmul.f32 %v1383, %v1650
        %v1715 = vmul.f32 %v1384, %v1651
        %v1716 = vmul.f32 %v1385, %v1652
        %v1717 = vmul.f32 %v1386, %v1653
        %v1718 = vmul.f32 %v1387, %v1654
        %v1719 = vmul.f32 %v1388, %v1655
        %v1720 = vmul.f32 %v1389, %v1656
        %v1721 = vmul.f32 %v1390, %v1657
        %v1722 = vmul.f32 %v1391, %v1658
        %v1723 = vmul.f32 %v1392, %v1659
        %v1724 = vmul.f32 %v1393, %v1660
        %v1725 = vmul.f32 %v1394, %v1661
        %v1726 = vmul.f32 %v1395, %v1662
        %v1727 = vmul.f32 %v1396, %v1663
        %v1728 = vmul.f32 %v1397, %v1664
        %v1729 = vmul.f32 %v1398, %v1665
        %v1730 = vmul.f32 %v1399, %v1666
        %v1731 = vmul.f32 %v1400, %v1667
        %v1732 = vmul.f32 %v1401, %v1668
        %v1733 = vmul.f32 %v1402, %v1669
        %v1734 = vmul.f32 %v1403, %v1670
        %v1735 = vmul.f32 %v1404, %v1671
        %v1736 = vmul.f32 %v1405, %v1672
        %v1737 = vmul.f32 %v1406, %v1673
        %v1738 = vmul.f32 %v1407, %v1674
        %v1739 = vmul.f32 %v1408, %v1675
        %v1740 = vmul.f32 %v1409, %v1676
        %v1741 = vmul.f32 %v1410, %v1677
        %v1742 = vmul.f32 %v1411, %v1678
        %v1743 = vmul.f32 %v1412, %v1679
        %v1744 = vmul.f32 %v1413, %v1680
        %v1745 = vmul.f32 %v1414, %v1681
        %v1746 = vmul.f32 %v1415, %v1682
        %v1747 = vmul.f32 %v1416, %v1683
        %v1748 = vmul.f32 %v1417, %v1684
        %v1749 = vmul.f32 %v1418, %v1685
        %v1750 = vmul.f32 %v1419, %v1686
        %v1751 = vmul.f32 %v1420, %v1687
        %v1752 = vmul.f32 %v1421, %v1688
        %v1753 = vmul.f32 %v1422, %v1689
        %v1755 = vlaneseq
        %v1756 = vshrl.u32 %v1755, 7
        %v1757 = vsub.s32 0, %v1756
        %v1758 = vrot.slane %v193, %v1757
        %v1759 = vlaneseq
        %v1760 = vshrl.u32 %v1759, 7
        %v1761 = vsub.s32 1, %v1760
        %v1762 = vrot.slane %v193, %v1761
        %v1765 = vsub.f32 %v1060, %v1758
        %v1766 = vsub.f32 %v1060, %v1762
        %v1767 = vsub.f32 %v1061, %v1758
        %v1768 = vsub.f32 %v1061, %v1762
        %v1769 = vsub.f32 %v1062, %v1758
        %v1770 = vsub.f32 %v1062, %v1762
        %v1771 = vsub.f32 %v1063, %v1758
        %v1772 = vsub.f32 %v1063, %v1762
        %v1773 = vsub.f32 %v1064, %v1758
        %v1774 = vsub.f32 %v1064, %v1762
        %v1775 = vsub.f32 %v1065, %v1758
        %v1776 = vsub.f32 %v1065, %v1762
        %v1777 = vsub.f32 %v1066, %v1758
        %v1778 = vsub.f32 %v1066, %v1762
        %v1779 = vsub.f32 %v1067, %v1758
        %v1780 = vsub.f32 %v1067, %v1762
        %v1781 = vsub.f32 %v1068, %v1758
        %v1782 = vsub.f32 %v1068, %v1762
        %v1783 = vsub.f32 %v1069, %v1758
        %v1784 = vsub.f32 %v1069, %v1762
        %v1785 = vsub.f32 %v1070, %v1758
        %v1786 = vsub.f32 %v1070, %v1762
        %v1787 = vsub.f32 %v1071, %v1758
        %v1788 = vsub.f32 %v1071, %v1762
        %v1789 = vsub.f32 %v1072, %v1758
        %v1790 = vsub.f32 %v1072, %v1762
        %v1791 = vsub.f32 %v1073, %v1758
        %v1792 = vsub.f32 %v1073, %v1762
        %v1793 = vsub.f32 %v1074, %v1758
        %v1794 = vsub.f32 %v1074, %v1762
        %v1795 = vsub.f32 %v1075, %v1758
        %v1796 = vsub.f32 %v1075, %v1762
        %v1797 = vsub.f32 %v1076, %v1758
        %v1798 = vsub.f32 %v1076, %v1762
        %v1799 = vsub.f32 %v1077, %v1758
        %v1800 = vsub.f32 %v1077, %v1762
        %v1801 = vsub.f32 %v1078, %v1758
        %v1802 = vsub.f32 %v1078, %v1762
        %v1803 = vsub.f32 %v1079, %v1758
        %v1804 = vsub.f32 %v1079, %v1762
        %v1805 = vsub.f32 %v1080, %v1758
        %v1806 = vsub.f32 %v1080, %v1762
        %v1807 = vsub.f32 %v1081, %v1758
        %v1808 = vsub.f32 %v1081, %v1762
        %v1809 = vsub.f32 %v1082, %v1758
        %v1810 = vsub.f32 %v1082, %v1762
        %v1811 = vsub.f32 %v1083, %v1758
        %v1812 = vsub.f32 %v1083, %v1762
        %v1813 = vsub.f32 %v1084, %v1758
        %v1814 = vsub.f32 %v1084, %v1762
        %v1815 = vsub.f32 %v1085, %v1758
        %v1816 = vsub.f32 %v1085, %v1762
        %v1817 = vsub.f32 %v1086, %v1758
        %v1818 = vsub.f32 %v1086, %v1762
        %v1819 = vsub.f32 %v1087, %v1758
        %v1820 = vsub.f32 %v1087, %v1762
        %v1821 = vsub.f32 %v1088, %v1758
        %v1822 = vsub.f32 %v1088, %v1762
        %v1823 = vsub.f32 %v1089, %v1758
        %v1824 = vsub.f32 %v1089, %v1762
        %v1825 = vsub.f32 %v1090, %v1758
        %v1826 = vsub.f32 %v1090, %v1762
        %v1827 = vsub.f32 %v1091, %v1758
        %v1828 = vsub.f32 %v1091, %v1762
        %v1829 = vand.u32 2147483647, %v1765
        %v1830 = vand.u32 2147483647, %v1766
        %v1831 = vand.u32 2147483647, %v1767
        %v1832 = vand.u32 2147483647, %v1768
        %v1833 = vand.u32 2147483647, %v1769
        %v1834 = vand.u32 2147483647, %v1770
        %v1835 = vand.u32 2147483647, %v1771
        %v1836 = vand.u32 2147483647, %v1772
        %v1837 = vand.u32 2147483647, %v1773
        %v1838 = vand.u32 2147483647, %v1774
        %v1839 = vand.u32 2147483647, %v1775
        %v1840 = vand.u32 2147483647, %v1776
        %v1841 = vand.u32 2147483647, %v1777
        %v1842 = vand.u32 2147483647, %v1778
        %v1843 = vand.u32 2147483647, %v1779
        %v1844 = vand.u32 2147483647, %v1780
        %v1845 = vand.u32 2147483647, %v1781
        %v1846 = vand.u32 2147483647, %v1782
        %v1847 = vand.u32 2147483647, %v1783
        %v1848 = vand.u32 2147483647, %v1784
        %v1849 = vand.u32 2147483647, %v1785
        %v1850 = vand.u32 2147483647, %v1786
        %v1851 = vand.u32 2147483647, %v1787
        %v1852 = vand.u32 2147483647, %v1788
        %v1853 = vand.u32 2147483647, %v1789
        %v1854 = vand.u32 2147483647, %v1790
        %v1855 = vand.u32 2147483647, %v1791
        %v1856 = vand.u32 2147483647, %v1792
        %v1857 = vand.u32 2147483647, %v1793
        %v1858 = vand.u32 2147483647, %v1794
        %v1859 = vand.u32 2147483647, %v1795
        %v1860 = vand.u32 2147483647, %v1796
        %v1861 = vand.u32 2147483647, %v1797
        %v1862 = vand.u32 2147483647, %v1798
        %v1863 = vand.u32 2147483647, %v1799
        %v1864 = vand.u32 2147483647, %v1800
        %v1865 = vand.u32 2147483647, %v1801
        %v1866 = vand.u32 2147483647, %v1802
        %v1867 = vand.u32 2147483647, %v1803
        %v1868 = vand.u32 2147483647, %v1804
        %v1869 = vand.u32 2147483647, %v1805
        %v1870 = vand.u32 2147483647, %v1806
        %v1871 = vand.u32 2147483647, %v1807
        %v1872 = vand.u32 2147483647, %v1808
        %v1873 = vand.u32 2147483647, %v1809
        %v1874 = vand.u32 2147483647, %v1810
        %v1875 = vand.u32 2147483647, %v1811
        %v1876 = vand.u32 2147483647, %v1812
        %v1877 = vand.u32 2147483647, %v1813
        %v1878 = vand.u32 2147483647, %v1814
        %v1879 = vand.u32 2147483647, %v1815
        %v1880 = vand.u32 2147483647, %v1816
        %v1881 = vand.u32 2147483647, %v1817
        %v1882 = vand.u32 2147483647, %v1818
        %v1883 = vand.u32 2147483647, %v1819
        %v1884 = vand.u32 2147483647, %v1820
        %v1885 = vand.u32 2147483647, %v1821
        %v1886 = vand.u32 2147483647, %v1822
        %v1887 = vand.u32 2147483647, %v1823
        %v1888 = vand.u32 2147483647, %v1824
        %v1889 = vand.u32 2147483647, %v1825
        %v1890 = vand.u32 2147483647, %v1826
        %v1891 = vand.u32 2147483647, %v1827
        %v1892 = vand.u32 2147483647, %v1828
        %v1893 = vsub.f32 1.0, %v1829
        %v1894 = vsub.f32 1.0, %v1830
        %v1895 = vsub.f32 1.0, %v1831
        %v1896 = vsub.f32 1.0, %v1832
        %v1897 = vsub.f32 1.0, %v1833
        %v1898 = vsub.f32 1.0, %v1834
        %v1899 = vsub.f32 1.0, %v1835
        %v1900 = vsub.f32 1.0, %v1836
        %v1901 = vsub.f32 1.0, %v1837
        %v1902 = vsub.f32 1.0, %v1838
        %v1903 = vsub.f32 1.0, %v1839
        %v1904 = vsub.f32 1.0, %v1840
        %v1905 = vsub.f32 1.0, %v1841
        %v1906 = vsub.f32 1.0, %v1842
        %v1907 = vsub.f32 1.0, %v1843
        %v1908 = vsub.f32 1.0, %v1844
        %v1909 = vsub.f32 1.0, %v1845
        %v1910 = vsub.f32 1.0, %v1846
        %v1911 = vsub.f32 1.0, %v1847
        %v1912 = vsub.f32 1.0, %v1848
        %v1913 = vsub.f32 1.0, %v1849
        %v1914 = vsub.f32 1.0, %v1850
        %v1915 = vsub.f32 1.0, %v1851
        %v1916 = vsub.f32 1.0, %v1852
        %v1917 = vsub.f32 1.0, %v1853
        %v1918 = vsub.f32 1.0, %v1854
        %v1919 = vsub.f32 1.0, %v1855
        %v1920 = vsub.f32 1.0, %v1856
        %v1921 = vsub.f32 1.0, %v1857
        %v1922 = vsub.f32 1.0, %v1858
        %v1923 = vsub.f32 1.0, %v1859
        %v1924 = vsub.f32 1.0, %v1860
        %v1925 = vsub.f32 1.0, %v1861
        %v1926 = vsub.f32 1.0, %v1862
        %v1927 = vsub.f32 1.0, %v1863
        %v1928 = vsub.f32 1.0, %v1864
        %v1929 = vsub.f32 1.0, %v1865
        %v1930 = vsub.f32 1.0, %v1866
        %v1931 = vsub.f32 1.0, %v1867
        %v1932 = vsub.f32 1.0, %v1868
        %v1933 = vsub.f32 1.0, %v1869
        %v1934 = vsub.f32 1.0, %v1870
        %v1935 = vsub.f32 1.0, %v1871
        %v1936 = vsub.f32 1.0, %v1872
        %v1937 = vsub.f32 1.0, %v1873
        %v1938 = vsub.f32 1.0, %v1874
        %v1939 = vsub.f32 1.0, %v1875
        %v1940 = vsub.f32 1.0, %v1876
        %v1941 = vsub.f32 1.0, %v1877
        %v1942 = vsub.f32 1.0, %v1878
        %v1943 = vsub.f32 1.0, %v1879
        %v1944 = vsub.f32 1.0, %v1880
        %v1945 = vsub.f32 1.0, %v1881
        %v1946 = vsub.f32 1.0, %v1882
        %v1947 = vsub.f32 1.0, %v1883
        %v1948 = vsub.f32 1.0, %v1884
        %v1949 = vsub.f32 1.0, %v1885
        %v1950 = vsub.f32 1.0, %v1886
        %v1951 = vsub.f32 1.0, %v1887
        %v1952 = vsub.f32 1.0, %v1888
        %v1953 = vsub.f32 1.0, %v1889
        %v1954 = vsub.f32 1.0, %v1890
        %v1955 = vsub.f32 1.0, %v1891
        %v1956 = vsub.f32 1.0, %v1892
        %v1957 = vmax.f32 %v1893, 0.0
        %v1958 = vmax.f32 %v1894, 0.0
        %v1959 = vmax.f32 %v1895, 0.0
        %v1960 = vmax.f32 %v1896, 0.0
        %v1961 = vmax.f32 %v1897, 0.0
        %v1962 = vmax.f32 %v1898, 0.0
        %v1963 = vmax.f32 %v1899, 0.0
        %v1964 = vmax.f32 %v1900, 0.0
        %v1965 = vmax.f32 %v1901, 0.0
        %v1966 = vmax.f32 %v1902, 0.0
        %v1967 = vmax.f32 %v1903, 0.0
        %v1968 = vmax.f32 %v1904, 0.0
        %v1969 = vmax.f32 %v1905, 0.0
        %v1970 = vmax.f32 %v1906, 0.0
        %v1971 = vmax.f32 %v1907, 0.0
        %v1972 = vmax.f32 %v1908, 0.0
        %v1973 = vmax.f32 %v1909, 0.0
        %v1974 = vmax.f32 %v1910, 0.0
        %v1975 = vmax.f32 %v1911, 0.0
        %v1976 = vmax.f32 %v1912, 0.0
        %v1977 = vmax.f32 %v1913, 0.0
        %v1978 = vmax.f32 %v1914, 0.0
        %v1979 = vmax.f32 %v1915, 0.0
        %v1980 = vmax.f32 %v1916, 0.0
        %v1981 = vmax.f32 %v1917, 0.0
        %v1982 = vmax.f32 %v1918, 0.0
        %v1983 = vmax.f32 %v1919, 0.0
        %v1984 = vmax.f32 %v1920, 0.0
        %v1985 = vmax.f32 %v1921, 0.0
        %v1986 = vmax.f32 %v1922, 0.0
        %v1987 = vmax.f32 %v1923, 0.0
        %v1988 = vmax.f32 %v1924, 0.0
        %v1989 = vmax.f32 %v1925, 0.0
        %v1990 = vmax.f32 %v1926, 0.0
        %v1991 = vmax.f32 %v1927, 0.0
        %v1992 = vmax.f32 %v1928, 0.0
        %v1993 = vmax.f32 %v1929, 0.0
        %v1994 = vmax.f32 %v1930, 0.0
        %v1995 = vmax.f32 %v1931, 0.0
        %v1996 = vmax.f32 %v1932, 0.0
        %v1997 = vmax.f32 %v1933, 0.0
        %v1998 = vmax.f32 %v1934, 0.0
        %v1999 = vmax.f32 %v1935, 0.0
        %v2000 = vmax.f32 %v1936, 0.0
        %v2001 = vmax.f32 %v1937, 0.0
        %v2002 = vmax.f32 %v1938, 0.0
        %v2003 = vmax.f32 %v1939, 0.0
        %v2004 = vmax.f32 %v1940, 0.0
        %v2005 = vmax.f32 %v1941, 0.0
        %v2006 = vmax.f32 %v1942, 0.0
        %v2007 = vmax.f32 %v1943, 0.0
        %v2008 = vmax.f32 %v1944, 0.0
        %v2009 = vmax.f32 %v1945, 0.0
        %v2010 = vmax.f32 %v1946, 0.0
        %v2011 = vmax.f32 %v1947, 0.0
        %v2012 = vmax.f32 %v1948, 0.0
        %v2013 = vmax.f32 %v1949, 0.0
        %v2014 = vmax.f32 %v1950, 0.0
        %v2015 = vmax.f32 %v1951, 0.0
        %v2016 = vmax.f32 %v1952, 0.0
        %v2017 = vmax.f32 %v1953, 0.0
        %v2018 = vmax.f32 %v1954, 0.0
        %v2019 = vmax.f32 %v1955, 0.0
        %v2020 = vmax.f32 %v1956, 0.0
        %v2021 = vmul.f32 %v1690, %v1957
        %v2022 = vmul.f32 %v1691, %v1958
        %v2023 = vmul.f32 %v1692, %v1959
        %v2024 = vmul.f32 %v1693, %v1960
        %v2025 = vmul.f32 %v1694, %v1961
        %v2026 = vmul.f32 %v1695, %v1962
        %v2027 = vmul.f32 %v1696, %v1963
        %v2028 = vmul.f32 %v1697, %v1964
        %v2029 = vmul.f32 %v1698, %v1965
        %v2030 = vmul.f32 %v1699, %v1966
        %v2031 = vmul.f32 %v1700, %v1967
        %v2032 = vmul.f32 %v1701, %v1968
        %v2033 = vmul.f32 %v1702, %v1969
        %v2034 = vmul.f32 %v1703, %v1970
        %v2035 = vmul.f32 %v1704, %v1971
        %v2036 = vmul.f32 %v1705, %v1972
        %v2037 = vmul.f32 %v1706, %v1973
        %v2038 = vmul.f32 %v1707, %v1974
        %v2039 = vmul.f32 %v1708, %v1975
        %v2040 = vmul.f32 %v1709, %v1976
        %v2041 = vmul.f32 %v1710, %v1977
        %v2042 = vmul.f32 %v1711, %v1978
        %v2043 = vmul.f32 %v1712, %v1979
        %v2044 = vmul.f32 %v1713, %v1980
        %v2045 = vmul.f32 %v1714, %v1981
        %v2046 = vmul.f32 %v1715, %v1982
        %v2047 = vmul.f32 %v1716, %v1983
        %v2048 = vmul.f32 %v1717, %v1984
        %v2049 = vmul.f32 %v1718, %v1985
        %v2050 = vmul.f32 %v1719, %v1986
        %v2051 = vmul.f32 %v1720, %v1987
        %v2052 = vmul.f32 %v1721, %v1988
        %v2053 = vmul.f32 %v1722, %v1989
        %v2054 = vmul.f32 %v1723, %v1990
        %v2055 = vmul.f32 %v1724, %v1991
        %v2056 = vmul.f32 %v1725, %v1992
        %v2057 = vmul.f32 %v1726, %v1993
        %v2058 = vmul.f32 %v1727, %v1994
        %v2059 = vmul.f32 %v1728, %v1995
        %v2060 = vmul.f32 %v1729, %v1996
        %v2061 = vmul.f32 %v1730, %v1997
        %v2062 = vmul.f32 %v1731, %v1998
        %v2063 = vmul.f32 %v1732, %v1999
        %v2064 = vmul.f32 %v1733, %v2000
        %v2065 = vmul.f32 %v1734, %v2001
        %v2066 = vmul.f32 %v1735, %v2002
        %v2067 = vmul.f32 %v1736, %v2003
        %v2068 = vmul.f32 %v1737, %v2004
        %v2069 = vmul.f32 %v1738, %v2005
        %v2070 = vmul.f32 %v1739, %v2006
        %v2071 = vmul.f32 %v1740, %v2007
        %v2072 = vmul.f32 %v1741, %v2008
        %v2073 = vmul.f32 %v1742, %v2009
        %v2074 = vmul.f32 %v1743, %v2010
        %v2075 = vmul.f32 %v1744, %v2011
        %v2076 = vmul.f32 %v1745, %v2012
        %v2077 = vmul.f32 %v1746, %v2013
        %v2078 = vmul.f32 %v1747, %v2014
        %v2079 = vmul.f32 %v1748, %v2015
        %v2080 = vmul.f32 %v1749, %v2016
        %v2081 = vmul.f32 %v1750, %v2017
        %v2082 = vmul.f32 %v1751, %v2018
        %v2083 = vmul.f32 %v1752, %v2019
        %v2084 = vmul.f32 %v1753, %v2020
        %v2085 = vld [vmem:[#allocation5] sm:$0xff]
        %v2086 = vld [vmem:[#allocation5 + $0x8] sm:$0xff]
        %v2087 = vld [vmem:[#allocation5 + $0x10] sm:$0xff]
        %v2088 = vld [vmem:[#allocation5 + $0x18] sm:$0xff]
        %v2089 = vadd.s32 %v195, 256
        %v2090 = vadd.s32 %v196, 256
        %v2091 = vadd.s32 %v197, 256
        %v2092 = vadd.s32 %v198, 256
        %v2093 = vadd.s32 %v199, 256
        %v2094 = vadd.s32 %v200, 256
        %v2095 = vadd.s32 %v201, 256
        %v2096 = vadd.s32 %v202, 256
        %v2097 = vadd.s32 %v203, 256
        %v2098 = vadd.s32 %v204, 256
        %v2099 = vadd.s32 %v205, 256
        %v2100 = vadd.s32 %v206, 256
        %v2101 = vadd.s32 %v207, 256
        %v2102 = vadd.s32 %v208, 256
        %v2103 = vadd.s32 %v209, 256
        %v2104 = vadd.s32 %v210, 256
        %v2105 = vadd.s32 %v211, 256
        %v2106 = vadd.s32 %v212, 256
        %v2107 = vadd.s32 %v213, 256
        %v2108 = vadd.s32 %v214, 256
        %v2109 = vadd.s32 %v215, 256
        %v2110 = vadd.s32 %v216, 256
        %v2111 = vadd.s32 %v217, 256
        %v2112 = vadd.s32 %v218, 256
        %v2113 = vadd.s32 %v219, 256
        %v2114 = vadd.s32 %v220, 256
        %v2115 = vadd.s32 %v221, 256
        %v2116 = vadd.s32 %v222, 256
        %v2117 = vadd.s32 %v223, 256
        %v2118 = vadd.s32 %v224, 256
        %v2119 = vadd.s32 %v225, 256
        %v2120 = vadd.s32 %v226, 256
        %v2121 = vcvt.s32.f32 %v2089
        %v2122 = vcvt.s32.f32 %v2090
        %v2123 = vcvt.s32.f32 %v2091
        %v2124 = vcvt.s32.f32 %v2092
        %v2125 = vcvt.s32.f32 %v2093
        %v2126 = vcvt.s32.f32 %v2094
        %v2127 = vcvt.s32.f32 %v2095
        %v2128 = vcvt.s32.f32 %v2096
        %v2129 = vcvt.s32.f32 %v2097
        %v2130 = vcvt.s32.f32 %v2098
        %v2131 = vcvt.s32.f32 %v2099
        %v2132 = vcvt.s32.f32 %v2100
        %v2133 = vcvt.s32.f32 %v2101
        %v2134 = vcvt.s32.f32 %v2102
        %v2135 = vcvt.s32.f32 %v2103
        %v2136 = vcvt.s32.f32 %v2104
        %v2137 = vcvt.s32.f32 %v2105
        %v2138 = vcvt.s32.f32 %v2106
        %v2139 = vcvt.s32.f32 %v2107
        %v2140 = vcvt.s32.f32 %v2108
        %v2141 = vcvt.s32.f32 %v2109
        %v2142 = vcvt.s32.f32 %v2110
        %v2143 = vcvt.s32.f32 %v2111
        %v2144 = vcvt.s32.f32 %v2112
        %v2145 = vcvt.s32.f32 %v2113
        %v2146 = vcvt.s32.f32 %v2114
        %v2147 = vcvt.s32.f32 %v2115
        %v2148 = vcvt.s32.f32 %v2116
        %v2149 = vcvt.s32.f32 %v2117
        %v2150 = vcvt.s32.f32 %v2118
        %v2151 = vcvt.s32.f32 %v2119
        %v2152 = vcvt.s32.f32 %v2120
        %v2153 = vmul.f32 %v2121, %v259
        %v2154 = vmul.f32 %v2122, %v259
        %v2155 = vmul.f32 %v2123, %v259
        %v2156 = vmul.f32 %v2124, %v259
        %v2157 = vmul.f32 %v2125, %v259
        %v2158 = vmul.f32 %v2126, %v259
        %v2159 = vmul.f32 %v2127, %v259
        %v2160 = vmul.f32 %v2128, %v259
        %v2161 = vmul.f32 %v2129, %v259
        %v2162 = vmul.f32 %v2130, %v259
        %v2163 = vmul.f32 %v2131, %v259
        %v2164 = vmul.f32 %v2132, %v259
        %v2165 = vmul.f32 %v2133, %v259
        %v2166 = vmul.f32 %v2134, %v259
        %v2167 = vmul.f32 %v2135, %v259
        %v2168 = vmul.f32 %v2136, %v259
        %v2169 = vmul.f32 %v2137, %v259
        %v2170 = vmul.f32 %v2138, %v259
        %v2171 = vmul.f32 %v2139, %v259
        %v2172 = vmul.f32 %v2140, %v259
        %v2173 = vmul.f32 %v2141, %v259
        %v2174 = vmul.f32 %v2142, %v259
        %v2175 = vmul.f32 %v2143, %v259
        %v2176 = vmul.f32 %v2144, %v259
        %v2177 = vmul.f32 %v2145, %v259
        %v2178 = vmul.f32 %v2146, %v259
        %v2179 = vmul.f32 %v2147, %v259
        %v2180 = vmul.f32 %v2148, %v259
        %v2181 = vmul.f32 %v2149, %v259
        %v2182 = vmul.f32 %v2150, %v259
        %v2183 = vmul.f32 %v2151, %v259
        %v2184 = vmul.f32 %v2152, %v259
        %v2185 = vfloor.f32 %v2153
        %v2186 = vfloor.f32 %v2154
        %v2187 = vfloor.f32 %v2155
        %v2188 = vfloor.f32 %v2156
        %v2189 = vfloor.f32 %v2157
        %v2190 = vfloor.f32 %v2158
        %v2191 = vfloor.f32 %v2159
        %v2192 = vfloor.f32 %v2160
        %v2193 = vfloor.f32 %v2161
        %v2194 = vfloor.f32 %v2162
        %v2195 = vfloor.f32 %v2163
        %v2196 = vfloor.f32 %v2164
        %v2197 = vfloor.f32 %v2165
        %v2198 = vfloor.f32 %v2166
        %v2199 = vfloor.f32 %v2167
        %v2200 = vfloor.f32 %v2168
        %v2201 = vfloor.f32 %v2169
        %v2202 = vfloor.f32 %v2170
        %v2203 = vfloor.f32 %v2171
        %v2204 = vfloor.f32 %v2172
        %v2205 = vfloor.f32 %v2173
        %v2206 = vfloor.f32 %v2174
        %v2207 = vfloor.f32 %v2175
        %v2208 = vfloor.f32 %v2176
        %v2209 = vfloor.f32 %v2177
        %v2210 = vfloor.f32 %v2178
        %v2211 = vfloor.f32 %v2179
        %v2212 = vfloor.f32 %v2180
        %v2213 = vfloor.f32 %v2181
        %v2214 = vfloor.f32 %v2182
        %v2215 = vfloor.f32 %v2183
        %v2216 = vfloor.f32 %v2184
        %v2217 = vmul.f32 %v2185, 9.0
        %v2218 = vmul.f32 %v2186, 9.0
        %v2219 = vmul.f32 %v2187, 9.0
        %v2220 = vmul.f32 %v2188, 9.0
        %v2221 = vmul.f32 %v2189, 9.0
        %v2222 = vmul.f32 %v2190, 9.0
        %v2223 = vmul.f32 %v2191, 9.0
        %v2224 = vmul.f32 %v2192, 9.0
        %v2225 = vmul.f32 %v2193, 9.0
        %v2226 = vmul.f32 %v2194, 9.0
        %v2227 = vmul.f32 %v2195, 9.0
        %v2228 = vmul.f32 %v2196, 9.0
        %v2229 = vmul.f32 %v2197, 9.0
        %v2230 = vmul.f32 %v2198, 9.0
        %v2231 = vmul.f32 %v2199, 9.0
        %v2232 = vmul.f32 %v2200, 9.0
        %v2233 = vmul.f32 %v2201, 9.0
        %v2234 = vmul.f32 %v2202, 9.0
        %v2235 = vmul.f32 %v2203, 9.0
        %v2236 = vmul.f32 %v2204, 9.0
        %v2237 = vmul.f32 %v2205, 9.0
        %v2238 = vmul.f32 %v2206, 9.0
        %v2239 = vmul.f32 %v2207, 9.0
        %v2240 = vmul.f32 %v2208, 9.0
        %v2241 = vmul.f32 %v2209, 9.0
        %v2242 = vmul.f32 %v2210, 9.0
        %v2243 = vmul.f32 %v2211, 9.0
        %v2244 = vmul.f32 %v2212, 9.0
        %v2245 = vmul.f32 %v2213, 9.0
        %v2246 = vmul.f32 %v2214, 9.0
        %v2247 = vmul.f32 %v2215, 9.0
        %v2248 = vmul.f32 %v2216, 9.0
        %v2249 = vsub.f32 %v2121, %v2217
        %v2250 = vsub.f32 %v2122, %v2218
        %v2251 = vsub.f32 %v2123, %v2219
        %v2252 = vsub.f32 %v2124, %v2220
        %v2253 = vsub.f32 %v2125, %v2221
        %v2254 = vsub.f32 %v2126, %v2222
        %v2255 = vsub.f32 %v2127, %v2223
        %v2256 = vsub.f32 %v2128, %v2224
        %v2257 = vsub.f32 %v2129, %v2225
        %v2258 = vsub.f32 %v2130, %v2226
        %v2259 = vsub.f32 %v2131, %v2227
        %v2260 = vsub.f32 %v2132, %v2228
        %v2261 = vsub.f32 %v2133, %v2229
        %v2262 = vsub.f32 %v2134, %v2230
        %v2263 = vsub.f32 %v2135, %v2231
        %v2264 = vsub.f32 %v2136, %v2232
        %v2265 = vsub.f32 %v2137, %v2233
        %v2266 = vsub.f32 %v2138, %v2234
        %v2267 = vsub.f32 %v2139, %v2235
        %v2268 = vsub.f32 %v2140, %v2236
        %v2269 = vsub.f32 %v2141, %v2237
        %v2270 = vsub.f32 %v2142, %v2238
        %v2271 = vsub.f32 %v2143, %v2239
        %v2272 = vsub.f32 %v2144, %v2240
        %v2273 = vsub.f32 %v2145, %v2241
        %v2274 = vsub.f32 %v2146, %v2242
        %v2275 = vsub.f32 %v2147, %v2243
        %v2276 = vsub.f32 %v2148, %v2244
        %v2277 = vsub.f32 %v2149, %v2245
        %v2278 = vsub.f32 %v2150, %v2246
        %v2279 = vsub.f32 %v2151, %v2247
        %v2280 = vsub.f32 %v2152, %v2248
        %vm2281 = vcmp.ge.f32.partialorder %v2249, 9.0
        %vm2282 = vcmp.ge.f32.partialorder %v2250, 9.0
        %vm2283 = vcmp.ge.f32.partialorder %v2251, 9.0
        %vm2284 = vcmp.ge.f32.partialorder %v2252, 9.0
        %vm2285 = vcmp.ge.f32.partialorder %v2253, 9.0
        %vm2286 = vcmp.ge.f32.partialorder %v2254, 9.0
        %vm2287 = vcmp.ge.f32.partialorder %v2255, 9.0
        %vm2288 = vcmp.ge.f32.partialorder %v2256, 9.0
        %vm2289 = vcmp.ge.f32.partialorder %v2257, 9.0
        %vm2290 = vcmp.ge.f32.partialorder %v2258, 9.0
        %vm2291 = vcmp.ge.f32.partialorder %v2259, 9.0
        %vm2292 = vcmp.ge.f32.partialorder %v2260, 9.0
        %vm2293 = vcmp.ge.f32.partialorder %v2261, 9.0
        %vm2294 = vcmp.ge.f32.partialorder %v2262, 9.0
        %vm2295 = vcmp.ge.f32.partialorder %v2263, 9.0
        %vm2296 = vcmp.ge.f32.partialorder %v2264, 9.0
        %vm2297 = vcmp.ge.f32.partialorder %v2265, 9.0
        %vm2298 = vcmp.ge.f32.partialorder %v2266, 9.0
        %vm2299 = vcmp.ge.f32.partialorder %v2267, 9.0
        %vm2300 = vcmp.ge.f32.partialorder %v2268, 9.0
        %vm2301 = vcmp.ge.f32.partialorder %v2269, 9.0
        %vm2302 = vcmp.ge.f32.partialorder %v2270, 9.0
        %vm2303 = vcmp.ge.f32.partialorder %v2271, 9.0
        %vm2304 = vcmp.ge.f32.partialorder %v2272, 9.0
        %vm2305 = vcmp.ge.f32.partialorder %v2273, 9.0
        %vm2306 = vcmp.ge.f32.partialorder %v2274, 9.0
        %vm2307 = vcmp.ge.f32.partialorder %v2275, 9.0
        %vm2308 = vcmp.ge.f32.partialorder %v2276, 9.0
        %vm2309 = vcmp.ge.f32.partialorder %v2277, 9.0
        %vm2310 = vcmp.ge.f32.partialorder %v2278, 9.0
        %vm2311 = vcmp.ge.f32.partialorder %v2279, 9.0
        %vm2312 = vcmp.ge.f32.partialorder %v2280, 9.0
        %v2313 = vsel %vm2281, 1, 0
        %v2314 = vsel %vm2282, 1, 0
        %v2315 = vsel %vm2283, 1, 0
        %v2316 = vsel %vm2284, 1, 0
        %v2317 = vsel %vm2285, 1, 0
        %v2318 = vsel %vm2286, 1, 0
        %v2319 = vsel %vm2287, 1, 0
        %v2320 = vsel %vm2288, 1, 0
        %v2321 = vsel %vm2289, 1, 0
        %v2322 = vsel %vm2290, 1, 0
        %v2323 = vsel %vm2291, 1, 0
        %v2324 = vsel %vm2292, 1, 0
        %v2325 = vsel %vm2293, 1, 0
        %v2326 = vsel %vm2294, 1, 0
        %v2327 = vsel %vm2295, 1, 0
        %v2328 = vsel %vm2296, 1, 0
        %v2329 = vsel %vm2297, 1, 0
        %v2330 = vsel %vm2298, 1, 0
        %v2331 = vsel %vm2299, 1, 0
        %v2332 = vsel %vm2300, 1, 0
        %v2333 = vsel %vm2301, 1, 0
        %v2334 = vsel %vm2302, 1, 0
        %v2335 = vsel %vm2303, 1, 0
        %v2336 = vsel %vm2304, 1, 0
        %v2337 = vsel %vm2305, 1, 0
        %v2338 = vsel %vm2306, 1, 0
        %v2339 = vsel %vm2307, 1, 0
        %v2340 = vsel %vm2308, 1, 0
        %v2341 = vsel %vm2309, 1, 0
        %v2342 = vsel %vm2310, 1, 0
        %v2343 = vsel %vm2311, 1, 0
        %v2344 = vsel %vm2312, 1, 0
        %v2345 = vcvt.s32.f32 %v2313
        %v2346 = vcvt.s32.f32 %v2314
        %v2347 = vcvt.s32.f32 %v2315
        %v2348 = vcvt.s32.f32 %v2316
        %v2349 = vcvt.s32.f32 %v2317
        %v2350 = vcvt.s32.f32 %v2318
        %v2351 = vcvt.s32.f32 %v2319
        %v2352 = vcvt.s32.f32 %v2320
        %v2353 = vcvt.s32.f32 %v2321
        %v2354 = vcvt.s32.f32 %v2322
        %v2355 = vcvt.s32.f32 %v2323
        %v2356 = vcvt.s32.f32 %v2324
        %v2357 = vcvt.s32.f32 %v2325
        %v2358 = vcvt.s32.f32 %v2326
        %v2359 = vcvt.s32.f32 %v2327
        %v2360 = vcvt.s32.f32 %v2328
        %v2361 = vcvt.s32.f32 %v2329
        %v2362 = vcvt.s32.f32 %v2330
        %v2363 = vcvt.s32.f32 %v2331
        %v2364 = vcvt.s32.f32 %v2332
        %v2365 = vcvt.s32.f32 %v2333
        %v2366 = vcvt.s32.f32 %v2334
        %v2367 = vcvt.s32.f32 %v2335
        %v2368 = vcvt.s32.f32 %v2336
        %v2369 = vcvt.s32.f32 %v2337
        %v2370 = vcvt.s32.f32 %v2338
        %v2371 = vcvt.s32.f32 %v2339
        %v2372 = vcvt.s32.f32 %v2340
        %v2373 = vcvt.s32.f32 %v2341
        %v2374 = vcvt.s32.f32 %v2342
        %v2375 = vcvt.s32.f32 %v2343
        %v2376 = vcvt.s32.f32 %v2344
        %v2377 = vadd.f32 %v2185, %v2345
        %v2378 = vadd.f32 %v2186, %v2346
        %v2379 = vadd.f32 %v2187, %v2347
        %v2380 = vadd.f32 %v2188, %v2348
        %v2381 = vadd.f32 %v2189, %v2349
        %v2382 = vadd.f32 %v2190, %v2350
        %v2383 = vadd.f32 %v2191, %v2351
        %v2384 = vadd.f32 %v2192, %v2352
        %v2385 = vadd.f32 %v2193, %v2353
        %v2386 = vadd.f32 %v2194, %v2354
        %v2387 = vadd.f32 %v2195, %v2355
        %v2388 = vadd.f32 %v2196, %v2356
        %v2389 = vadd.f32 %v2197, %v2357
        %v2390 = vadd.f32 %v2198, %v2358
        %v2391 = vadd.f32 %v2199, %v2359
        %v2392 = vadd.f32 %v2200, %v2360
        %v2393 = vadd.f32 %v2201, %v2361
        %v2394 = vadd.f32 %v2202, %v2362
        %v2395 = vadd.f32 %v2203, %v2363
        %v2396 = vadd.f32 %v2204, %v2364
        %v2397 = vadd.f32 %v2205, %v2365
        %v2398 = vadd.f32 %v2206, %v2366
        %v2399 = vadd.f32 %v2207, %v2367
        %v2400 = vadd.f32 %v2208, %v2368
        %v2401 = vadd.f32 %v2209, %v2369
        %v2402 = vadd.f32 %v2210, %v2370
        %v2403 = vadd.f32 %v2211, %v2371
        %v2404 = vadd.f32 %v2212, %v2372
        %v2405 = vadd.f32 %v2213, %v2373
        %v2406 = vadd.f32 %v2214, %v2374
        %v2407 = vadd.f32 %v2215, %v2375
        %v2408 = vadd.f32 %v2216, %v2376
        %vm2409 = vcmp.lt.f32.partialorder %v2249, 0.0
        %vm2410 = vcmp.lt.f32.partialorder %v2250, 0.0
        %vm2411 = vcmp.lt.f32.partialorder %v2251, 0.0
        %vm2412 = vcmp.lt.f32.partialorder %v2252, 0.0
        %vm2413 = vcmp.lt.f32.partialorder %v2253, 0.0
        %vm2414 = vcmp.lt.f32.partialorder %v2254, 0.0
        %vm2415 = vcmp.lt.f32.partialorder %v2255, 0.0
        %vm2416 = vcmp.lt.f32.partialorder %v2256, 0.0
        %vm2417 = vcmp.lt.f32.partialorder %v2257, 0.0
        %vm2418 = vcmp.lt.f32.partialorder %v2258, 0.0
        %vm2419 = vcmp.lt.f32.partialorder %v2259, 0.0
        %vm2420 = vcmp.lt.f32.partialorder %v2260, 0.0
        %vm2421 = vcmp.lt.f32.partialorder %v2261, 0.0
        %vm2422 = vcmp.lt.f32.partialorder %v2262, 0.0
        %vm2423 = vcmp.lt.f32.partialorder %v2263, 0.0
        %vm2424 = vcmp.lt.f32.partialorder %v2264, 0.0
        %vm2425 = vcmp.lt.f32.partialorder %v2265, 0.0
        %vm2426 = vcmp.lt.f32.partialorder %v2266, 0.0
        %vm2427 = vcmp.lt.f32.partialorder %v2267, 0.0
        %vm2428 = vcmp.lt.f32.partialorder %v2268, 0.0
        %vm2429 = vcmp.lt.f32.partialorder %v2269, 0.0
        %vm2430 = vcmp.lt.f32.partialorder %v2270, 0.0
        %vm2431 = vcmp.lt.f32.partialorder %v2271, 0.0
        %vm2432 = vcmp.lt.f32.partialorder %v2272, 0.0
        %vm2433 = vcmp.lt.f32.partialorder %v2273, 0.0
        %vm2434 = vcmp.lt.f32.partialorder %v2274, 0.0
        %vm2435 = vcmp.lt.f32.partialorder %v2275, 0.0
        %vm2436 = vcmp.lt.f32.partialorder %v2276, 0.0
        %vm2437 = vcmp.lt.f32.partialorder %v2277, 0.0
        %vm2438 = vcmp.lt.f32.partialorder %v2278, 0.0
        %vm2439 = vcmp.lt.f32.partialorder %v2279, 0.0
        %vm2440 = vcmp.lt.f32.partialorder %v2280, 0.0
        %v2441 = vsel %vm2409, 1, 0
        %v2442 = vsel %vm2410, 1, 0
        %v2443 = vsel %vm2411, 1, 0
        %v2444 = vsel %vm2412, 1, 0
        %v2445 = vsel %vm2413, 1, 0
        %v2446 = vsel %vm2414, 1, 0
        %v2447 = vsel %vm2415, 1, 0
        %v2448 = vsel %vm2416, 1, 0
        %v2449 = vsel %vm2417, 1, 0
        %v2450 = vsel %vm2418, 1, 0
        %v2451 = vsel %vm2419, 1, 0
        %v2452 = vsel %vm2420, 1, 0
        %v2453 = vsel %vm2421, 1, 0
        %v2454 = vsel %vm2422, 1, 0
        %v2455 = vsel %vm2423, 1, 0
        %v2456 = vsel %vm2424, 1, 0
        %v2457 = vsel %vm2425, 1, 0
        %v2458 = vsel %vm2426, 1, 0
        %v2459 = vsel %vm2427, 1, 0
        %v2460 = vsel %vm2428, 1, 0
        %v2461 = vsel %vm2429, 1, 0
        %v2462 = vsel %vm2430, 1, 0
        %v2463 = vsel %vm2431, 1, 0
        %v2464 = vsel %vm2432, 1, 0
        %v2465 = vsel %vm2433, 1, 0
        %v2466 = vsel %vm2434, 1, 0
        %v2467 = vsel %vm2435, 1, 0
        %v2468 = vsel %vm2436, 1, 0
        %v2469 = vsel %vm2437, 1, 0
        %v2470 = vsel %vm2438, 1, 0
        %v2471 = vsel %vm2439, 1, 0
        %v2472 = vsel %vm2440, 1, 0
        %v2473 = vcvt.s32.f32 %v2441
        %v2474 = vcvt.s32.f32 %v2442
        %v2475 = vcvt.s32.f32 %v2443
        %v2476 = vcvt.s32.f32 %v2444
        %v2477 = vcvt.s32.f32 %v2445
        %v2478 = vcvt.s32.f32 %v2446
        %v2479 = vcvt.s32.f32 %v2447
        %v2480 = vcvt.s32.f32 %v2448
        %v2481 = vcvt.s32.f32 %v2449
        %v2482 = vcvt.s32.f32 %v2450
        %v2483 = vcvt.s32.f32 %v2451
        %v2484 = vcvt.s32.f32 %v2452
        %v2485 = vcvt.s32.f32 %v2453
        %v2486 = vcvt.s32.f32 %v2454
        %v2487 = vcvt.s32.f32 %v2455
        %v2488 = vcvt.s32.f32 %v2456
        %v2489 = vcvt.s32.f32 %v2457
        %v2490 = vcvt.s32.f32 %v2458
        %v2491 = vcvt.s32.f32 %v2459
        %v2492 = vcvt.s32.f32 %v2460
        %v2493 = vcvt.s32.f32 %v2461
        %v2494 = vcvt.s32.f32 %v2462
        %v2495 = vcvt.s32.f32 %v2463
        %v2496 = vcvt.s32.f32 %v2464
        %v2497 = vcvt.s32.f32 %v2465
        %v2498 = vcvt.s32.f32 %v2466
        %v2499 = vcvt.s32.f32 %v2467
        %v2500 = vcvt.s32.f32 %v2468
        %v2501 = vcvt.s32.f32 %v2469
        %v2502 = vcvt.s32.f32 %v2470
        %v2503 = vcvt.s32.f32 %v2471
        %v2504 = vcvt.s32.f32 %v2472
        %v2505 = vsub.f32 %v2377, %v2473
        %v2506 = vsub.f32 %v2378, %v2474
        %v2507 = vsub.f32 %v2379, %v2475
        %v2508 = vsub.f32 %v2380, %v2476
        %v2509 = vsub.f32 %v2381, %v2477
        %v2510 = vsub.f32 %v2382, %v2478
        %v2511 = vsub.f32 %v2383, %v2479
        %v2512 = vsub.f32 %v2384, %v2480
        %v2513 = vsub.f32 %v2385, %v2481
        %v2514 = vsub.f32 %v2386, %v2482
        %v2515 = vsub.f32 %v2387, %v2483
        %v2516 = vsub.f32 %v2388, %v2484
        %v2517 = vsub.f32 %v2389, %v2485
        %v2518 = vsub.f32 %v2390, %v2486
        %v2519 = vsub.f32 %v2391, %v2487
        %v2520 = vsub.f32 %v2392, %v2488
        %v2521 = vsub.f32 %v2393, %v2489
        %v2522 = vsub.f32 %v2394, %v2490
        %v2523 = vsub.f32 %v2395, %v2491
        %v2524 = vsub.f32 %v2396, %v2492
        %v2525 = vsub.f32 %v2397, %v2493
        %v2526 = vsub.f32 %v2398, %v2494
        %v2527 = vsub.f32 %v2399, %v2495
        %v2528 = vsub.f32 %v2400, %v2496
        %v2529 = vsub.f32 %v2401, %v2497
        %v2530 = vsub.f32 %v2402, %v2498
        %v2531 = vsub.f32 %v2403, %v2499
        %v2532 = vsub.f32 %v2404, %v2500
        %v2533 = vsub.f32 %v2405, %v2501
        %v2534 = vsub.f32 %v2406, %v2502
        %v2535 = vsub.f32 %v2407, %v2503
        %v2536 = vsub.f32 %v2408, %v2504
        %v2537 = vmul.f32 %v2505, 9.0
        %v2538 = vmul.f32 %v2506, 9.0
        %v2539 = vmul.f32 %v2507, 9.0
        %v2540 = vmul.f32 %v2508, 9.0
        %v2541 = vmul.f32 %v2509, 9.0
        %v2542 = vmul.f32 %v2510, 9.0
        %v2543 = vmul.f32 %v2511, 9.0
        %v2544 = vmul.f32 %v2512, 9.0
        %v2545 = vmul.f32 %v2513, 9.0
        %v2546 = vmul.f32 %v2514, 9.0
        %v2547 = vmul.f32 %v2515, 9.0
        %v2548 = vmul.f32 %v2516, 9.0
        %v2549 = vmul.f32 %v2517, 9.0
        %v2550 = vmul.f32 %v2518, 9.0
        %v2551 = vmul.f32 %v2519, 9.0
        %v2552 = vmul.f32 %v2520, 9.0
        %v2553 = vmul.f32 %v2521, 9.0
        %v2554 = vmul.f32 %v2522, 9.0
        %v2555 = vmul.f32 %v2523, 9.0
        %v2556 = vmul.f32 %v2524, 9.0
        %v2557 = vmul.f32 %v2525, 9.0
        %v2558 = vmul.f32 %v2526, 9.0
        %v2559 = vmul.f32 %v2527, 9.0
        %v2560 = vmul.f32 %v2528, 9.0
        %v2561 = vmul.f32 %v2529, 9.0
        %v2562 = vmul.f32 %v2530, 9.0
        %v2563 = vmul.f32 %v2531, 9.0
        %v2564 = vmul.f32 %v2532, 9.0
        %v2565 = vmul.f32 %v2533, 9.0
        %v2566 = vmul.f32 %v2534, 9.0
        %v2567 = vmul.f32 %v2535, 9.0
        %v2568 = vmul.f32 %v2536, 9.0
        %v2569 = vsub.f32 %v2121, %v2537
        %v2570 = vsub.f32 %v2122, %v2538
        %v2571 = vsub.f32 %v2123, %v2539
        %v2572 = vsub.f32 %v2124, %v2540
        %v2573 = vsub.f32 %v2125, %v2541
        %v2574 = vsub.f32 %v2126, %v2542
        %v2575 = vsub.f32 %v2127, %v2543
        %v2576 = vsub.f32 %v2128, %v2544
        %v2577 = vsub.f32 %v2129, %v2545
        %v2578 = vsub.f32 %v2130, %v2546
        %v2579 = vsub.f32 %v2131, %v2547
        %v2580 = vsub.f32 %v2132, %v2548
        %v2581 = vsub.f32 %v2133, %v2549
        %v2582 = vsub.f32 %v2134, %v2550
        %v2583 = vsub.f32 %v2135, %v2551
        %v2584 = vsub.f32 %v2136, %v2552
        %v2585 = vsub.f32 %v2137, %v2553
        %v2586 = vsub.f32 %v2138, %v2554
        %v2587 = vsub.f32 %v2139, %v2555
        %v2588 = vsub.f32 %v2140, %v2556
        %v2589 = vsub.f32 %v2141, %v2557
        %v2590 = vsub.f32 %v2142, %v2558
        %v2591 = vsub.f32 %v2143, %v2559
        %v2592 = vsub.f32 %v2144, %v2560
        %v2593 = vsub.f32 %v2145, %v2561
        %v2594 = vsub.f32 %v2146, %v2562
        %v2595 = vsub.f32 %v2147, %v2563
        %v2596 = vsub.f32 %v2148, %v2564
        %v2597 = vsub.f32 %v2149, %v2565
        %v2598 = vsub.f32 %v2150, %v2566
        %v2599 = vsub.f32 %v2151, %v2567
        %v2600 = vsub.f32 %v2152, %v2568
        %v2601 = vmul.f32 %v2505, %v259
        %v2602 = vmul.f32 %v2506, %v259
        %v2603 = vmul.f32 %v2507, %v259
        %v2604 = vmul.f32 %v2508, %v259
        %v2605 = vmul.f32 %v2509, %v259
        %v2606 = vmul.f32 %v2510, %v259
        %v2607 = vmul.f32 %v2511, %v259
        %v2608 = vmul.f32 %v2512, %v259
        %v2609 = vmul.f32 %v2513, %v259
        %v2610 = vmul.f32 %v2514, %v259
        %v2611 = vmul.f32 %v2515, %v259
        %v2612 = vmul.f32 %v2516, %v259
        %v2613 = vmul.f32 %v2517, %v259
        %v2614 = vmul.f32 %v2518, %v259
        %v2615 = vmul.f32 %v2519, %v259
        %v2616 = vmul.f32 %v2520, %v259
        %v2617 = vmul.f32 %v2521, %v259
        %v2618 = vmul.f32 %v2522, %v259
        %v2619 = vmul.f32 %v2523, %v259
        %v2620 = vmul.f32 %v2524, %v259
        %v2621 = vmul.f32 %v2525, %v259
        %v2622 = vmul.f32 %v2526, %v259
        %v2623 = vmul.f32 %v2527, %v259
        %v2624 = vmul.f32 %v2528, %v259
        %v2625 = vmul.f32 %v2529, %v259
        %v2626 = vmul.f32 %v2530, %v259
        %v2627 = vmul.f32 %v2531, %v259
        %v2628 = vmul.f32 %v2532, %v259
        %v2629 = vmul.f32 %v2533, %v259
        %v2630 = vmul.f32 %v2534, %v259
        %v2631 = vmul.f32 %v2535, %v259
        %v2632 = vmul.f32 %v2536, %v259
        %v2633 = vfloor.f32 %v2601
        %v2634 = vfloor.f32 %v2602
        %v2635 = vfloor.f32 %v2603
        %v2636 = vfloor.f32 %v2604
        %v2637 = vfloor.f32 %v2605
        %v2638 = vfloor.f32 %v2606
        %v2639 = vfloor.f32 %v2607
        %v2640 = vfloor.f32 %v2608
        %v2641 = vfloor.f32 %v2609
        %v2642 = vfloor.f32 %v2610
        %v2643 = vfloor.f32 %v2611
        %v2644 = vfloor.f32 %v2612
        %v2645 = vfloor.f32 %v2613
        %v2646 = vfloor.f32 %v2614
        %v2647 = vfloor.f32 %v2615
        %v2648 = vfloor.f32 %v2616
        %v2649 = vfloor.f32 %v2617
        %v2650 = vfloor.f32 %v2618
        %v2651 = vfloor.f32 %v2619
        %v2652 = vfloor.f32 %v2620
        %v2653 = vfloor.f32 %v2621
        %v2654 = vfloor.f32 %v2622
        %v2655 = vfloor.f32 %v2623
        %v2656 = vfloor.f32 %v2624
        %v2657 = vfloor.f32 %v2625
        %v2658 = vfloor.f32 %v2626
        %v2659 = vfloor.f32 %v2627
        %v2660 = vfloor.f32 %v2628
        %v2661 = vfloor.f32 %v2629
        %v2662 = vfloor.f32 %v2630
        %v2663 = vfloor.f32 %v2631
        %v2664 = vfloor.f32 %v2632
        %v2665 = vmul.f32 %v2633, 9.0
        %v2666 = vmul.f32 %v2634, 9.0
        %v2667 = vmul.f32 %v2635, 9.0
        %v2668 = vmul.f32 %v2636, 9.0
        %v2669 = vmul.f32 %v2637, 9.0
        %v2670 = vmul.f32 %v2638, 9.0
        %v2671 = vmul.f32 %v2639, 9.0
        %v2672 = vmul.f32 %v2640, 9.0
        %v2673 = vmul.f32 %v2641, 9.0
        %v2674 = vmul.f32 %v2642, 9.0
        %v2675 = vmul.f32 %v2643, 9.0
        %v2676 = vmul.f32 %v2644, 9.0
        %v2677 = vmul.f32 %v2645, 9.0
        %v2678 = vmul.f32 %v2646, 9.0
        %v2679 = vmul.f32 %v2647, 9.0
        %v2680 = vmul.f32 %v2648, 9.0
        %v2681 = vmul.f32 %v2649, 9.0
        %v2682 = vmul.f32 %v2650, 9.0
        %v2683 = vmul.f32 %v2651, 9.0
        %v2684 = vmul.f32 %v2652, 9.0
        %v2685 = vmul.f32 %v2653, 9.0
        %v2686 = vmul.f32 %v2654, 9.0
        %v2687 = vmul.f32 %v2655, 9.0
        %v2688 = vmul.f32 %v2656, 9.0
        %v2689 = vmul.f32 %v2657, 9.0
        %v2690 = vmul.f32 %v2658, 9.0
        %v2691 = vmul.f32 %v2659, 9.0
        %v2692 = vmul.f32 %v2660, 9.0
        %v2693 = vmul.f32 %v2661, 9.0
        %v2694 = vmul.f32 %v2662, 9.0
        %v2695 = vmul.f32 %v2663, 9.0
        %v2696 = vmul.f32 %v2664, 9.0
        %v2697 = vsub.f32 %v2505, %v2665
        %v2698 = vsub.f32 %v2506, %v2666
        %v2699 = vsub.f32 %v2507, %v2667
        %v2700 = vsub.f32 %v2508, %v2668
        %v2701 = vsub.f32 %v2509, %v2669
        %v2702 = vsub.f32 %v2510, %v2670
        %v2703 = vsub.f32 %v2511, %v2671
        %v2704 = vsub.f32 %v2512, %v2672
        %v2705 = vsub.f32 %v2513, %v2673
        %v2706 = vsub.f32 %v2514, %v2674
        %v2707 = vsub.f32 %v2515, %v2675
        %v2708 = vsub.f32 %v2516, %v2676
        %v2709 = vsub.f32 %v2517, %v2677
        %v2710 = vsub.f32 %v2518, %v2678
        %v2711 = vsub.f32 %v2519, %v2679
        %v2712 = vsub.f32 %v2520, %v2680
        %v2713 = vsub.f32 %v2521, %v2681
        %v2714 = vsub.f32 %v2522, %v2682
        %v2715 = vsub.f32 %v2523, %v2683
        %v2716 = vsub.f32 %v2524, %v2684
        %v2717 = vsub.f32 %v2525, %v2685
        %v2718 = vsub.f32 %v2526, %v2686
        %v2719 = vsub.f32 %v2527, %v2687
        %v2720 = vsub.f32 %v2528, %v2688
        %v2721 = vsub.f32 %v2529, %v2689
        %v2722 = vsub.f32 %v2530, %v2690
        %v2723 = vsub.f32 %v2531, %v2691
        %v2724 = vsub.f32 %v2532, %v2692
        %v2725 = vsub.f32 %v2533, %v2693
        %v2726 = vsub.f32 %v2534, %v2694
        %v2727 = vsub.f32 %v2535, %v2695
        %v2728 = vsub.f32 %v2536, %v2696
        %vm2729 = vcmp.ge.f32.partialorder %v2697, 9.0
        %vm2730 = vcmp.ge.f32.partialorder %v2698, 9.0
        %vm2731 = vcmp.ge.f32.partialorder %v2699, 9.0
        %vm2732 = vcmp.ge.f32.partialorder %v2700, 9.0
        %vm2733 = vcmp.ge.f32.partialorder %v2701, 9.0
        %vm2734 = vcmp.ge.f32.partialorder %v2702, 9.0
        %vm2735 = vcmp.ge.f32.partialorder %v2703, 9.0
        %vm2736 = vcmp.ge.f32.partialorder %v2704, 9.0
        %vm2737 = vcmp.ge.f32.partialorder %v2705, 9.0
        %vm2738 = vcmp.ge.f32.partialorder %v2706, 9.0
        %vm2739 = vcmp.ge.f32.partialorder %v2707, 9.0
        %vm2740 = vcmp.ge.f32.partialorder %v2708, 9.0
        %vm2741 = vcmp.ge.f32.partialorder %v2709, 9.0
        %vm2742 = vcmp.ge.f32.partialorder %v2710, 9.0
        %vm2743 = vcmp.ge.f32.partialorder %v2711, 9.0
        %vm2744 = vcmp.ge.f32.partialorder %v2712, 9.0
        %vm2745 = vcmp.ge.f32.partialorder %v2713, 9.0
        %vm2746 = vcmp.ge.f32.partialorder %v2714, 9.0
        %vm2747 = vcmp.ge.f32.partialorder %v2715, 9.0
        %vm2748 = vcmp.ge.f32.partialorder %v2716, 9.0
        %vm2749 = vcmp.ge.f32.partialorder %v2717, 9.0
        %vm2750 = vcmp.ge.f32.partialorder %v2718, 9.0
        %vm2751 = vcmp.ge.f32.partialorder %v2719, 9.0
        %vm2752 = vcmp.ge.f32.partialorder %v2720, 9.0
        %vm2753 = vcmp.ge.f32.partialorder %v2721, 9.0
        %vm2754 = vcmp.ge.f32.partialorder %v2722, 9.0
        %vm2755 = vcmp.ge.f32.partialorder %v2723, 9.0
        %vm2756 = vcmp.ge.f32.partialorder %v2724, 9.0
        %vm2757 = vcmp.ge.f32.partialorder %v2725, 9.0
        %vm2758 = vcmp.ge.f32.partialorder %v2726, 9.0
        %vm2759 = vcmp.ge.f32.partialorder %v2727, 9.0
        %vm2760 = vcmp.ge.f32.partialorder %v2728, 9.0
        %v2761 = vsel %vm2729, 1, 0
        %v2762 = vsel %vm2730, 1, 0
        %v2763 = vsel %vm2731, 1, 0
        %v2764 = vsel %vm2732, 1, 0
        %v2765 = vsel %vm2733, 1, 0
        %v2766 = vsel %vm2734, 1, 0
        %v2767 = vsel %vm2735, 1, 0
        %v2768 = vsel %vm2736, 1, 0
        %v2769 = vsel %vm2737, 1, 0
        %v2770 = vsel %vm2738, 1, 0
        %v2771 = vsel %vm2739, 1, 0
        %v2772 = vsel %vm2740, 1, 0
        %v2773 = vsel %vm2741, 1, 0
        %v2774 = vsel %vm2742, 1, 0
        %v2775 = vsel %vm2743, 1, 0
        %v2776 = vsel %vm2744, 1, 0
        %v2777 = vsel %vm2745, 1, 0
        %v2778 = vsel %vm2746, 1, 0
        %v2779 = vsel %vm2747, 1, 0
        %v2780 = vsel %vm2748, 1, 0
        %v2781 = vsel %vm2749, 1, 0
        %v2782 = vsel %vm2750, 1, 0
        %v2783 = vsel %vm2751, 1, 0
        %v2784 = vsel %vm2752, 1, 0
        %v2785 = vsel %vm2753, 1, 0
        %v2786 = vsel %vm2754, 1, 0
        %v2787 = vsel %vm2755, 1, 0
        %v2788 = vsel %vm2756, 1, 0
        %v2789 = vsel %vm2757, 1, 0
        %v2790 = vsel %vm2758, 1, 0
        %v2791 = vsel %vm2759, 1, 0
        %v2792 = vsel %vm2760, 1, 0
        %v2793 = vcvt.s32.f32 %v2761
        %v2794 = vcvt.s32.f32 %v2762
        %v2795 = vcvt.s32.f32 %v2763
        %v2796 = vcvt.s32.f32 %v2764
        %v2797 = vcvt.s32.f32 %v2765
        %v2798 = vcvt.s32.f32 %v2766
        %v2799 = vcvt.s32.f32 %v2767
        %v2800 = vcvt.s32.f32 %v2768
        %v2801 = vcvt.s32.f32 %v2769
        %v2802 = vcvt.s32.f32 %v2770
        %v2803 = vcvt.s32.f32 %v2771
        %v2804 = vcvt.s32.f32 %v2772
        %v2805 = vcvt.s32.f32 %v2773
        %v2806 = vcvt.s32.f32 %v2774
        %v2807 = vcvt.s32.f32 %v2775
        %v2808 = vcvt.s32.f32 %v2776
        %v2809 = vcvt.s32.f32 %v2777
        %v2810 = vcvt.s32.f32 %v2778
        %v2811 = vcvt.s32.f32 %v2779
        %v2812 = vcvt.s32.f32 %v2780
        %v2813 = vcvt.s32.f32 %v2781
        %v2814 = vcvt.s32.f32 %v2782
        %v2815 = vcvt.s32.f32 %v2783
        %v2816 = vcvt.s32.f32 %v2784
        %v2817 = vcvt.s32.f32 %v2785
        %v2818 = vcvt.s32.f32 %v2786
        %v2819 = vcvt.s32.f32 %v2787
        %v2820 = vcvt.s32.f32 %v2788
        %v2821 = vcvt.s32.f32 %v2789
        %v2822 = vcvt.s32.f32 %v2790
        %v2823 = vcvt.s32.f32 %v2791
        %v2824 = vcvt.s32.f32 %v2792
        %v2825 = vadd.f32 %v2633, %v2793
        %v2826 = vadd.f32 %v2634, %v2794
        %v2827 = vadd.f32 %v2635, %v2795
        %v2828 = vadd.f32 %v2636, %v2796
        %v2829 = vadd.f32 %v2637, %v2797
        %v2830 = vadd.f32 %v2638, %v2798
        %v2831 = vadd.f32 %v2639, %v2799
        %v2832 = vadd.f32 %v2640, %v2800
        %v2833 = vadd.f32 %v2641, %v2801
        %v2834 = vadd.f32 %v2642, %v2802
        %v2835 = vadd.f32 %v2643, %v2803
        %v2836 = vadd.f32 %v2644, %v2804
        %v2837 = vadd.f32 %v2645, %v2805
        %v2838 = vadd.f32 %v2646, %v2806
        %v2839 = vadd.f32 %v2647, %v2807
        %v2840 = vadd.f32 %v2648, %v2808
        %v2841 = vadd.f32 %v2649, %v2809
        %v2842 = vadd.f32 %v2650, %v2810
        %v2843 = vadd.f32 %v2651, %v2811
        %v2844 = vadd.f32 %v2652, %v2812
        %v2845 = vadd.f32 %v2653, %v2813
        %v2846 = vadd.f32 %v2654, %v2814
        %v2847 = vadd.f32 %v2655, %v2815
        %v2848 = vadd.f32 %v2656, %v2816
        %v2849 = vadd.f32 %v2657, %v2817
        %v2850 = vadd.f32 %v2658, %v2818
        %v2851 = vadd.f32 %v2659, %v2819
        %v2852 = vadd.f32 %v2660, %v2820
        %v2853 = vadd.f32 %v2661, %v2821
        %v2854 = vadd.f32 %v2662, %v2822
        %v2855 = vadd.f32 %v2663, %v2823
        %v2856 = vadd.f32 %v2664, %v2824
        %vm2857 = vcmp.lt.f32.partialorder %v2697, 0.0
        %vm2858 = vcmp.lt.f32.partialorder %v2698, 0.0
        %vm2859 = vcmp.lt.f32.partialorder %v2699, 0.0
        %vm2860 = vcmp.lt.f32.partialorder %v2700, 0.0
        %vm2861 = vcmp.lt.f32.partialorder %v2701, 0.0
        %vm2862 = vcmp.lt.f32.partialorder %v2702, 0.0
        %vm2863 = vcmp.lt.f32.partialorder %v2703, 0.0
        %vm2864 = vcmp.lt.f32.partialorder %v2704, 0.0
        %vm2865 = vcmp.lt.f32.partialorder %v2705, 0.0
        %vm2866 = vcmp.lt.f32.partialorder %v2706, 0.0
        %vm2867 = vcmp.lt.f32.partialorder %v2707, 0.0
        %vm2868 = vcmp.lt.f32.partialorder %v2708, 0.0
        %vm2869 = vcmp.lt.f32.partialorder %v2709, 0.0
        %vm2870 = vcmp.lt.f32.partialorder %v2710, 0.0
        %vm2871 = vcmp.lt.f32.partialorder %v2711, 0.0
        %vm2872 = vcmp.lt.f32.partialorder %v2712, 0.0
        %vm2873 = vcmp.lt.f32.partialorder %v2713, 0.0
        %vm2874 = vcmp.lt.f32.partialorder %v2714, 0.0
        %vm2875 = vcmp.lt.f32.partialorder %v2715, 0.0
        %vm2876 = vcmp.lt.f32.partialorder %v2716, 0.0
        %vm2877 = vcmp.lt.f32.partialorder %v2717, 0.0
        %vm2878 = vcmp.lt.f32.partialorder %v2718, 0.0
        %vm2879 = vcmp.lt.f32.partialorder %v2719, 0.0
        %vm2880 = vcmp.lt.f32.partialorder %v2720, 0.0
        %vm2881 = vcmp.lt.f32.partialorder %v2721, 0.0
        %vm2882 = vcmp.lt.f32.partialorder %v2722, 0.0
        %vm2883 = vcmp.lt.f32.partialorder %v2723, 0.0
        %vm2884 = vcmp.lt.f32.partialorder %v2724, 0.0
        %vm2885 = vcmp.lt.f32.partialorder %v2725, 0.0
        %vm2886 = vcmp.lt.f32.partialorder %v2726, 0.0
        %vm2887 = vcmp.lt.f32.partialorder %v2727, 0.0
        %vm2888 = vcmp.lt.f32.partialorder %v2728, 0.0
        %v2889 = vsel %vm2857, 1, 0
        %v2890 = vsel %vm2858, 1, 0
        %v2891 = vsel %vm2859, 1, 0
        %v2892 = vsel %vm2860, 1, 0
        %v2893 = vsel %vm2861, 1, 0
        %v2894 = vsel %vm2862, 1, 0
        %v2895 = vsel %vm2863, 1, 0
        %v2896 = vsel %vm2864, 1, 0
        %v2897 = vsel %vm2865, 1, 0
        %v2898 = vsel %vm2866, 1, 0
        %v2899 = vsel %vm2867, 1, 0
        %v2900 = vsel %vm2868, 1, 0
        %v2901 = vsel %vm2869, 1, 0
        %v2902 = vsel %vm2870, 1, 0
        %v2903 = vsel %vm2871, 1, 0
        %v2904 = vsel %vm2872, 1, 0
        %v2905 = vsel %vm2873, 1, 0
        %v2906 = vsel %vm2874, 1, 0
        %v2907 = vsel %vm2875, 1, 0
        %v2908 = vsel %vm2876, 1, 0
        %v2909 = vsel %vm2877, 1, 0
        %v2910 = vsel %vm2878, 1, 0
        %v2911 = vsel %vm2879, 1, 0
        %v2912 = vsel %vm2880, 1, 0
        %v2913 = vsel %vm2881, 1, 0
        %v2914 = vsel %vm2882, 1, 0
        %v2915 = vsel %vm2883, 1, 0
        %v2916 = vsel %vm2884, 1, 0
        %v2917 = vsel %vm2885, 1, 0
        %v2918 = vsel %vm2886, 1, 0
        %v2919 = vsel %vm2887, 1, 0
        %v2920 = vsel %vm2888, 1, 0
        %v2921 = vcvt.s32.f32 %v2889
        %v2922 = vcvt.s32.f32 %v2890
        %v2923 = vcvt.s32.f32 %v2891
        %v2924 = vcvt.s32.f32 %v2892
        %v2925 = vcvt.s32.f32 %v2893
        %v2926 = vcvt.s32.f32 %v2894
        %v2927 = vcvt.s32.f32 %v2895
        %v2928 = vcvt.s32.f32 %v2896
        %v2929 = vcvt.s32.f32 %v2897
        %v2930 = vcvt.s32.f32 %v2898
        %v2931 = vcvt.s32.f32 %v2899
        %v2932 = vcvt.s32.f32 %v2900
        %v2933 = vcvt.s32.f32 %v2901
        %v2934 = vcvt.s32.f32 %v2902
        %v2935 = vcvt.s32.f32 %v2903
        %v2936 = vcvt.s32.f32 %v2904
        %v2937 = vcvt.s32.f32 %v2905
        %v2938 = vcvt.s32.f32 %v2906
        %v2939 = vcvt.s32.f32 %v2907
        %v2940 = vcvt.s32.f32 %v2908
        %v2941 = vcvt.s32.f32 %v2909
        %v2942 = vcvt.s32.f32 %v2910
        %v2943 = vcvt.s32.f32 %v2911
        %v2944 = vcvt.s32.f32 %v2912
        %v2945 = vcvt.s32.f32 %v2913
        %v2946 = vcvt.s32.f32 %v2914
        %v2947 = vcvt.s32.f32 %v2915
        %v2948 = vcvt.s32.f32 %v2916
        %v2949 = vcvt.s32.f32 %v2917
        %v2950 = vcvt.s32.f32 %v2918
        %v2951 = vcvt.s32.f32 %v2919
        %v2952 = vcvt.s32.f32 %v2920
        %v2953 = vsub.f32 %v2825, %v2921
        %v2954 = vsub.f32 %v2826, %v2922
        %v2955 = vsub.f32 %v2827, %v2923
        %v2956 = vsub.f32 %v2828, %v2924
        %v2957 = vsub.f32 %v2829, %v2925
        %v2958 = vsub.f32 %v2830, %v2926
        %v2959 = vsub.f32 %v2831, %v2927
        %v2960 = vsub.f32 %v2832, %v2928
        %v2961 = vsub.f32 %v2833, %v2929
        %v2962 = vsub.f32 %v2834, %v2930
        %v2963 = vsub.f32 %v2835, %v2931
        %v2964 = vsub.f32 %v2836, %v2932
        %v2965 = vsub.f32 %v2837, %v2933
        %v2966 = vsub.f32 %v2838, %v2934
        %v2967 = vsub.f32 %v2839, %v2935
        %v2968 = vsub.f32 %v2840, %v2936
        %v2969 = vsub.f32 %v2841, %v2937
        %v2970 = vsub.f32 %v2842, %v2938
        %v2971 = vsub.f32 %v2843, %v2939
        %v2972 = vsub.f32 %v2844, %v2940
        %v2973 = vsub.f32 %v2845, %v2941
        %v2974 = vsub.f32 %v2846, %v2942
        %v2975 = vsub.f32 %v2847, %v2943
        %v2976 = vsub.f32 %v2848, %v2944
        %v2977 = vsub.f32 %v2849, %v2945
        %v2978 = vsub.f32 %v2850, %v2946
        %v2979 = vsub.f32 %v2851, %v2947
        %v2980 = vsub.f32 %v2852, %v2948
        %v2981 = vsub.f32 %v2853, %v2949
        %v2982 = vsub.f32 %v2854, %v2950
        %v2983 = vsub.f32 %v2855, %v2951
        %v2984 = vsub.f32 %v2856, %v2952
        %v2985 = vmul.f32 %v2953, 9.0
        %v2986 = vmul.f32 %v2954, 9.0
        %v2987 = vmul.f32 %v2955, 9.0
        %v2988 = vmul.f32 %v2956, 9.0
        %v2989 = vmul.f32 %v2957, 9.0
        %v2990 = vmul.f32 %v2958, 9.0
        %v2991 = vmul.f32 %v2959, 9.0
        %v2992 = vmul.f32 %v2960, 9.0
        %v2993 = vmul.f32 %v2961, 9.0
        %v2994 = vmul.f32 %v2962, 9.0
        %v2995 = vmul.f32 %v2963, 9.0
        %v2996 = vmul.f32 %v2964, 9.0
        %v2997 = vmul.f32 %v2965, 9.0
        %v2998 = vmul.f32 %v2966, 9.0
        %v2999 = vmul.f32 %v2967, 9.0
        %v3000 = vmul.f32 %v2968, 9.0
        %v3001 = vmul.f32 %v2969, 9.0
        %v3002 = vmul.f32 %v2970, 9.0
        %v3003 = vmul.f32 %v2971, 9.0
        %v3004 = vmul.f32 %v2972, 9.0
        %v3005 = vmul.f32 %v2973, 9.0
        %v3006 = vmul.f32 %v2974, 9.0
        %v3007 = vmul.f32 %v2975, 9.0
        %v3008 = vmul.f32 %v2976, 9.0
        %v3009 = vmul.f32 %v2977, 9.0
        %v3010 = vmul.f32 %v2978, 9.0
        %v3011 = vmul.f32 %v2979, 9.0
        %v3012 = vmul.f32 %v2980, 9.0
        %v3013 = vmul.f32 %v2981, 9.0
        %v3014 = vmul.f32 %v2982, 9.0
        %v3015 = vmul.f32 %v2983, 9.0
        %v3016 = vmul.f32 %v2984, 9.0
        %v3017 = vsub.f32 %v2505, %v2985
        %v3018 = vsub.f32 %v2506, %v2986
        %v3019 = vsub.f32 %v2507, %v2987
        %v3020 = vsub.f32 %v2508, %v2988
        %v3021 = vsub.f32 %v2509, %v2989
        %v3022 = vsub.f32 %v2510, %v2990
        %v3023 = vsub.f32 %v2511, %v2991
        %v3024 = vsub.f32 %v2512, %v2992
        %v3025 = vsub.f32 %v2513, %v2993
        %v3026 = vsub.f32 %v2514, %v2994
        %v3027 = vsub.f32 %v2515, %v2995
        %v3028 = vsub.f32 %v2516, %v2996
        %v3029 = vsub.f32 %v2517, %v2997
        %v3030 = vsub.f32 %v2518, %v2998
        %v3031 = vsub.f32 %v2519, %v2999
        %v3032 = vsub.f32 %v2520, %v3000
        %v3033 = vsub.f32 %v2521, %v3001
        %v3034 = vsub.f32 %v2522, %v3002
        %v3035 = vsub.f32 %v2523, %v3003
        %v3036 = vsub.f32 %v2524, %v3004
        %v3037 = vsub.f32 %v2525, %v3005
        %v3038 = vsub.f32 %v2526, %v3006
        %v3039 = vsub.f32 %v2527, %v3007
        %v3040 = vsub.f32 %v2528, %v3008
        %v3041 = vsub.f32 %v2529, %v3009
        %v3042 = vsub.f32 %v2530, %v3010
        %v3043 = vsub.f32 %v2531, %v3011
        %v3044 = vsub.f32 %v2532, %v3012
        %v3045 = vsub.f32 %v2533, %v3013
        %v3046 = vsub.f32 %v2534, %v3014
        %v3047 = vsub.f32 %v2535, %v3015
        %v3048 = vsub.f32 %v2536, %v3016
        %v3049 = vsub.f32 %v2569, %v1160
        %v3050 = vsub.f32 %v2569, %v1164
        %v3051 = vsub.f32 %v2570, %v1160
        %v3052 = vsub.f32 %v2570, %v1164
        %v3053 = vsub.f32 %v2571, %v1160
        %v3054 = vsub.f32 %v2571, %v1164
        %v3055 = vsub.f32 %v2572, %v1160
        %v3056 = vsub.f32 %v2572, %v1164
        %v3057 = vsub.f32 %v2573, %v1160
        %v3058 = vsub.f32 %v2573, %v1164
        %v3059 = vsub.f32 %v2574, %v1160
        %v3060 = vsub.f32 %v2574, %v1164
        %v3061 = vsub.f32 %v2575, %v1160
        %v3062 = vsub.f32 %v2575, %v1164
        %v3063 = vsub.f32 %v2576, %v1160
        %v3064 = vsub.f32 %v2576, %v1164
        %v3065 = vsub.f32 %v2577, %v1160
        %v3066 = vsub.f32 %v2577, %v1164
        %v3067 = vsub.f32 %v2578, %v1160
        %v3068 = vsub.f32 %v2578, %v1164
        %v3069 = vsub.f32 %v2579, %v1160
        %v3070 = vsub.f32 %v2579, %v1164
        %v3071 = vsub.f32 %v2580, %v1160
        %v3072 = vsub.f32 %v2580, %v1164
        %v3073 = vsub.f32 %v2581, %v1160
        %v3074 = vsub.f32 %v2581, %v1164
        %v3075 = vsub.f32 %v2582, %v1160
        %v3076 = vsub.f32 %v2582, %v1164
        %v3077 = vsub.f32 %v2583, %v1160
        %v3078 = vsub.f32 %v2583, %v1164
        %v3079 = vsub.f32 %v2584, %v1160
        %v3080 = vsub.f32 %v2584, %v1164
        %v3081 = vsub.f32 %v2585, %v1160
        %v3082 = vsub.f32 %v2585, %v1164
        %v3083 = vsub.f32 %v2586, %v1160
        %v3084 = vsub.f32 %v2586, %v1164
        %v3085 = vsub.f32 %v2587, %v1160
        %v3086 = vsub.f32 %v2587, %v1164
        %v3087 = vsub.f32 %v2588, %v1160
        %v3088 = vsub.f32 %v2588, %v1164
        %v3089 = vsub.f32 %v2589, %v1160
        %v3090 = vsub.f32 %v2589, %v1164
        %v3091 = vsub.f32 %v2590, %v1160
        %v3092 = vsub.f32 %v2590, %v1164
        %v3093 = vsub.f32 %v2591, %v1160
        %v3094 = vsub.f32 %v2591, %v1164
        %v3095 = vsub.f32 %v2592, %v1160
        %v3096 = vsub.f32 %v2592, %v1164
        %v3097 = vsub.f32 %v2593, %v1160
        %v3098 = vsub.f32 %v2593, %v1164
        %v3099 = vsub.f32 %v2594, %v1160
        %v3100 = vsub.f32 %v2594, %v1164
        %v3101 = vsub.f32 %v2595, %v1160
        %v3102 = vsub.f32 %v2595, %v1164
        %v3103 = vsub.f32 %v2596, %v1160
        %v3104 = vsub.f32 %v2596, %v1164
        %v3105 = vsub.f32 %v2597, %v1160
        %v3106 = vsub.f32 %v2597, %v1164
        %v3107 = vsub.f32 %v2598, %v1160
        %v3108 = vsub.f32 %v2598, %v1164
        %v3109 = vsub.f32 %v2599, %v1160
        %v3110 = vsub.f32 %v2599, %v1164
        %v3111 = vsub.f32 %v2600, %v1160
        %v3112 = vsub.f32 %v2600, %v1164
        %v3113 = vand.u32 2147483647, %v3049
        %v3114 = vand.u32 2147483647, %v3050
        %v3115 = vand.u32 2147483647, %v3051
        %v3116 = vand.u32 2147483647, %v3052
        %v3117 = vand.u32 2147483647, %v3053
        %v3118 = vand.u32 2147483647, %v3054
        %v3119 = vand.u32 2147483647, %v3055
        %v3120 = vand.u32 2147483647, %v3056
        %v3121 = vand.u32 2147483647, %v3057
        %v3122 = vand.u32 2147483647, %v3058
        %v3123 = vand.u32 2147483647, %v3059
        %v3124 = vand.u32 2147483647, %v3060
        %v3125 = vand.u32 2147483647, %v3061
        %v3126 = vand.u32 2147483647, %v3062
        %v3127 = vand.u32 2147483647, %v3063
        %v3128 = vand.u32 2147483647, %v3064
        %v3129 = vand.u32 2147483647, %v3065
        %v3130 = vand.u32 2147483647, %v3066
        %v3131 = vand.u32 2147483647, %v3067
        %v3132 = vand.u32 2147483647, %v3068
        %v3133 = vand.u32 2147483647, %v3069
        %v3134 = vand.u32 2147483647, %v3070
        %v3135 = vand.u32 2147483647, %v3071
        %v3136 = vand.u32 2147483647, %v3072
        %v3137 = vand.u32 2147483647, %v3073
        %v3138 = vand.u32 2147483647, %v3074
        %v3139 = vand.u32 2147483647, %v3075
        %v3140 = vand.u32 2147483647, %v3076
        %v3141 = vand.u32 2147483647, %v3077
        %v3142 = vand.u32 2147483647, %v3078
        %v3143 = vand.u32 2147483647, %v3079
        %v3144 = vand.u32 2147483647, %v3080
        %v3145 = vand.u32 2147483647, %v3081
        %v3146 = vand.u32 2147483647, %v3082
        %v3147 = vand.u32 2147483647, %v3083
        %v3148 = vand.u32 2147483647, %v3084
        %v3149 = vand.u32 2147483647, %v3085
        %v3150 = vand.u32 2147483647, %v3086
        %v3151 = vand.u32 2147483647, %v3087
        %v3152 = vand.u32 2147483647, %v3088
        %v3153 = vand.u32 2147483647, %v3089
        %v3154 = vand.u32 2147483647, %v3090
        %v3155 = vand.u32 2147483647, %v3091
        %v3156 = vand.u32 2147483647, %v3092
        %v3157 = vand.u32 2147483647, %v3093
        %v3158 = vand.u32 2147483647, %v3094
        %v3159 = vand.u32 2147483647, %v3095
        %v3160 = vand.u32 2147483647, %v3096
        %v3161 = vand.u32 2147483647, %v3097
        %v3162 = vand.u32 2147483647, %v3098
        %v3163 = vand.u32 2147483647, %v3099
        %v3164 = vand.u32 2147483647, %v3100
        %v3165 = vand.u32 2147483647, %v3101
        %v3166 = vand.u32 2147483647, %v3102
        %v3167 = vand.u32 2147483647, %v3103
        %v3168 = vand.u32 2147483647, %v3104
        %v3169 = vand.u32 2147483647, %v3105
        %v3170 = vand.u32 2147483647, %v3106
        %v3171 = vand.u32 2147483647, %v3107
        %v3172 = vand.u32 2147483647, %v3108
        %v3173 = vand.u32 2147483647, %v3109
        %v3174 = vand.u32 2147483647, %v3110
        %v3175 = vand.u32 2147483647, %v3111
        %v3176 = vand.u32 2147483647, %v3112
        %v3177 = vsub.f32 1.0, %v3113
        %v3178 = vsub.f32 1.0, %v3114
        %v3179 = vsub.f32 1.0, %v3115
        %v3180 = vsub.f32 1.0, %v3116
        %v3181 = vsub.f32 1.0, %v3117
        %v3182 = vsub.f32 1.0, %v3118
        %v3183 = vsub.f32 1.0, %v3119
        %v3184 = vsub.f32 1.0, %v3120
        %v3185 = vsub.f32 1.0, %v3121
        %v3186 = vsub.f32 1.0, %v3122
        %v3187 = vsub.f32 1.0, %v3123
        %v3188 = vsub.f32 1.0, %v3124
        %v3189 = vsub.f32 1.0, %v3125
        %v3190 = vsub.f32 1.0, %v3126
        %v3191 = vsub.f32 1.0, %v3127
        %v3192 = vsub.f32 1.0, %v3128
        %v3193 = vsub.f32 1.0, %v3129
        %v3194 = vsub.f32 1.0, %v3130
        %v3195 = vsub.f32 1.0, %v3131
        %v3196 = vsub.f32 1.0, %v3132
        %v3197 = vsub.f32 1.0, %v3133
        %v3198 = vsub.f32 1.0, %v3134
        %v3199 = vsub.f32 1.0, %v3135
        %v3200 = vsub.f32 1.0, %v3136
        %v3201 = vsub.f32 1.0, %v3137
        %v3202 = vsub.f32 1.0, %v3138
        %v3203 = vsub.f32 1.0, %v3139
        %v3204 = vsub.f32 1.0, %v3140
        %v3205 = vsub.f32 1.0, %v3141
        %v3206 = vsub.f32 1.0, %v3142
        %v3207 = vsub.f32 1.0, %v3143
        %v3208 = vsub.f32 1.0, %v3144
        %v3209 = vsub.f32 1.0, %v3145
        %v3210 = vsub.f32 1.0, %v3146
        %v3211 = vsub.f32 1.0, %v3147
        %v3212 = vsub.f32 1.0, %v3148
        %v3213 = vsub.f32 1.0, %v3149
        %v3214 = vsub.f32 1.0, %v3150
        %v3215 = vsub.f32 1.0, %v3151
        %v3216 = vsub.f32 1.0, %v3152
        %v3217 = vsub.f32 1.0, %v3153
        %v3218 = vsub.f32 1.0, %v3154
        %v3219 = vsub.f32 1.0, %v3155
        %v3220 = vsub.f32 1.0, %v3156
        %v3221 = vsub.f32 1.0, %v3157
        %v3222 = vsub.f32 1.0, %v3158
        %v3223 = vsub.f32 1.0, %v3159
        %v3224 = vsub.f32 1.0, %v3160
        %v3225 = vsub.f32 1.0, %v3161
        %v3226 = vsub.f32 1.0, %v3162
        %v3227 = vsub.f32 1.0, %v3163
        %v3228 = vsub.f32 1.0, %v3164
        %v3229 = vsub.f32 1.0, %v3165
        %v3230 = vsub.f32 1.0, %v3166
        %v3231 = vsub.f32 1.0, %v3167
        %v3232 = vsub.f32 1.0, %v3168
        %v3233 = vsub.f32 1.0, %v3169
        %v3234 = vsub.f32 1.0, %v3170
        %v3235 = vsub.f32 1.0, %v3171
        %v3236 = vsub.f32 1.0, %v3172
        %v3237 = vsub.f32 1.0, %v3173
        %v3238 = vsub.f32 1.0, %v3174
        %v3239 = vsub.f32 1.0, %v3175
        %v3240 = vsub.f32 1.0, %v3176
        %v3241 = vmax.f32 %v3177, 0.0
        %v3242 = vmax.f32 %v3178, 0.0
        %v3243 = vmax.f32 %v3179, 0.0
        %v3244 = vmax.f32 %v3180, 0.0
        %v3245 = vmax.f32 %v3181, 0.0
        %v3246 = vmax.f32 %v3182, 0.0
        %v3247 = vmax.f32 %v3183, 0.0
        %v3248 = vmax.f32 %v3184, 0.0
        %v3249 = vmax.f32 %v3185, 0.0
        %v3250 = vmax.f32 %v3186, 0.0
        %v3251 = vmax.f32 %v3187, 0.0
        %v3252 = vmax.f32 %v3188, 0.0
        %v3253 = vmax.f32 %v3189, 0.0
        %v3254 = vmax.f32 %v3190, 0.0
        %v3255 = vmax.f32 %v3191, 0.0
        %v3256 = vmax.f32 %v3192, 0.0
        %v3257 = vmax.f32 %v3193, 0.0
        %v3258 = vmax.f32 %v3194, 0.0
        %v3259 = vmax.f32 %v3195, 0.0
        %v3260 = vmax.f32 %v3196, 0.0
        %v3261 = vmax.f32 %v3197, 0.0
        %v3262 = vmax.f32 %v3198, 0.0
        %v3263 = vmax.f32 %v3199, 0.0
        %v3264 = vmax.f32 %v3200, 0.0
        %v3265 = vmax.f32 %v3201, 0.0
        %v3266 = vmax.f32 %v3202, 0.0
        %v3267 = vmax.f32 %v3203, 0.0
        %v3268 = vmax.f32 %v3204, 0.0
        %v3269 = vmax.f32 %v3205, 0.0
        %v3270 = vmax.f32 %v3206, 0.0
        %v3271 = vmax.f32 %v3207, 0.0
        %v3272 = vmax.f32 %v3208, 0.0
        %v3273 = vmax.f32 %v3209, 0.0
        %v3274 = vmax.f32 %v3210, 0.0
        %v3275 = vmax.f32 %v3211, 0.0
        %v3276 = vmax.f32 %v3212, 0.0
        %v3277 = vmax.f32 %v3213, 0.0
        %v3278 = vmax.f32 %v3214, 0.0
        %v3279 = vmax.f32 %v3215, 0.0
        %v3280 = vmax.f32 %v3216, 0.0
        %v3281 = vmax.f32 %v3217, 0.0
        %v3282 = vmax.f32 %v3218, 0.0
        %v3283 = vmax.f32 %v3219, 0.0
        %v3284 = vmax.f32 %v3220, 0.0
        %v3285 = vmax.f32 %v3221, 0.0
        %v3286 = vmax.f32 %v3222, 0.0
        %v3287 = vmax.f32 %v3223, 0.0
        %v3288 = vmax.f32 %v3224, 0.0
        %v3289 = vmax.f32 %v3225, 0.0
        %v3290 = vmax.f32 %v3226, 0.0
        %v3291 = vmax.f32 %v3227, 0.0
        %v3292 = vmax.f32 %v3228, 0.0
        %v3293 = vmax.f32 %v3229, 0.0
        %v3294 = vmax.f32 %v3230, 0.0
        %v3295 = vmax.f32 %v3231, 0.0
        %v3296 = vmax.f32 %v3232, 0.0
        %v3297 = vmax.f32 %v3233, 0.0
        %v3298 = vmax.f32 %v3234, 0.0
        %v3299 = vmax.f32 %v3235, 0.0
        %v3300 = vmax.f32 %v3236, 0.0
        %v3301 = vmax.f32 %v3237, 0.0
        %v3302 = vmax.f32 %v3238, 0.0
        %v3303 = vmax.f32 %v3239, 0.0
        %v3304 = vmax.f32 %v3240, 0.0
        %v3305 = vsub.f32 %v3017, %v1427
        %v3306 = vsub.f32 %v3017, %v1431
        %v3307 = vsub.f32 %v3018, %v1427
        %v3308 = vsub.f32 %v3018, %v1431
        %v3309 = vsub.f32 %v3019, %v1427
        %v3310 = vsub.f32 %v3019, %v1431
        %v3311 = vsub.f32 %v3020, %v1427
        %v3312 = vsub.f32 %v3020, %v1431
        %v3313 = vsub.f32 %v3021, %v1427
        %v3314 = vsub.f32 %v3021, %v1431
        %v3315 = vsub.f32 %v3022, %v1427
        %v3316 = vsub.f32 %v3022, %v1431
        %v3317 = vsub.f32 %v3023, %v1427
        %v3318 = vsub.f32 %v3023, %v1431
        %v3319 = vsub.f32 %v3024, %v1427
        %v3320 = vsub.f32 %v3024, %v1431
        %v3321 = vsub.f32 %v3025, %v1427
        %v3322 = vsub.f32 %v3025, %v1431
        %v3323 = vsub.f32 %v3026, %v1427
        %v3324 = vsub.f32 %v3026, %v1431
        %v3325 = vsub.f32 %v3027, %v1427
        %v3326 = vsub.f32 %v3027, %v1431
        %v3327 = vsub.f32 %v3028, %v1427
        %v3328 = vsub.f32 %v3028, %v1431
        %v3329 = vsub.f32 %v3029, %v1427
        %v3330 = vsub.f32 %v3029, %v1431
        %v3331 = vsub.f32 %v3030, %v1427
        %v3332 = vsub.f32 %v3030, %v1431
        %v3333 = vsub.f32 %v3031, %v1427
        %v3334 = vsub.f32 %v3031, %v1431
        %v3335 = vsub.f32 %v3032, %v1427
        %v3336 = vsub.f32 %v3032, %v1431
        %v3337 = vsub.f32 %v3033, %v1427
        %v3338 = vsub.f32 %v3033, %v1431
        %v3339 = vsub.f32 %v3034, %v1427
        %v3340 = vsub.f32 %v3034, %v1431
        %v3341 = vsub.f32 %v3035, %v1427
        %v3342 = vsub.f32 %v3035, %v1431
        %v3343 = vsub.f32 %v3036, %v1427
        %v3344 = vsub.f32 %v3036, %v1431
        %v3345 = vsub.f32 %v3037, %v1427
        %v3346 = vsub.f32 %v3037, %v1431
        %v3347 = vsub.f32 %v3038, %v1427
        %v3348 = vsub.f32 %v3038, %v1431
        %v3349 = vsub.f32 %v3039, %v1427
        %v3350 = vsub.f32 %v3039, %v1431
        %v3351 = vsub.f32 %v3040, %v1427
        %v3352 = vsub.f32 %v3040, %v1431
        %v3353 = vsub.f32 %v3041, %v1427
        %v3354 = vsub.f32 %v3041, %v1431
        %v3355 = vsub.f32 %v3042, %v1427
        %v3356 = vsub.f32 %v3042, %v1431
        %v3357 = vsub.f32 %v3043, %v1427
        %v3358 = vsub.f32 %v3043, %v1431
        %v3359 = vsub.f32 %v3044, %v1427
        %v3360 = vsub.f32 %v3044, %v1431
        %v3361 = vsub.f32 %v3045, %v1427
        %v3362 = vsub.f32 %v3045, %v1431
        %v3363 = vsub.f32 %v3046, %v1427
        %v3364 = vsub.f32 %v3046, %v1431
        %v3365 = vsub.f32 %v3047, %v1427
        %v3366 = vsub.f32 %v3047, %v1431
        %v3367 = vsub.f32 %v3048, %v1427
        %v3368 = vsub.f32 %v3048, %v1431
        %v3369 = vand.u32 2147483647, %v3305
        %v3370 = vand.u32 2147483647, %v3306
        %v3371 = vand.u32 2147483647, %v3307
        %v3372 = vand.u32 2147483647, %v3308
        %v3373 = vand.u32 2147483647, %v3309
        %v3374 = vand.u32 2147483647, %v3310
        %v3375 = vand.u32 2147483647, %v3311
        %v3376 = vand.u32 2147483647, %v3312
        %v3377 = vand.u32 2147483647, %v3313
        %v3378 = vand.u32 2147483647, %v3314
        %v3379 = vand.u32 2147483647, %v3315
        %v3380 = vand.u32 2147483647, %v3316
        %v3381 = vand.u32 2147483647, %v3317
        %v3382 = vand.u32 2147483647, %v3318
        %v3383 = vand.u32 2147483647, %v3319
        %v3384 = vand.u32 2147483647, %v3320
        %v3385 = vand.u32 2147483647, %v3321
        %v3386 = vand.u32 2147483647, %v3322
        %v3387 = vand.u32 2147483647, %v3323
        %v3388 = vand.u32 2147483647, %v3324
        %v3389 = vand.u32 2147483647, %v3325
        %v3390 = vand.u32 2147483647, %v3326
        %v3391 = vand.u32 2147483647, %v3327
        %v3392 = vand.u32 2147483647, %v3328
        %v3393 = vand.u32 2147483647, %v3329
        %v3394 = vand.u32 2147483647, %v3330
        %v3395 = vand.u32 2147483647, %v3331
        %v3396 = vand.u32 2147483647, %v3332
        %v3397 = vand.u32 2147483647, %v3333
        %v3398 = vand.u32 2147483647, %v3334
        %v3399 = vand.u32 2147483647, %v3335
        %v3400 = vand.u32 2147483647, %v3336
        %v3401 = vand.u32 2147483647, %v3337
        %v3402 = vand.u32 2147483647, %v3338
        %v3403 = vand.u32 2147483647, %v3339
        %v3404 = vand.u32 2147483647, %v3340
        %v3405 = vand.u32 2147483647, %v3341
        %v3406 = vand.u32 2147483647, %v3342
        %v3407 = vand.u32 2147483647, %v3343
        %v3408 = vand.u32 2147483647, %v3344
        %v3409 = vand.u32 2147483647, %v3345
        %v3410 = vand.u32 2147483647, %v3346
        %v3411 = vand.u32 2147483647, %v3347
        %v3412 = vand.u32 2147483647, %v3348
        %v3413 = vand.u32 2147483647, %v3349
        %v3414 = vand.u32 2147483647, %v3350
        %v3415 = vand.u32 2147483647, %v3351
        %v3416 = vand.u32 2147483647, %v3352
        %v3417 = vand.u32 2147483647, %v3353
        %v3418 = vand.u32 2147483647, %v3354
        %v3419 = vand.u32 2147483647, %v3355
        %v3420 = vand.u32 2147483647, %v3356
        %v3421 = vand.u32 2147483647, %v3357
        %v3422 = vand.u32 2147483647, %v3358
        %v3423 = vand.u32 2147483647, %v3359
        %v3424 = vand.u32 2147483647, %v3360
        %v3425 = vand.u32 2147483647, %v3361
        %v3426 = vand.u32 2147483647, %v3362
        %v3427 = vand.u32 2147483647, %v3363
        %v3428 = vand.u32 2147483647, %v3364
        %v3429 = vand.u32 2147483647, %v3365
        %v3430 = vand.u32 2147483647, %v3366
        %v3431 = vand.u32 2147483647, %v3367
        %v3432 = vand.u32 2147483647, %v3368
        %v3433 = vsub.f32 1.0, %v3369
        %v3434 = vsub.f32 1.0, %v3370
        %v3435 = vsub.f32 1.0, %v3371
        %v3436 = vsub.f32 1.0, %v3372
        %v3437 = vsub.f32 1.0, %v3373
        %v3438 = vsub.f32 1.0, %v3374
        %v3439 = vsub.f32 1.0, %v3375
        %v3440 = vsub.f32 1.0, %v3376
        %v3441 = vsub.f32 1.0, %v3377
        %v3442 = vsub.f32 1.0, %v3378
        %v3443 = vsub.f32 1.0, %v3379
        %v3444 = vsub.f32 1.0, %v3380
        %v3445 = vsub.f32 1.0, %v3381
        %v3446 = vsub.f32 1.0, %v3382
        %v3447 = vsub.f32 1.0, %v3383
        %v3448 = vsub.f32 1.0, %v3384
        %v3449 = vsub.f32 1.0, %v3385
        %v3450 = vsub.f32 1.0, %v3386
        %v3451 = vsub.f32 1.0, %v3387
        %v3452 = vsub.f32 1.0, %v3388
        %v3453 = vsub.f32 1.0, %v3389
        %v3454 = vsub.f32 1.0, %v3390
        %v3455 = vsub.f32 1.0, %v3391
        %v3456 = vsub.f32 1.0, %v3392
        %v3457 = vsub.f32 1.0, %v3393
        %v3458 = vsub.f32 1.0, %v3394
        %v3459 = vsub.f32 1.0, %v3395
        %v3460 = vsub.f32 1.0, %v3396
        %v3461 = vsub.f32 1.0, %v3397
        %v3462 = vsub.f32 1.0, %v3398
        %v3463 = vsub.f32 1.0, %v3399
        %v3464 = vsub.f32 1.0, %v3400
        %v3465 = vsub.f32 1.0, %v3401
        %v3466 = vsub.f32 1.0, %v3402
        %v3467 = vsub.f32 1.0, %v3403
        %v3468 = vsub.f32 1.0, %v3404
        %v3469 = vsub.f32 1.0, %v3405
        %v3470 = vsub.f32 1.0, %v3406
        %v3471 = vsub.f32 1.0, %v3407
        %v3472 = vsub.f32 1.0, %v3408
        %v3473 = vsub.f32 1.0, %v3409
        %v3474 = vsub.f32 1.0, %v3410
        %v3475 = vsub.f32 1.0, %v3411
        %v3476 = vsub.f32 1.0, %v3412
        %v3477 = vsub.f32 1.0, %v3413
        %v3478 = vsub.f32 1.0, %v3414
        %v3479 = vsub.f32 1.0, %v3415
        %v3480 = vsub.f32 1.0, %v3416
        %v3481 = vsub.f32 1.0, %v3417
        %v3482 = vsub.f32 1.0, %v3418
        %v3483 = vsub.f32 1.0, %v3419
        %v3484 = vsub.f32 1.0, %v3420
        %v3485 = vsub.f32 1.0, %v3421
        %v3486 = vsub.f32 1.0, %v3422
        %v3487 = vsub.f32 1.0, %v3423
        %v3488 = vsub.f32 1.0, %v3424
        %v3489 = vsub.f32 1.0, %v3425
        %v3490 = vsub.f32 1.0, %v3426
        %v3491 = vsub.f32 1.0, %v3427
        %v3492 = vsub.f32 1.0, %v3428
        %v3493 = vsub.f32 1.0, %v3429
        %v3494 = vsub.f32 1.0, %v3430
        %v3495 = vsub.f32 1.0, %v3431
        %v3496 = vsub.f32 1.0, %v3432
        %v3497 = vmax.f32 %v3433, 0.0
        %v3498 = vmax.f32 %v3434, 0.0
        %v3499 = vmax.f32 %v3435, 0.0
        %v3500 = vmax.f32 %v3436, 0.0
        %v3501 = vmax.f32 %v3437, 0.0
        %v3502 = vmax.f32 %v3438, 0.0
        %v3503 = vmax.f32 %v3439, 0.0
        %v3504 = vmax.f32 %v3440, 0.0
        %v3505 = vmax.f32 %v3441, 0.0
        %v3506 = vmax.f32 %v3442, 0.0
        %v3507 = vmax.f32 %v3443, 0.0
        %v3508 = vmax.f32 %v3444, 0.0
        %v3509 = vmax.f32 %v3445, 0.0
        %v3510 = vmax.f32 %v3446, 0.0
        %v3511 = vmax.f32 %v3447, 0.0
        %v3512 = vmax.f32 %v3448, 0.0
        %v3513 = vmax.f32 %v3449, 0.0
        %v3514 = vmax.f32 %v3450, 0.0
        %v3515 = vmax.f32 %v3451, 0.0
        %v3516 = vmax.f32 %v3452, 0.0
        %v3517 = vmax.f32 %v3453, 0.0
        %v3518 = vmax.f32 %v3454, 0.0
        %v3519 = vmax.f32 %v3455, 0.0
        %v3520 = vmax.f32 %v3456, 0.0
        %v3521 = vmax.f32 %v3457, 0.0
        %v3522 = vmax.f32 %v3458, 0.0
        %v3523 = vmax.f32 %v3459, 0.0
        %v3524 = vmax.f32 %v3460, 0.0
        %v3525 = vmax.f32 %v3461, 0.0
        %v3526 = vmax.f32 %v3462, 0.0
        %v3527 = vmax.f32 %v3463, 0.0
        %v3528 = vmax.f32 %v3464, 0.0
        %v3529 = vmax.f32 %v3465, 0.0
        %v3530 = vmax.f32 %v3466, 0.0
        %v3531 = vmax.f32 %v3467, 0.0
        %v3532 = vmax.f32 %v3468, 0.0
        %v3533 = vmax.f32 %v3469, 0.0
        %v3534 = vmax.f32 %v3470, 0.0
        %v3535 = vmax.f32 %v3471, 0.0
        %v3536 = vmax.f32 %v3472, 0.0
        %v3537 = vmax.f32 %v3473, 0.0
        %v3538 = vmax.f32 %v3474, 0.0
        %v3539 = vmax.f32 %v3475, 0.0
        %v3540 = vmax.f32 %v3476, 0.0
        %v3541 = vmax.f32 %v3477, 0.0
        %v3542 = vmax.f32 %v3478, 0.0
        %v3543 = vmax.f32 %v3479, 0.0
        %v3544 = vmax.f32 %v3480, 0.0
        %v3545 = vmax.f32 %v3481, 0.0
        %v3546 = vmax.f32 %v3482, 0.0
        %v3547 = vmax.f32 %v3483, 0.0
        %v3548 = vmax.f32 %v3484, 0.0
        %v3549 = vmax.f32 %v3485, 0.0
        %v3550 = vmax.f32 %v3486, 0.0
        %v3551 = vmax.f32 %v3487, 0.0
        %v3552 = vmax.f32 %v3488, 0.0
        %v3553 = vmax.f32 %v3489, 0.0
        %v3554 = vmax.f32 %v3490, 0.0
        %v3555 = vmax.f32 %v3491, 0.0
        %v3556 = vmax.f32 %v3492, 0.0
        %v3557 = vmax.f32 %v3493, 0.0
        %v3558 = vmax.f32 %v3494, 0.0
        %v3559 = vmax.f32 %v3495, 0.0
        %v3560 = vmax.f32 %v3496, 0.0
        %v3561 = vmul.f32 %v3241, %v3497
        %v3562 = vmul.f32 %v3242, %v3498
        %v3563 = vmul.f32 %v3243, %v3499
        %v3564 = vmul.f32 %v3244, %v3500
        %v3565 = vmul.f32 %v3245, %v3501
        %v3566 = vmul.f32 %v3246, %v3502
        %v3567 = vmul.f32 %v3247, %v3503
        %v3568 = vmul.f32 %v3248, %v3504
        %v3569 = vmul.f32 %v3249, %v3505
        %v3570 = vmul.f32 %v3250, %v3506
        %v3571 = vmul.f32 %v3251, %v3507
        %v3572 = vmul.f32 %v3252, %v3508
        %v3573 = vmul.f32 %v3253, %v3509
        %v3574 = vmul.f32 %v3254, %v3510
        %v3575 = vmul.f32 %v3255, %v3511
        %v3576 = vmul.f32 %v3256, %v3512
        %v3577 = vmul.f32 %v3257, %v3513
        %v3578 = vmul.f32 %v3258, %v3514
        %v3579 = vmul.f32 %v3259, %v3515
        %v3580 = vmul.f32 %v3260, %v3516
        %v3581 = vmul.f32 %v3261, %v3517
        %v3582 = vmul.f32 %v3262, %v3518
        %v3583 = vmul.f32 %v3263, %v3519
        %v3584 = vmul.f32 %v3264, %v3520
        %v3585 = vmul.f32 %v3265, %v3521
        %v3586 = vmul.f32 %v3266, %v3522
        %v3587 = vmul.f32 %v3267, %v3523
        %v3588 = vmul.f32 %v3268, %v3524
        %v3589 = vmul.f32 %v3269, %v3525
        %v3590 = vmul.f32 %v3270, %v3526
        %v3591 = vmul.f32 %v3271, %v3527
        %v3592 = vmul.f32 %v3272, %v3528
        %v3593 = vmul.f32 %v3273, %v3529
        %v3594 = vmul.f32 %v3274, %v3530
        %v3595 = vmul.f32 %v3275, %v3531
        %v3596 = vmul.f32 %v3276, %v3532
        %v3597 = vmul.f32 %v3277, %v3533
        %v3598 = vmul.f32 %v3278, %v3534
        %v3599 = vmul.f32 %v3279, %v3535
        %v3600 = vmul.f32 %v3280, %v3536
        %v3601 = vmul.f32 %v3281, %v3537
        %v3602 = vmul.f32 %v3282, %v3538
        %v3603 = vmul.f32 %v3283, %v3539
        %v3604 = vmul.f32 %v3284, %v3540
        %v3605 = vmul.f32 %v3285, %v3541
        %v3606 = vmul.f32 %v3286, %v3542
        %v3607 = vmul.f32 %v3287, %v3543
        %v3608 = vmul.f32 %v3288, %v3544
        %v3609 = vmul.f32 %v3289, %v3545
        %v3610 = vmul.f32 %v3290, %v3546
        %v3611 = vmul.f32 %v3291, %v3547
        %v3612 = vmul.f32 %v3292, %v3548
        %v3613 = vmul.f32 %v3293, %v3549
        %v3614 = vmul.f32 %v3294, %v3550
        %v3615 = vmul.f32 %v3295, %v3551
        %v3616 = vmul.f32 %v3296, %v3552
        %v3617 = vmul.f32 %v3297, %v3553
        %v3618 = vmul.f32 %v3298, %v3554
        %v3619 = vmul.f32 %v3299, %v3555
        %v3620 = vmul.f32 %v3300, %v3556
        %v3621 = vmul.f32 %v3301, %v3557
        %v3622 = vmul.f32 %v3302, %v3558
        %v3623 = vmul.f32 %v3303, %v3559
        %v3624 = vmul.f32 %v3304, %v3560
        %v3625 = vsub.f32 %v2953, %v1758
        %v3626 = vsub.f32 %v2953, %v1762
        %v3627 = vsub.f32 %v2954, %v1758
        %v3628 = vsub.f32 %v2954, %v1762
        %v3629 = vsub.f32 %v2955, %v1758
        %v3630 = vsub.f32 %v2955, %v1762
        %v3631 = vsub.f32 %v2956, %v1758
        %v3632 = vsub.f32 %v2956, %v1762
        %v3633 = vsub.f32 %v2957, %v1758
        %v3634 = vsub.f32 %v2957, %v1762
        %v3635 = vsub.f32 %v2958, %v1758
        %v3636 = vsub.f32 %v2958, %v1762
        %v3637 = vsub.f32 %v2959, %v1758
        %v3638 = vsub.f32 %v2959, %v1762
        %v3639 = vsub.f32 %v2960, %v1758
        %v3640 = vsub.f32 %v2960, %v1762
        %v3641 = vsub.f32 %v2961, %v1758
        %v3642 = vsub.f32 %v2961, %v1762
        %v3643 = vsub.f32 %v2962, %v1758
        %v3644 = vsub.f32 %v2962, %v1762
        %v3645 = vsub.f32 %v2963, %v1758
        %v3646 = vsub.f32 %v2963, %v1762
        %v3647 = vsub.f32 %v2964, %v1758
        %v3648 = vsub.f32 %v2964, %v1762
        %v3649 = vsub.f32 %v2965, %v1758
        %v3650 = vsub.f32 %v2965, %v1762
        %v3651 = vsub.f32 %v2966, %v1758
        %v3652 = vsub.f32 %v2966, %v1762
        %v3653 = vsub.f32 %v2967, %v1758
        %v3654 = vsub.f32 %v2967, %v1762
        %v3655 = vsub.f32 %v2968, %v1758
        %v3656 = vsub.f32 %v2968, %v1762
        %v3657 = vsub.f32 %v2969, %v1758
        %v3658 = vsub.f32 %v2969, %v1762
        %v3659 = vsub.f32 %v2970, %v1758
        %v3660 = vsub.f32 %v2970, %v1762
        %v3661 = vsub.f32 %v2971, %v1758
        %v3662 = vsub.f32 %v2971, %v1762
        %v3663 = vsub.f32 %v2972, %v1758
        %v3664 = vsub.f32 %v2972, %v1762
        %v3665 = vsub.f32 %v2973, %v1758
        %v3666 = vsub.f32 %v2973, %v1762
        %v3667 = vsub.f32 %v2974, %v1758
        %v3668 = vsub.f32 %v2974, %v1762
        %v3669 = vsub.f32 %v2975, %v1758
        %v3670 = vsub.f32 %v2975, %v1762
        %v3671 = vsub.f32 %v2976, %v1758
        %v3672 = vsub.f32 %v2976, %v1762
        %v3673 = vsub.f32 %v2977, %v1758
        %v3674 = vsub.f32 %v2977, %v1762
        %v3675 = vsub.f32 %v2978, %v1758
        %v3676 = vsub.f32 %v2978, %v1762
        %v3677 = vsub.f32 %v2979, %v1758
        %v3678 = vsub.f32 %v2979, %v1762
        %v3679 = vsub.f32 %v2980, %v1758
        %v3680 = vsub.f32 %v2980, %v1762
        %v3681 = vsub.f32 %v2981, %v1758
        %v3682 = vsub.f32 %v2981, %v1762
        %v3683 = vsub.f32 %v2982, %v1758
        %v3684 = vsub.f32 %v2982, %v1762
        %v3685 = vsub.f32 %v2983, %v1758
        %v3686 = vsub.f32 %v2983, %v1762
        %v3687 = vsub.f32 %v2984, %v1758
        %v3688 = vsub.f32 %v2984, %v1762
        %v3689 = vand.u32 2147483647, %v3625
        %v3690 = vand.u32 2147483647, %v3626
        %v3691 = vand.u32 2147483647, %v3627
        %v3692 = vand.u32 2147483647, %v3628
        %v3693 = vand.u32 2147483647, %v3629
        %v3694 = vand.u32 2147483647, %v3630
        %v3695 = vand.u32 2147483647, %v3631
        %v3696 = vand.u32 2147483647, %v3632
        %v3697 = vand.u32 2147483647, %v3633
        %v3698 = vand.u32 2147483647, %v3634
        %v3699 = vand.u32 2147483647, %v3635
        %v3700 = vand.u32 2147483647, %v3636
        %v3701 = vand.u32 2147483647, %v3637
        %v3702 = vand.u32 2147483647, %v3638
        %v3703 = vand.u32 2147483647, %v3639
        %v3704 = vand.u32 2147483647, %v3640
        %v3705 = vand.u32 2147483647, %v3641
        %v3706 = vand.u32 2147483647, %v3642
        %v3707 = vand.u32 2147483647, %v3643
        %v3708 = vand.u32 2147483647, %v3644
        %v3709 = vand.u32 2147483647, %v3645
        %v3710 = vand.u32 2147483647, %v3646
        %v3711 = vand.u32 2147483647, %v3647
        %v3712 = vand.u32 2147483647, %v3648
        %v3713 = vand.u32 2147483647, %v3649
        %v3714 = vand.u32 2147483647, %v3650
        %v3715 = vand.u32 2147483647, %v3651
        %v3716 = vand.u32 2147483647, %v3652
        %v3717 = vand.u32 2147483647, %v3653
        %v3718 = vand.u32 2147483647, %v3654
        %v3719 = vand.u32 2147483647, %v3655
        %v3720 = vand.u32 2147483647, %v3656
        %v3721 = vand.u32 2147483647, %v3657
        %v3722 = vand.u32 2147483647, %v3658
        %v3723 = vand.u32 2147483647, %v3659
        %v3724 = vand.u32 2147483647, %v3660
        %v3725 = vand.u32 2147483647, %v3661
        %v3726 = vand.u32 2147483647, %v3662
        %v3727 = vand.u32 2147483647, %v3663
        %v3728 = vand.u32 2147483647, %v3664
        %v3729 = vand.u32 2147483647, %v3665
        %v3730 = vand.u32 2147483647, %v3666
        %v3731 = vand.u32 2147483647, %v3667
        %v3732 = vand.u32 2147483647, %v3668
        %v3733 = vand.u32 2147483647, %v3669
        %v3734 = vand.u32 2147483647, %v3670
        %v3735 = vand.u32 2147483647, %v3671
        %v3736 = vand.u32 2147483647, %v3672
        %v3737 = vand.u32 2147483647, %v3673
        %v3738 = vand.u32 2147483647, %v3674
        %v3739 = vand.u32 2147483647, %v3675
        %v3740 = vand.u32 2147483647, %v3676
        %v3741 = vand.u32 2147483647, %v3677
        %v3742 = vand.u32 2147483647, %v3678
        %v3743 = vand.u32 2147483647, %v3679
        %v3744 = vand.u32 2147483647, %v3680
        %v3745 = vand.u32 2147483647, %v3681
        %v3746 = vand.u32 2147483647, %v3682
        %v3747 = vand.u32 2147483647, %v3683
        %v3748 = vand.u32 2147483647, %v3684
        %v3749 = vand.u32 2147483647, %v3685
        %v3750 = vand.u32 2147483647, %v3686
        %v3751 = vand.u32 2147483647, %v3687
        %v3752 = vand.u32 2147483647, %v3688
        %v3753 = vsub.f32 1.0, %v3689
        %v3754 = vsub.f32 1.0, %v3690
        %v3755 = vsub.f32 1.0, %v3691
        %v3756 = vsub.f32 1.0, %v3692
        %v3757 = vsub.f32 1.0, %v3693
        %v3758 = vsub.f32 1.0, %v3694
        %v3759 = vsub.f32 1.0, %v3695
        %v3760 = vsub.f32 1.0, %v3696
        %v3761 = vsub.f32 1.0, %v3697
        %v3762 = vsub.f32 1.0, %v3698
        %v3763 = vsub.f32 1.0, %v3699
        %v3764 = vsub.f32 1.0, %v3700
        %v3765 = vsub.f32 1.0, %v3701
        %v3766 = vsub.f32 1.0, %v3702
        %v3767 = vsub.f32 1.0, %v3703
        %v3768 = vsub.f32 1.0, %v3704
        %v3769 = vsub.f32 1.0, %v3705
        %v3770 = vsub.f32 1.0, %v3706
        %v3771 = vsub.f32 1.0, %v3707
        %v3772 = vsub.f32 1.0, %v3708
        %v3773 = vsub.f32 1.0, %v3709
        %v3774 = vsub.f32 1.0, %v3710
        %v3775 = vsub.f32 1.0, %v3711
        %v3776 = vsub.f32 1.0, %v3712
        %v3777 = vsub.f32 1.0, %v3713
        %v3778 = vsub.f32 1.0, %v3714
        %v3779 = vsub.f32 1.0, %v3715
        %v3780 = vsub.f32 1.0, %v3716
        %v3781 = vsub.f32 1.0, %v3717
        %v3782 = vsub.f32 1.0, %v3718
        %v3783 = vsub.f32 1.0, %v3719
        %v3784 = vsub.f32 1.0, %v3720
        %v3785 = vsub.f32 1.0, %v3721
        %v3786 = vsub.f32 1.0, %v3722
        %v3787 = vsub.f32 1.0, %v3723
        %v3788 = vsub.f32 1.0, %v3724
        %v3789 = vsub.f32 1.0, %v3725
        %v3790 = vsub.f32 1.0, %v3726
        %v3791 = vsub.f32 1.0, %v3727
        %v3792 = vsub.f32 1.0, %v3728
        %v3793 = vsub.f32 1.0, %v3729
        %v3794 = vsub.f32 1.0, %v3730
        %v3795 = vsub.f32 1.0, %v3731
        %v3796 = vsub.f32 1.0, %v3732
        %v3797 = vsub.f32 1.0, %v3733
        %v3798 = vsub.f32 1.0, %v3734
        %v3799 = vsub.f32 1.0, %v3735
        %v3800 = vsub.f32 1.0, %v3736
        %v3801 = vsub.f32 1.0, %v3737
        %v3802 = vsub.f32 1.0, %v3738
        %v3803 = vsub.f32 1.0, %v3739
        %v3804 = vsub.f32 1.0, %v3740
        %v3805 = vsub.f32 1.0, %v3741
        %v3806 = vsub.f32 1.0, %v3742
        %v3807 = vsub.f32 1.0, %v3743
        %v3808 = vsub.f32 1.0, %v3744
        %v3809 = vsub.f32 1.0, %v3745
        %v3810 = vsub.f32 1.0, %v3746
        %v3811 = vsub.f32 1.0, %v3747
        %v3812 = vsub.f32 1.0, %v3748
        %v3813 = vsub.f32 1.0, %v3749
        %v3814 = vsub.f32 1.0, %v3750
        %v3815 = vsub.f32 1.0, %v3751
        %v3816 = vsub.f32 1.0, %v3752
        %v3817 = vmax.f32 %v3753, 0.0
        %v3818 = vmax.f32 %v3754, 0.0
        %v3819 = vmax.f32 %v3755, 0.0
        %v3820 = vmax.f32 %v3756, 0.0
        %v3821 = vmax.f32 %v3757, 0.0
        %v3822 = vmax.f32 %v3758, 0.0
        %v3823 = vmax.f32 %v3759, 0.0
        %v3824 = vmax.f32 %v3760, 0.0
        %v3825 = vmax.f32 %v3761, 0.0
        %v3826 = vmax.f32 %v3762, 0.0
        %v3827 = vmax.f32 %v3763, 0.0
        %v3828 = vmax.f32 %v3764, 0.0
        %v3829 = vmax.f32 %v3765, 0.0
        %v3830 = vmax.f32 %v3766, 0.0
        %v3831 = vmax.f32 %v3767, 0.0
        %v3832 = vmax.f32 %v3768, 0.0
        %v3833 = vmax.f32 %v3769, 0.0
        %v3834 = vmax.f32 %v3770, 0.0
        %v3835 = vmax.f32 %v3771, 0.0
        %v3836 = vmax.f32 %v3772, 0.0
        %v3837 = vmax.f32 %v3773, 0.0
        %v3838 = vmax.f32 %v3774, 0.0
        %v3839 = vmax.f32 %v3775, 0.0
        %v3840 = vmax.f32 %v3776, 0.0
        %v3841 = vmax.f32 %v3777, 0.0
        %v3842 = vmax.f32 %v3778, 0.0
        %v3843 = vmax.f32 %v3779, 0.0
        %v3844 = vmax.f32 %v3780, 0.0
        %v3845 = vmax.f32 %v3781, 0.0
        %v3846 = vmax.f32 %v3782, 0.0
        %v3847 = vmax.f32 %v3783, 0.0
        %v3848 = vmax.f32 %v3784, 0.0
        %v3849 = vmax.f32 %v3785, 0.0
        %v3850 = vmax.f32 %v3786, 0.0
        %v3851 = vmax.f32 %v3787, 0.0
        %v3852 = vmax.f32 %v3788, 0.0
        %v3853 = vmax.f32 %v3789, 0.0
        %v3854 = vmax.f32 %v3790, 0.0
        %v3855 = vmax.f32 %v3791, 0.0
        %v3856 = vmax.f32 %v3792, 0.0
        %v3857 = vmax.f32 %v3793, 0.0
        %v3858 = vmax.f32 %v3794, 0.0
        %v3859 = vmax.f32 %v3795, 0.0
        %v3860 = vmax.f32 %v3796, 0.0
        %v3861 = vmax.f32 %v3797, 0.0
        %v3862 = vmax.f32 %v3798, 0.0
        %v3863 = vmax.f32 %v3799, 0.0
        %v3864 = vmax.f32 %v3800, 0.0
        %v3865 = vmax.f32 %v3801, 0.0
        %v3866 = vmax.f32 %v3802, 0.0
        %v3867 = vmax.f32 %v3803, 0.0
        %v3868 = vmax.f32 %v3804, 0.0
        %v3869 = vmax.f32 %v3805, 0.0
        %v3870 = vmax.f32 %v3806, 0.0
        %v3871 = vmax.f32 %v3807, 0.0
        %v3872 = vmax.f32 %v3808, 0.0
        %v3873 = vmax.f32 %v3809, 0.0
        %v3874 = vmax.f32 %v3810, 0.0
        %v3875 = vmax.f32 %v3811, 0.0
        %v3876 = vmax.f32 %v3812, 0.0
        %v3877 = vmax.f32 %v3813, 0.0
        %v3878 = vmax.f32 %v3814, 0.0
        %v3879 = vmax.f32 %v3815, 0.0
        %v3880 = vmax.f32 %v3816, 0.0
        %v3881 = vmul.f32 %v3561, %v3817
        %v3882 = vmul.f32 %v3562, %v3818
        %v3883 = vmul.f32 %v3563, %v3819
        %v3884 = vmul.f32 %v3564, %v3820
        %v3885 = vmul.f32 %v3565, %v3821
        %v3886 = vmul.f32 %v3566, %v3822
        %v3887 = vmul.f32 %v3567, %v3823
        %v3888 = vmul.f32 %v3568, %v3824
        %v3889 = vmul.f32 %v3569, %v3825
        %v3890 = vmul.f32 %v3570, %v3826
        %v3891 = vmul.f32 %v3571, %v3827
        %v3892 = vmul.f32 %v3572, %v3828
        %v3893 = vmul.f32 %v3573, %v3829
        %v3894 = vmul.f32 %v3574, %v3830
        %v3895 = vmul.f32 %v3575, %v3831
        %v3896 = vmul.f32 %v3576, %v3832
        %v3897 = vmul.f32 %v3577, %v3833
        %v3898 = vmul.f32 %v3578, %v3834
        %v3899 = vmul.f32 %v3579, %v3835
        %v3900 = vmul.f32 %v3580, %v3836
        %v3901 = vmul.f32 %v3581, %v3837
        %v3902 = vmul.f32 %v3582, %v3838
        %v3903 = vmul.f32 %v3583, %v3839
        %v3904 = vmul.f32 %v3584, %v3840
        %v3905 = vmul.f32 %v3585, %v3841
        %v3906 = vmul.f32 %v3586, %v3842
        %v3907 = vmul.f32 %v3587, %v3843
        %v3908 = vmul.f32 %v3588, %v3844
        %v3909 = vmul.f32 %v3589, %v3845
        %v3910 = vmul.f32 %v3590, %v3846
        %v3911 = vmul.f32 %v3591, %v3847
        %v3912 = vmul.f32 %v3592, %v3848
        %v3913 = vmul.f32 %v3593, %v3849
        %v3914 = vmul.f32 %v3594, %v3850
        %v3915 = vmul.f32 %v3595, %v3851
        %v3916 = vmul.f32 %v3596, %v3852
        %v3917 = vmul.f32 %v3597, %v3853
        %v3918 = vmul.f32 %v3598, %v3854
        %v3919 = vmul.f32 %v3599, %v3855
        %v3920 = vmul.f32 %v3600, %v3856
        %v3921 = vmul.f32 %v3601, %v3857
        %v3922 = vmul.f32 %v3602, %v3858
        %v3923 = vmul.f32 %v3603, %v3859
        %v3924 = vmul.f32 %v3604, %v3860
        %v3925 = vmul.f32 %v3605, %v3861
        %v3926 = vmul.f32 %v3606, %v3862
        %v3927 = vmul.f32 %v3607, %v3863
        %v3928 = vmul.f32 %v3608, %v3864
        %v3929 = vmul.f32 %v3609, %v3865
        %v3930 = vmul.f32 %v3610, %v3866
        %v3931 = vmul.f32 %v3611, %v3867
        %v3932 = vmul.f32 %v3612, %v3868
        %v3933 = vmul.f32 %v3613, %v3869
        %v3934 = vmul.f32 %v3614, %v3870
        %v3935 = vmul.f32 %v3615, %v3871
        %v3936 = vmul.f32 %v3616, %v3872
        %v3937 = vmul.f32 %v3617, %v3873
        %v3938 = vmul.f32 %v3618, %v3874
        %v3939 = vmul.f32 %v3619, %v3875
        %v3940 = vmul.f32 %v3620, %v3876
        %v3941 = vmul.f32 %v3621, %v3877
        %v3942 = vmul.f32 %v3622, %v3878
        %v3943 = vmul.f32 %v3623, %v3879
        %v3944 = vmul.f32 %v3624, %v3880
        %s3945 = scalar_lea.vmem [#allocation5], 32
        %v3946 = vld [vmem:[%s3945] sm:$0xff]
        %v3947 = vld [vmem:[%s3945 + $0x8] sm:$0xff]
        %v3948 = vld [vmem:[%s3945 + $0x10] sm:$0xff]
        %v3949 = vld [vmem:[%s3945 + $0x18] sm:$0xff]
        %3950 = vmatprep.subr.mxu0 %v3882
        %3951 = vmatpush1.msra.mxu0 %v3881
        %3952 = vmatprep.subr.mxu0 %v3884
        %3953 = vmatpush1.msra.mxu0 %v3883
        %3954 = vmatprep.subr.mxu0 %v3886
        %3955 = vmatpush1.msra.mxu0 %v3885
        %3956 = vmatprep.subr.mxu0 %v3888
        %3957 = vmatpush1.msra.mxu0 %v3887
        %3958 = vmatprep.subr.mxu0 %v3890
        %3959 = vmatpush1.msra.mxu0 %v3889
        %3960 = vmatprep.subr.mxu0 %v3892
        %3961 = vmatpush1.msra.mxu0 %v3891
        %3962 = vmatprep.subr.mxu0 %v3894
        %3963 = vmatpush1.msra.mxu0 %v3893
        %3964 = vmatprep.subr.mxu0 %v3896
        %3965 = vmatpush1.msra.mxu0 %v3895
        %3966 = vmatprep.subr.mxu0 %v3898
        %3967 = vmatpush1.msra.mxu0 %v3897
        %3968 = vmatprep.subr.mxu0 %v3900
        %3969 = vmatpush1.msra.mxu0 %v3899
        %3970 = vmatprep.subr.mxu0 %v3902
        %3971 = vmatpush1.msra.mxu0 %v3901
        %3972 = vmatprep.subr.mxu0 %v3904
        %3973 = vmatpush1.msra.mxu0 %v3903
        %3974 = vmatprep.subr.mxu0 %v3906
        %3975 = vmatpush1.msra.mxu0 %v3905
        %3976 = vmatprep.subr.mxu0 %v3908
        %3977 = vmatpush1.msra.mxu0 %v3907
        %3978 = vmatprep.subr.mxu0 %v3910
        %3979 = vmatpush1.msra.mxu0 %v3909
        %3980 = vmatprep.subr.mxu0 %v3912
        %3981 = vmatpush1.msra.mxu0 %v3911
        %3982 = vmatprep.subr.mxu0 %v3914
        %3983 = vmatpush1.msra.mxu0 %v3913
        %3984 = vmatprep.subr.mxu0 %v3916
        %3985 = vmatpush1.msra.mxu0 %v3915
        %3986 = vmatprep.subr.mxu0 %v3918
        %3987 = vmatpush1.msra.mxu0 %v3917
        %3988 = vmatprep.subr.mxu0 %v3920
        %3989 = vmatpush1.msra.mxu0 %v3919
        %3990 = vmatprep.subr.mxu0 %v3922
        %3991 = vmatpush1.msra.mxu0 %v3921
        %3992 = vmatprep.subr.mxu0 %v3924
        %3993 = vmatpush1.msra.mxu0 %v3923
        %3994 = vmatprep.subr.mxu0 %v3926
        %3995 = vmatpush1.msra.mxu0 %v3925
        %3996 = vmatprep.subr.mxu0 %v3928
        %3997 = vmatpush1.msra.mxu0 %v3927
        %3998 = vmatprep.subr.mxu0 %v3930
        %3999 = vmatpush1.msra.mxu0 %v3929
        %4000 = vmatprep.subr.mxu0 %v3932
        %4001 = vmatpush1.msra.mxu0 %v3931
        %4002 = vmatprep.subr.mxu0 %v3934
        %4003 = vmatpush1.msra.mxu0 %v3933
        %4004 = vmatprep.subr.mxu0 %v3936
        %4005 = vmatpush1.msra.mxu0 %v3935
        %4006 = vmatprep.subr.mxu0 %v3938
        %4007 = vmatpush1.msra.mxu0 %v3937
        %4008 = vmatprep.subr.mxu0 %v3940
        %4009 = vmatpush1.msra.mxu0 %v3939
        %4010 = vmatprep.subr.mxu0 %v3942
        %4011 = vmatpush1.msra.mxu0 %v3941
        %4012 = vmatprep.subr.mxu0 %v3944
        %4013 = vmatpush1.msra.mxu0 %v3943
        %4014 = vmatprep.mubr.f32.mxu0 %v3947
        %4015 = vmatmul.mubr.f32.gmra.mrb[0].mxu0 %v3946
        %v4016 = vpop.f32.mrb[0].mxu0
        %v4017 = vadd.f32 0.0, %v4016
        %v4018 = vpop.f32.mrb[0].mxu0
        %v4019 = vadd.f32 0.0, %v4018
        %4020 = vmatprep.mubr.f32.mxu0 %v3949
        %4021 = vmatmul.mubr.f32.gmra.mrb[0].mxu0 %v3948
        %v4022 = vpop.f32.mrb[0].mxu0
        %v4023 = vadd.f32 0.0, %v4022
        %v4024 = vpop.f32.mrb[0].mxu0
        %v4025 = vadd.f32 0.0, %v4024
        %4026 = vdwg.mxu0
        %4027 = vmatprep.subr.mxu0 %v2022
        %4028 = vmatpush1.msra.mxu0 %v2021
        %4029 = vmatprep.subr.mxu0 %v2024
        %4030 = vmatpush1.msra.mxu0 %v2023
        %4031 = vmatprep.subr.mxu0 %v2026
        %4032 = vmatpush1.msra.mxu0 %v2025
        %4033 = vmatprep.subr.mxu0 %v2028
        %4034 = vmatpush1.msra.mxu0 %v2027
        %4035 = vmatprep.subr.mxu0 %v2030
        %4036 = vmatpush1.msra.mxu0 %v2029
        %4037 = vmatprep.subr.mxu0 %v2032
        %4038 = vmatpush1.msra.mxu0 %v2031
        %4039 = vmatprep.subr.mxu0 %v2034
        %4040 = vmatpush1.msra.mxu0 %v2033
        %4041 = vmatprep.subr.mxu0 %v2036
        %4042 = vmatpush1.msra.mxu0 %v2035
        %4043 = vmatprep.subr.mxu0 %v2038
        %4044 = vmatpush1.msra.mxu0 %v2037
        %4045 = vmatprep.subr.mxu0 %v2040
        %4046 = vmatpush1.msra.mxu0 %v2039
        %4047 = vmatprep.subr.mxu0 %v2042
        %4048 = vmatpush1.msra.mxu0 %v2041
        %4049 = vmatprep.subr.mxu0 %v2044
        %4050 = vmatpush1.msra.mxu0 %v2043
        %4051 = vmatprep.subr.mxu0 %v2046
        %4052 = vmatpush1.msra.mxu0 %v2045
        %4053 = vmatprep.subr.mxu0 %v2048
        %4054 = vmatpush1.msra.mxu0 %v2047
        %4055 = vmatprep.subr.mxu0 %v2050
        %4056 = vmatpush1.msra.mxu0 %v2049
        %4057 = vmatprep.subr.mxu0 %v2052
        %4058 = vmatpush1.msra.mxu0 %v2051
        %4059 = vmatprep.subr.mxu0 %v2054
        %4060 = vmatpush1.msra.mxu0 %v2053
        %4061 = vmatprep.subr.mxu0 %v2056
        %4062 = vmatpush1.msra.mxu0 %v2055
        %4063 = vmatprep.subr.mxu0 %v2058
        %4064 = vmatpush1.msra.mxu0 %v2057
        %4065 = vmatprep.subr.mxu0 %v2060
        %4066 = vmatpush1.msra.mxu0 %v2059
        %4067 = vmatprep.subr.mxu0 %v2062
        %4068 = vmatpush1.msra.mxu0 %v2061
        %4069 = vmatprep.subr.mxu0 %v2064
        %4070 = vmatpush1.msra.mxu0 %v2063
        %4071 = vmatprep.subr.mxu0 %v2066
        %4072 = vmatpush1.msra.mxu0 %v2065
        %4073 = vmatprep.subr.mxu0 %v2068
        %4074 = vmatpush1.msra.mxu0 %v2067
        %4075 = vmatprep.subr.mxu0 %v2070
        %4076 = vmatpush1.msra.mxu0 %v2069
        %4077 = vmatprep.subr.mxu0 %v2072
        %4078 = vmatpush1.msra.mxu0 %v2071
        %4079 = vmatprep.subr.mxu0 %v2074
        %4080 = vmatpush1.msra.mxu0 %v2073
        %4081 = vmatprep.subr.mxu0 %v2076
        %4082 = vmatpush1.msra.mxu0 %v2075
        %4083 = vmatprep.subr.mxu0 %v2078
        %4084 = vmatpush1.msra.mxu0 %v2077
        %4085 = vmatprep.subr.mxu0 %v2080
        %4086 = vmatpush1.msra.mxu0 %v2079
        %4087 = vmatprep.subr.mxu0 %v2082
        %4088 = vmatpush1.msra.mxu0 %v2081
        %4089 = vmatprep.subr.mxu0 %v2084
        %4090 = vmatpush1.msra.mxu0 %v2083
        %4091 = vmatprep.mubr.f32.mxu0 %v2086
        %4092 = vmatmul.mubr.f32.gmra.mrb[0].mxu0 %v2085
        %v4093 = vpop.f32.mrb[0].mxu0
        %v4094 = vadd.f32 %v4017, %v4093
        %v4095 = vpop.f32.mrb[0].mxu0
        %v4096 = vadd.f32 %v4019, %v4095
        %4097 = vmatprep.mubr.f32.mxu0 %v2088
        %4098 = vmatmul.mubr.f32.gmra.mrb[0].mxu0 %v2087
        %v4099 = vpop.f32.mrb[0].mxu0
        %v4100 = vadd.f32 %v4023, %v4099
        %v4101 = vpop.f32.mrb[0].mxu0
        %v4102 = vadd.f32 %v4025, %v4101
        %4103 = vdwg.mxu0
        %v4104 = vadd.s32 %v195, 512
        %v4105 = vadd.s32 %v196, 512
        %v4106 = vadd.s32 %v197, 512
        %v4107 = vadd.s32 %v198, 512
        %v4108 = vadd.s32 %v199, 512
        %v4109 = vadd.s32 %v200, 512
        %v4110 = vadd.s32 %v201, 512
        %v4111 = vadd.s32 %v202, 512
        %v4112 = vadd.s32 %v203, 512
        %v4113 = vadd.s32 %v204, 512
        %v4114 = vadd.s32 %v205, 512
        %v4115 = vadd.s32 %v206, 512
        %v4116 = vadd.s32 %v207, 512
        %v4117 = vadd.s32 %v208, 512
        %v4118 = vadd.s32 %v209, 512
        %v4119 = vadd.s32 %v210, 512
        %v4120 = vadd.s32 %v211, 512
        %v4121 = vadd.s32 %v212, 512
        %v4122 = vadd.s32 %v213, 512
        %v4123 = vadd.s32 %v214, 512
        %v4124 = vadd.s32 %v215, 512
        %v4125 = vadd.s32 %v216, 512
        %v4126 = vadd.s32 %v217, 512
        %v4127 = vadd.s32 %v218, 512
        %v4128 = vadd.s32 %v219, 512
        %v4129 = vadd.s32 %v220, 512
        %v4130 = vadd.s32 %v221, 512
        %v4131 = vadd.s32 %v222, 512
        %v4132 = vadd.s32 %v223, 512
        %v4133 = vadd.s32 %v224, 512
        %v4134 = vadd.s32 %v225, 512
        %v4135 = vadd.s32 %v226, 512
        %v4136 = vcvt.s32.f32 %v4104
        %v4137 = vcvt.s32.f32 %v4105
        %v4138 = vcvt.s32.f32 %v4106
        %v4139 = vcvt.s32.f32 %v4107
        %v4140 = vcvt.s32.f32 %v4108
        %v4141 = vcvt.s32.f32 %v4109
        %v4142 = vcvt.s32.f32 %v4110
        %v4143 = vcvt.s32.f32 %v4111
        %v4144 = vcvt.s32.f32 %v4112
        %v4145 = vcvt.s32.f32 %v4113
        %v4146 = vcvt.s32.f32 %v4114
        %v4147 = vcvt.s32.f32 %v4115
        %v4148 = vcvt.s32.f32 %v4116
        %v4149 = vcvt.s32.f32 %v4117
        %v4150 = vcvt.s32.f32 %v4118
        %v4151 = vcvt.s32.f32 %v4119
        %v4152 = vcvt.s32.f32 %v4120
        %v4153 = vcvt.s32.f32 %v4121
        %v4154 = vcvt.s32.f32 %v4122
        %v4155 = vcvt.s32.f32 %v4123
        %v4156 = vcvt.s32.f32 %v4124
        %v4157 = vcvt.s32.f32 %v4125
        %v4158 = vcvt.s32.f32 %v4126
        %v4159 = vcvt.s32.f32 %v4127
        %v4160 = vcvt.s32.f32 %v4128
        %v4161 = vcvt.s32.f32 %v4129
        %v4162 = vcvt.s32.f32 %v4130
        %v4163 = vcvt.s32.f32 %v4131
        %v4164 = vcvt.s32.f32 %v4132
        %v4165 = vcvt.s32.f32 %v4133
        %v4166 = vcvt.s32.f32 %v4134
        %v4167 = vcvt.s32.f32 %v4135
        %v4168 = vmul.f32 %v4136, %v259
        %v4169 = vmul.f32 %v4137, %v259
        %v4170 = vmul.f32 %v4138, %v259
        %v4171 = vmul.f32 %v4139, %v259
        %v4172 = vmul.f32 %v4140, %v259
        %v4173 = vmul.f32 %v4141, %v259
        %v4174 = vmul.f32 %v4142, %v259
        %v4175 = vmul.f32 %v4143, %v259
        %v4176 = vmul.f32 %v4144, %v259
        %v4177 = vmul.f32 %v4145, %v259
        %v4178 = vmul.f32 %v4146, %v259
        %v4179 = vmul.f32 %v4147, %v259
        %v4180 = vmul.f32 %v4148, %v259
        %v4181 = vmul.f32 %v4149, %v259
        %v4182 = vmul.f32 %v4150, %v259
        %v4183 = vmul.f32 %v4151, %v259
        %v4184 = vmul.f32 %v4152, %v259
        %v4185 = vmul.f32 %v4153, %v259
        %v4186 = vmul.f32 %v4154, %v259
        %v4187 = vmul.f32 %v4155, %v259
        %v4188 = vmul.f32 %v4156, %v259
        %v4189 = vmul.f32 %v4157, %v259
        %v4190 = vmul.f32 %v4158, %v259
        %v4191 = vmul.f32 %v4159, %v259
        %v4192 = vmul.f32 %v4160, %v259
        %v4193 = vmul.f32 %v4161, %v259
        %v4194 = vmul.f32 %v4162, %v259
        %v4195 = vmul.f32 %v4163, %v259
        %v4196 = vmul.f32 %v4164, %v259
        %v4197 = vmul.f32 %v4165, %v259
        %v4198 = vmul.f32 %v4166, %v259
        %v4199 = vmul.f32 %v4167, %v259
        %v4200 = vfloor.f32 %v4168
        %v4201 = vfloor.f32 %v4169
        %v4202 = vfloor.f32 %v4170
        %v4203 = vfloor.f32 %v4171
        %v4204 = vfloor.f32 %v4172
        %v4205 = vfloor.f32 %v4173
        %v4206 = vfloor.f32 %v4174
        %v4207 = vfloor.f32 %v4175
        %v4208 = vfloor.f32 %v4176
        %v4209 = vfloor.f32 %v4177
        %v4210 = vfloor.f32 %v4178
        %v4211 = vfloor.f32 %v4179
        %v4212 = vfloor.f32 %v4180
        %v4213 = vfloor.f32 %v4181
        %v4214 = vfloor.f32 %v4182
        %v4215 = vfloor.f32 %v4183
        %v4216 = vfloor.f32 %v4184
        %v4217 = vfloor.f32 %v4185
        %v4218 = vfloor.f32 %v4186
        %v4219 = vfloor.f32 %v4187
        %v4220 = vfloor.f32 %v4188
        %v4221 = vfloor.f32 %v4189
        %v4222 = vfloor.f32 %v4190
        %v4223 = vfloor.f32 %v4191
        %v4224 = vfloor.f32 %v4192
        %v4225 = vfloor.f32 %v4193
        %v4226 = vfloor.f32 %v4194
        %v4227 = vfloor.f32 %v4195
        %v4228 = vfloor.f32 %v4196
        %v4229 = vfloor.f32 %v4197
        %v4230 = vfloor.f32 %v4198
        %v4231 = vfloor.f32 %v4199
        %v4232 = vmul.f32 %v4200, 9.0
        %v4233 = vmul.f32 %v4201, 9.0
        %v4234 = vmul.f32 %v4202, 9.0
        %v4235 = vmul.f32 %v4203, 9.0
        %v4236 = vmul.f32 %v4204, 9.0
        %v4237 = vmul.f32 %v4205, 9.0
        %v4238 = vmul.f32 %v4206, 9.0
        %v4239 = vmul.f32 %v4207, 9.0
        %v4240 = vmul.f32 %v4208, 9.0
        %v4241 = vmul.f32 %v4209, 9.0
        %v4242 = vmul.f32 %v4210, 9.0
        %v4243 = vmul.f32 %v4211, 9.0
        %v4244 = vmul.f32 %v4212, 9.0
        %v4245 = vmul.f32 %v4213, 9.0
        %v4246 = vmul.f32 %v4214, 9.0
        %v4247 = vmul.f32 %v4215, 9.0
        %v4248 = vmul.f32 %v4216, 9.0
        %v4249 = vmul.f32 %v4217, 9.0
        %v4250 = vmul.f32 %v4218, 9.0
        %v4251 = vmul.f32 %v4219, 9.0
        %v4252 = vmul.f32 %v4220, 9.0
        %v4253 = vmul.f32 %v4221, 9.0
        %v4254 = vmul.f32 %v4222, 9.0
        %v4255 = vmul.f32 %v4223, 9.0
        %v4256 = vmul.f32 %v4224, 9.0
        %v4257 = vmul.f32 %v4225, 9.0
        %v4258 = vmul.f32 %v4226, 9.0
        %v4259 = vmul.f32 %v4227, 9.0
        %v4260 = vmul.f32 %v4228, 9.0
        %v4261 = vmul.f32 %v4229, 9.0
        %v4262 = vmul.f32 %v4230, 9.0
        %v4263 = vmul.f32 %v4231, 9.0
        %v4264 = vsub.f32 %v4136, %v4232
        %v4265 = vsub.f32 %v4137, %v4233
        %v4266 = vsub.f32 %v4138, %v4234
        %v4267 = vsub.f32 %v4139, %v4235
        %v4268 = vsub.f32 %v4140, %v4236
        %v4269 = vsub.f32 %v4141, %v4237
        %v4270 = vsub.f32 %v4142, %v4238
        %v4271 = vsub.f32 %v4143, %v4239
        %v4272 = vsub.f32 %v4144, %v4240
        %v4273 = vsub.f32 %v4145, %v4241
        %v4274 = vsub.f32 %v4146, %v4242
        %v4275 = vsub.f32 %v4147, %v4243
        %v4276 = vsub.f32 %v4148, %v4244
        %v4277 = vsub.f32 %v4149, %v4245
        %v4278 = vsub.f32 %v4150, %v4246
        %v4279 = vsub.f32 %v4151, %v4247
        %v4280 = vsub.f32 %v4152, %v4248
        %v4281 = vsub.f32 %v4153, %v4249
        %v4282 = vsub.f32 %v4154, %v4250
        %v4283 = vsub.f32 %v4155, %v4251
        %v4284 = vsub.f32 %v4156, %v4252
        %v4285 = vsub.f32 %v4157, %v4253
        %v4286 = vsub.f32 %v4158, %v4254
        %v4287 = vsub.f32 %v4159, %v4255
        %v4288 = vsub.f32 %v4160, %v4256
        %v4289 = vsub.f32 %v4161, %v4257
        %v4290 = vsub.f32 %v4162, %v4258
        %v4291 = vsub.f32 %v4163, %v4259
        %v4292 = vsub.f32 %v4164, %v4260
        %v4293 = vsub.f32 %v4165, %v4261
        %v4294 = vsub.f32 %v4166, %v4262
        %v4295 = vsub.f32 %v4167, %v4263
        %vm4296 = vcmp.ge.f32.partialorder %v4264, 9.0
        %vm4297 = vcmp.ge.f32.partialorder %v4265, 9.0
        %vm4298 = vcmp.ge.f32.partialorder %v4266, 9.0
        %vm4299 = vcmp.ge.f32.partialorder %v4267, 9.0
        %vm4300 = vcmp.ge.f32.partialorder %v4268, 9.0
        %vm4301 = vcmp.ge.f32.partialorder %v4269, 9.0
        %vm4302 = vcmp.ge.f32.partialorder %v4270, 9.0
        %vm4303 = vcmp.ge.f32.partialorder %v4271, 9.0
        %vm4304 = vcmp.ge.f32.partialorder %v4272, 9.0
        %vm4305 = vcmp.ge.f32.partialorder %v4273, 9.0
        %vm4306 = vcmp.ge.f32.partialorder %v4274, 9.0
        %vm4307 = vcmp.ge.f32.partialorder %v4275, 9.0
        %vm4308 = vcmp.ge.f32.partialorder %v4276, 9.0
        %vm4309 = vcmp.ge.f32.partialorder %v4277, 9.0
        %vm4310 = vcmp.ge.f32.partialorder %v4278, 9.0
        %vm4311 = vcmp.ge.f32.partialorder %v4279, 9.0
        %vm4312 = vcmp.ge.f32.partialorder %v4280, 9.0
        %vm4313 = vcmp.ge.f32.partialorder %v4281, 9.0
        %vm4314 = vcmp.ge.f32.partialorder %v4282, 9.0
        %vm4315 = vcmp.ge.f32.partialorder %v4283, 9.0
        %vm4316 = vcmp.ge.f32.partialorder %v4284, 9.0
        %vm4317 = vcmp.ge.f32.partialorder %v4285, 9.0
        %vm4318 = vcmp.ge.f32.partialorder %v4286, 9.0
        %vm4319 = vcmp.ge.f32.partialorder %v4287, 9.0
        %vm4320 = vcmp.ge.f32.partialorder %v4288, 9.0
        %vm4321 = vcmp.ge.f32.partialorder %v4289, 9.0
        %vm4322 = vcmp.ge.f32.partialorder %v4290, 9.0
        %vm4323 = vcmp.ge.f32.partialorder %v4291, 9.0
        %vm4324 = vcmp.ge.f32.partialorder %v4292, 9.0
        %vm4325 = vcmp.ge.f32.partialorder %v4293, 9.0
        %vm4326 = vcmp.ge.f32.partialorder %v4294, 9.0
        %vm4327 = vcmp.ge.f32.partialorder %v4295, 9.0
        %v4328 = vsel %vm4296, 1, 0
        %v4329 = vsel %vm4297, 1, 0
        %v4330 = vsel %vm4298, 1, 0
        %v4331 = vsel %vm4299, 1, 0
        %v4332 = vsel %vm4300, 1, 0
        %v4333 = vsel %vm4301, 1, 0
        %v4334 = vsel %vm4302, 1, 0
        %v4335 = vsel %vm4303, 1, 0
        %v4336 = vsel %vm4304, 1, 0
        %v4337 = vsel %vm4305, 1, 0
        %v4338 = vsel %vm4306, 1, 0
        %v4339 = vsel %vm4307, 1, 0
        %v4340 = vsel %vm4308, 1, 0
        %v4341 = vsel %vm4309, 1, 0
        %v4342 = vsel %vm4310, 1, 0
        %v4343 = vsel %vm4311, 1, 0
        %v4344 = vsel %vm4312, 1, 0
        %v4345 = vsel %vm4313, 1, 0
        %v4346 = vsel %vm4314, 1, 0
        %v4347 = vsel %vm4315, 1, 0
        %v4348 = vsel %vm4316, 1, 0
        %v4349 = vsel %vm4317, 1, 0
        %v4350 = vsel %vm4318, 1, 0
        %v4351 = vsel %vm4319, 1, 0
        %v4352 = vsel %vm4320, 1, 0
        %v4353 = vsel %vm4321, 1, 0
        %v4354 = vsel %vm4322, 1, 0
        %v4355 = vsel %vm4323, 1, 0
        %v4356 = vsel %vm4324, 1, 0
        %v4357 = vsel %vm4325, 1, 0
        %v4358 = vsel %vm4326, 1, 0
        %v4359 = vsel %vm4327, 1, 0
        %v4360 = vcvt.s32.f32 %v4328
        %v4361 = vcvt.s32.f32 %v4329
        %v4362 = vcvt.s32.f32 %v4330
        %v4363 = vcvt.s32.f32 %v4331
        %v4364 = vcvt.s32.f32 %v4332
        %v4365 = vcvt.s32.f32 %v4333
        %v4366 = vcvt.s32.f32 %v4334
        %v4367 = vcvt.s32.f32 %v4335
        %v4368 = vcvt.s32.f32 %v4336
        %v4369 = vcvt.s32.f32 %v4337
        %v4370 = vcvt.s32.f32 %v4338
        %v4371 = vcvt.s32.f32 %v4339
        %v4372 = vcvt.s32.f32 %v4340
        %v4373 = vcvt.s32.f32 %v4341
        %v4374 = vcvt.s32.f32 %v4342
        %v4375 = vcvt.s32.f32 %v4343
        %v4376 = vcvt.s32.f32 %v4344
        %v4377 = vcvt.s32.f32 %v4345
        %v4378 = vcvt.s32.f32 %v4346
        %v4379 = vcvt.s32.f32 %v4347
        %v4380 = vcvt.s32.f32 %v4348
        %v4381 = vcvt.s32.f32 %v4349
        %v4382 = vcvt.s32.f32 %v4350
        %v4383 = vcvt.s32.f32 %v4351
        %v4384 = vcvt.s32.f32 %v4352
        %v4385 = vcvt.s32.f32 %v4353
        %v4386 = vcvt.s32.f32 %v4354
        %v4387 = vcvt.s32.f32 %v4355
        %v4388 = vcvt.s32.f32 %v4356
        %v4389 = vcvt.s32.f32 %v4357
        %v4390 = vcvt.s32.f32 %v4358
        %v4391 = vcvt.s32.f32 %v4359
        %v4392 = vadd.f32 %v4200, %v4360
        %v4393 = vadd.f32 %v4201, %v4361
        %v4394 = vadd.f32 %v4202, %v4362
        %v4395 = vadd.f32 %v4203, %v4363
        %v4396 = vadd.f32 %v4204, %v4364
        %v4397 = vadd.f32 %v4205, %v4365
        %v4398 = vadd.f32 %v4206, %v4366
        %v4399 = vadd.f32 %v4207, %v4367
        %v4400 = vadd.f32 %v4208, %v4368
        %v4401 = vadd.f32 %v4209, %v4369
        %v4402 = vadd.f32 %v4210, %v4370
        %v4403 = vadd.f32 %v4211, %v4371
        %v4404 = vadd.f32 %v4212, %v4372
        %v4405 = vadd.f32 %v4213, %v4373
        %v4406 = vadd.f32 %v4214, %v4374
        %v4407 = vadd.f32 %v4215, %v4375
        %v4408 = vadd.f32 %v4216, %v4376
        %v4409 = vadd.f32 %v4217, %v4377
        %v4410 = vadd.f32 %v4218, %v4378
        %v4411 = vadd.f32 %v4219, %v4379
        %v4412 = vadd.f32 %v4220, %v4380
        %v4413 = vadd.f32 %v4221, %v4381
        %v4414 = vadd.f32 %v4222, %v4382
        %v4415 = vadd.f32 %v4223, %v4383
        %v4416 = vadd.f32 %v4224, %v4384
        %v4417 = vadd.f32 %v4225, %v4385
        %v4418 = vadd.f32 %v4226, %v4386
        %v4419 = vadd.f32 %v4227, %v4387
        %v4420 = vadd.f32 %v4228, %v4388
        %v4421 = vadd.f32 %v4229, %v4389
        %v4422 = vadd.f32 %v4230, %v4390
        %v4423 = vadd.f32 %v4231, %v4391
        %vm4424 = vcmp.lt.f32.partialorder %v4264, 0.0
        %vm4425 = vcmp.lt.f32.partialorder %v4265, 0.0
        %vm4426 = vcmp.lt.f32.partialorder %v4266, 0.0
        %vm4427 = vcmp.lt.f32.partialorder %v4267, 0.0
        %vm4428 = vcmp.lt.f32.partialorder %v4268, 0.0
        %vm4429 = vcmp.lt.f32.partialorder %v4269, 0.0
        %vm4430 = vcmp.lt.f32.partialorder %v4270, 0.0
        %vm4431 = vcmp.lt.f32.partialorder %v4271, 0.0
        %vm4432 = vcmp.lt.f32.partialorder %v4272, 0.0
        %vm4433 = vcmp.lt.f32.partialorder %v4273, 0.0
        %vm4434 = vcmp.lt.f32.partialorder %v4274, 0.0
        %vm4435 = vcmp.lt.f32.partialorder %v4275, 0.0
        %vm4436 = vcmp.lt.f32.partialorder %v4276, 0.0
        %vm4437 = vcmp.lt.f32.partialorder %v4277, 0.0
        %vm4438 = vcmp.lt.f32.partialorder %v4278, 0.0
        %vm4439 = vcmp.lt.f32.partialorder %v4279, 0.0
        %vm4440 = vcmp.lt.f32.partialorder %v4280, 0.0
        %vm4441 = vcmp.lt.f32.partialorder %v4281, 0.0
        %vm4442 = vcmp.lt.f32.partialorder %v4282, 0.0
        %vm4443 = vcmp.lt.f32.partialorder %v4283, 0.0
        %vm4444 = vcmp.lt.f32.partialorder %v4284, 0.0
        %vm4445 = vcmp.lt.f32.partialorder %v4285, 0.0
        %vm4446 = vcmp.lt.f32.partialorder %v4286, 0.0
        %vm4447 = vcmp.lt.f32.partialorder %v4287, 0.0
        %vm4448 = vcmp.lt.f32.partialorder %v4288, 0.0
        %vm4449 = vcmp.lt.f32.partialorder %v4289, 0.0
        %vm4450 = vcmp.lt.f32.partialorder %v4290, 0.0
        %vm4451 = vcmp.lt.f32.partialorder %v4291, 0.0
        %vm4452 = vcmp.lt.f32.partialorder %v4292, 0.0
        %vm4453 = vcmp.lt.f32.partialorder %v4293, 0.0
        %vm4454 = vcmp.lt.f32.partialorder %v4294, 0.0
        %vm4455 = vcmp.lt.f32.partialorder %v4295, 0.0
        %v4456 = vsel %vm4424, 1, 0
        %v4457 = vsel %vm4425, 1, 0
        %v4458 = vsel %vm4426, 1, 0
        %v4459 = vsel %vm4427, 1, 0
        %v4460 = vsel %vm4428, 1, 0
        %v4461 = vsel %vm4429, 1, 0
        %v4462 = vsel %vm4430, 1, 0
        %v4463 = vsel %vm4431, 1, 0
        %v4464 = vsel %vm4432, 1, 0
        %v4465 = vsel %vm4433, 1, 0
        %v4466 = vsel %vm4434, 1, 0
        %v4467 = vsel %vm4435, 1, 0
        %v4468 = vsel %vm4436, 1, 0
        %v4469 = vsel %vm4437, 1, 0
        %v4470 = vsel %vm4438, 1, 0
        %v4471 = vsel %vm4439, 1, 0
        %v4472 = vsel %vm4440, 1, 0
        %v4473 = vsel %vm4441, 1, 0
        %v4474 = vsel %vm4442, 1, 0
        %v4475 = vsel %vm4443, 1, 0
        %v4476 = vsel %vm4444, 1, 0
        %v4477 = vsel %vm4445, 1, 0
        %v4478 = vsel %vm4446, 1, 0
        %v4479 = vsel %vm4447, 1, 0
        %v4480 = vsel %vm4448, 1, 0
        %v4481 = vsel %vm4449, 1, 0
        %v4482 = vsel %vm4450, 1, 0
        %v4483 = vsel %vm4451, 1, 0
        %v4484 = vsel %vm4452, 1, 0
        %v4485 = vsel %vm4453, 1, 0
        %v4486 = vsel %vm4454, 1, 0
        %v4487 = vsel %vm4455, 1, 0
        %v4488 = vcvt.s32.f32 %v4456
        %v4489 = vcvt.s32.f32 %v4457
        %v4490 = vcvt.s32.f32 %v4458
        %v4491 = vcvt.s32.f32 %v4459
        %v4492 = vcvt.s32.f32 %v4460
        %v4493 = vcvt.s32.f32 %v4461
        %v4494 = vcvt.s32.f32 %v4462
        %v4495 = vcvt.s32.f32 %v4463
        %v4496 = vcvt.s32.f32 %v4464
        %v4497 = vcvt.s32.f32 %v4465
        %v4498 = vcvt.s32.f32 %v4466
        %v4499 = vcvt.s32.f32 %v4467
        %v4500 = vcvt.s32.f32 %v4468
        %v4501 = vcvt.s32.f32 %v4469
        %v4502 = vcvt.s32.f32 %v4470
        %v4503 = vcvt.s32.f32 %v4471
        %v4504 = vcvt.s32.f32 %v4472
        %v4505 = vcvt.s32.f32 %v4473
        %v4506 = vcvt.s32.f32 %v4474
        %v4507 = vcvt.s32.f32 %v4475
        %v4508 = vcvt.s32.f32 %v4476
        %v4509 = vcvt.s32.f32 %v4477
        %v4510 = vcvt.s32.f32 %v4478
        %v4511 = vcvt.s32.f32 %v4479
        %v4512 = vcvt.s32.f32 %v4480
        %v4513 = vcvt.s32.f32 %v4481
        %v4514 = vcvt.s32.f32 %v4482
        %v4515 = vcvt.s32.f32 %v4483
        %v4516 = vcvt.s32.f32 %v4484
        %v4517 = vcvt.s32.f32 %v4485
        %v4518 = vcvt.s32.f32 %v4486
        %v4519 = vcvt.s32.f32 %v4487
        %v4520 = vsub.f32 %v4392, %v4488
        %v4521 = vsub.f32 %v4393, %v4489
        %v4522 = vsub.f32 %v4394, %v4490
        %v4523 = vsub.f32 %v4395, %v4491
        %v4524 = vsub.f32 %v4396, %v4492
        %v4525 = vsub.f32 %v4397, %v4493
        %v4526 = vsub.f32 %v4398, %v4494
        %v4527 = vsub.f32 %v4399, %v4495
        %v4528 = vsub.f32 %v4400, %v4496
        %v4529 = vsub.f32 %v4401, %v4497
        %v4530 = vsub.f32 %v4402, %v4498
        %v4531 = vsub.f32 %v4403, %v4499
        %v4532 = vsub.f32 %v4404, %v4500
        %v4533 = vsub.f32 %v4405, %v4501
        %v4534 = vsub.f32 %v4406, %v4502
        %v4535 = vsub.f32 %v4407, %v4503
        %v4536 = vsub.f32 %v4408, %v4504
        %v4537 = vsub.f32 %v4409, %v4505
        %v4538 = vsub.f32 %v4410, %v4506
        %v4539 = vsub.f32 %v4411, %v4507
        %v4540 = vsub.f32 %v4412, %v4508
        %v4541 = vsub.f32 %v4413, %v4509
        %v4542 = vsub.f32 %v4414, %v4510
        %v4543 = vsub.f32 %v4415, %v4511
        %v4544 = vsub.f32 %v4416, %v4512
        %v4545 = vsub.f32 %v4417, %v4513
        %v4546 = vsub.f32 %v4418, %v4514
        %v4547 = vsub.f32 %v4419, %v4515
        %v4548 = vsub.f32 %v4420, %v4516
        %v4549 = vsub.f32 %v4421, %v4517
        %v4550 = vsub.f32 %v4422, %v4518
        %v4551 = vsub.f32 %v4423, %v4519
        %v4552 = vmul.f32 %v4520, 9.0
        %v4553 = vmul.f32 %v4521, 9.0
        %v4554 = vmul.f32 %v4522, 9.0
        %v4555 = vmul.f32 %v4523, 9.0
        %v4556 = vmul.f32 %v4524, 9.0
        %v4557 = vmul.f32 %v4525, 9.0
        %v4558 = vmul.f32 %v4526, 9.0
        %v4559 = vmul.f32 %v4527, 9.0
        %v4560 = vmul.f32 %v4528, 9.0
        %v4561 = vmul.f32 %v4529, 9.0
        %v4562 = vmul.f32 %v4530, 9.0
        %v4563 = vmul.f32 %v4531, 9.0
        %v4564 = vmul.f32 %v4532, 9.0
        %v4565 = vmul.f32 %v4533, 9.0
        %v4566 = vmul.f32 %v4534, 9.0
        %v4567 = vmul.f32 %v4535, 9.0
        %v4568 = vmul.f32 %v4536, 9.0
        %v4569 = vmul.f32 %v4537, 9.0
        %v4570 = vmul.f32 %v4538, 9.0
        %v4571 = vmul.f32 %v4539, 9.0
        %v4572 = vmul.f32 %v4540, 9.0
        %v4573 = vmul.f32 %v4541, 9.0
        %v4574 = vmul.f32 %v4542, 9.0
        %v4575 = vmul.f32 %v4543, 9.0
        %v4576 = vmul.f32 %v4544, 9.0
        %v4577 = vmul.f32 %v4545, 9.0
        %v4578 = vmul.f32 %v4546, 9.0
        %v4579 = vmul.f32 %v4547, 9.0
        %v4580 = vmul.f32 %v4548, 9.0
        %v4581 = vmul.f32 %v4549, 9.0
        %v4582 = vmul.f32 %v4550, 9.0
        %v4583 = vmul.f32 %v4551, 9.0
        %v4584 = vsub.f32 %v4136, %v4552
        %v4585 = vsub.f32 %v4137, %v4553
        %v4586 = vsub.f32 %v4138, %v4554
        %v4587 = vsub.f32 %v4139, %v4555
        %v4588 = vsub.f32 %v4140, %v4556
        %v4589 = vsub.f32 %v4141, %v4557
        %v4590 = vsub.f32 %v4142, %v4558
        %v4591 = vsub.f32 %v4143, %v4559
        %v4592 = vsub.f32 %v4144, %v4560
        %v4593 = vsub.f32 %v4145, %v4561
        %v4594 = vsub.f32 %v4146, %v4562
        %v4595 = vsub.f32 %v4147, %v4563
        %v4596 = vsub.f32 %v4148, %v4564
        %v4597 = vsub.f32 %v4149, %v4565
        %v4598 = vsub.f32 %v4150, %v4566
        %v4599 = vsub.f32 %v4151, %v4567
        %v4600 = vsub.f32 %v4152, %v4568
        %v4601 = vsub.f32 %v4153, %v4569
        %v4602 = vsub.f32 %v4154, %v4570
        %v4603 = vsub.f32 %v4155, %v4571
        %v4604 = vsub.f32 %v4156, %v4572
        %v4605 = vsub.f32 %v4157, %v4573
        %v4606 = vsub.f32 %v4158, %v4574
        %v4607 = vsub.f32 %v4159, %v4575
        %v4608 = vsub.f32 %v4160, %v4576
        %v4609 = vsub.f32 %v4161, %v4577
        %v4610 = vsub.f32 %v4162, %v4578
        %v4611 = vsub.f32 %v4163, %v4579
        %v4612 = vsub.f32 %v4164, %v4580
        %v4613 = vsub.f32 %v4165, %v4581
        %v4614 = vsub.f32 %v4166, %v4582
        %v4615 = vsub.f32 %v4167, %v4583
        %v4616 = vmul.f32 %v4520, %v259
        %v4617 = vmul.f32 %v4521, %v259
        %v4618 = vmul.f32 %v4522, %v259
        %v4619 = vmul.f32 %v4523, %v259
        %v4620 = vmul.f32 %v4524, %v259
        %v4621 = vmul.f32 %v4525, %v259
        %v4622 = vmul.f32 %v4526, %v259
        %v4623 = vmul.f32 %v4527, %v259
        %v4624 = vmul.f32 %v4528, %v259
        %v4625 = vmul.f32 %v4529, %v259
        %v4626 = vmul.f32 %v4530, %v259
        %v4627 = vmul.f32 %v4531, %v259
        %v4628 = vmul.f32 %v4532, %v259
        %v4629 = vmul.f32 %v4533, %v259
        %v4630 = vmul.f32 %v4534, %v259
        %v4631 = vmul.f32 %v4535, %v259
        %v4632 = vmul.f32 %v4536, %v259
        %v4633 = vmul.f32 %v4537, %v259
        %v4634 = vmul.f32 %v4538, %v259
        %v4635 = vmul.f32 %v4539, %v259
        %v4636 = vmul.f32 %v4540, %v259
        %v4637 = vmul.f32 %v4541, %v259
        %v4638 = vmul.f32 %v4542, %v259
        %v4639 = vmul.f32 %v4543, %v259
        %v4640 = vmul.f32 %v4544, %v259
        %v4641 = vmul.f32 %v4545, %v259
        %v4642 = vmul.f32 %v4546, %v259
        %v4643 = vmul.f32 %v4547, %v259
        %v4644 = vmul.f32 %v4548, %v259
        %v4645 = vmul.f32 %v4549, %v259
        %v4646 = vmul.f32 %v4550, %v259
        %v4647 = vmul.f32 %v4551, %v259
        %v4648 = vfloor.f32 %v4616
        %v4649 = vfloor.f32 %v4617
        %v4650 = vfloor.f32 %v4618
        %v4651 = vfloor.f32 %v4619
        %v4652 = vfloor.f32 %v4620
        %v4653 = vfloor.f32 %v4621
        %v4654 = vfloor.f32 %v4622
        %v4655 = vfloor.f32 %v4623
        %v4656 = vfloor.f32 %v4624
        %v4657 = vfloor.f32 %v4625
        %v4658 = vfloor.f32 %v4626
        %v4659 = vfloor.f32 %v4627
        %v4660 = vfloor.f32 %v4628
        %v4661 = vfloor.f32 %v4629
        %v4662 = vfloor.f32 %v4630
        %v4663 = vfloor.f32 %v4631
        %v4664 = vfloor.f32 %v4632
        %v4665 = vfloor.f32 %v4633
        %v4666 = vfloor.f32 %v4634
        %v4667 = vfloor.f32 %v4635
        %v4668 = vfloor.f32 %v4636
        %v4669 = vfloor.f32 %v4637
        %v4670 = vfloor.f32 %v4638
        %v4671 = vfloor.f32 %v4639
        %v4672 = vfloor.f32 %v4640
        %v4673 = vfloor.f32 %v4641
        %v4674 = vfloor.f32 %v4642
        %v4675 = vfloor.f32 %v4643
        %v4676 = vfloor.f32 %v4644
        %v4677 = vfloor.f32 %v4645
        %v4678 = vfloor.f32 %v4646
        %v4679 = vfloor.f32 %v4647
        %v4680 = vmul.f32 %v4648, 9.0
        %v4681 = vmul.f32 %v4649, 9.0
        %v4682 = vmul.f32 %v4650, 9.0
        %v4683 = vmul.f32 %v4651, 9.0
        %v4684 = vmul.f32 %v4652, 9.0
        %v4685 = vmul.f32 %v4653, 9.0
        %v4686 = vmul.f32 %v4654, 9.0
        %v4687 = vmul.f32 %v4655, 9.0
        %v4688 = vmul.f32 %v4656, 9.0
        %v4689 = vmul.f32 %v4657, 9.0
        %v4690 = vmul.f32 %v4658, 9.0
        %v4691 = vmul.f32 %v4659, 9.0
        %v4692 = vmul.f32 %v4660, 9.0
        %v4693 = vmul.f32 %v4661, 9.0
        %v4694 = vmul.f32 %v4662, 9.0
        %v4695 = vmul.f32 %v4663, 9.0
        %v4696 = vmul.f32 %v4664, 9.0
        %v4697 = vmul.f32 %v4665, 9.0
        %v4698 = vmul.f32 %v4666, 9.0
        %v4699 = vmul.f32 %v4667, 9.0
        %v4700 = vmul.f32 %v4668, 9.0
        %v4701 = vmul.f32 %v4669, 9.0
        %v4702 = vmul.f32 %v4670, 9.0
        %v4703 = vmul.f32 %v4671, 9.0
        %v4704 = vmul.f32 %v4672, 9.0
        %v4705 = vmul.f32 %v4673, 9.0
        %v4706 = vmul.f32 %v4674, 9.0
        %v4707 = vmul.f32 %v4675, 9.0
        %v4708 = vmul.f32 %v4676, 9.0
        %v4709 = vmul.f32 %v4677, 9.0
        %v4710 = vmul.f32 %v4678, 9.0
        %v4711 = vmul.f32 %v4679, 9.0
        %v4712 = vsub.f32 %v4520, %v4680
        %v4713 = vsub.f32 %v4521, %v4681
        %v4714 = vsub.f32 %v4522, %v4682
        %v4715 = vsub.f32 %v4523, %v4683
        %v4716 = vsub.f32 %v4524, %v4684
        %v4717 = vsub.f32 %v4525, %v4685
        %v4718 = vsub.f32 %v4526, %v4686
        %v4719 = vsub.f32 %v4527, %v4687
        %v4720 = vsub.f32 %v4528, %v4688
        %v4721 = vsub.f32 %v4529, %v4689
        %v4722 = vsub.f32 %v4530, %v4690
        %v4723 = vsub.f32 %v4531, %v4691
        %v4724 = vsub.f32 %v4532, %v4692
        %v4725 = vsub.f32 %v4533, %v4693
        %v4726 = vsub.f32 %v4534, %v4694
        %v4727 = vsub.f32 %v4535, %v4695
        %v4728 = vsub.f32 %v4536, %v4696
        %v4729 = vsub.f32 %v4537, %v4697
        %v4730 = vsub.f32 %v4538, %v4698
        %v4731 = vsub.f32 %v4539, %v4699
        %v4732 = vsub.f32 %v4540, %v4700
        %v4733 = vsub.f32 %v4541, %v4701
        %v4734 = vsub.f32 %v4542, %v4702
        %v4735 = vsub.f32 %v4543, %v4703
        %v4736 = vsub.f32 %v4544, %v4704
        %v4737 = vsub.f32 %v4545, %v4705
        %v4738 = vsub.f32 %v4546, %v4706
        %v4739 = vsub.f32 %v4547, %v4707
        %v4740 = vsub.f32 %v4548, %v4708
        %v4741 = vsub.f32 %v4549, %v4709
        %v4742 = vsub.f32 %v4550, %v4710
        %v4743 = vsub.f32 %v4551, %v4711
        %vm4744 = vcmp.ge.f32.partialorder %v4712, 9.0
        %vm4745 = vcmp.ge.f32.partialorder %v4713, 9.0
        %vm4746 = vcmp.ge.f32.partialorder %v4714, 9.0
        %vm4747 = vcmp.ge.f32.partialorder %v4715, 9.0
        %vm4748 = vcmp.ge.f32.partialorder %v4716, 9.0
        %vm4749 = vcmp.ge.f32.partialorder %v4717, 9.0
        %vm4750 = vcmp.ge.f32.partialorder %v4718, 9.0
        %vm4751 = vcmp.ge.f32.partialorder %v4719, 9.0
        %vm4752 = vcmp.ge.f32.partialorder %v4720, 9.0
        %vm4753 = vcmp.ge.f32.partialorder %v4721, 9.0
        %vm4754 = vcmp.ge.f32.partialorder %v4722, 9.0
        %vm4755 = vcmp.ge.f32.partialorder %v4723, 9.0
        %vm4756 = vcmp.ge.f32.partialorder %v4724, 9.0
        %vm4757 = vcmp.ge.f32.partialorder %v4725, 9.0
        %vm4758 = vcmp.ge.f32.partialorder %v4726, 9.0
        %vm4759 = vcmp.ge.f32.partialorder %v4727, 9.0
        %vm4760 = vcmp.ge.f32.partialorder %v4728, 9.0
        %vm4761 = vcmp.ge.f32.partialorder %v4729, 9.0
        %vm4762 = vcmp.ge.f32.partialorder %v4730, 9.0
        %vm4763 = vcmp.ge.f32.partialorder %v4731, 9.0
        %vm4764 = vcmp.ge.f32.partialorder %v4732, 9.0
        %vm4765 = vcmp.ge.f32.partialorder %v4733, 9.0
        %vm4766 = vcmp.ge.f32.partialorder %v4734, 9.0
        %vm4767 = vcmp.ge.f32.partialorder %v4735, 9.0
        %vm4768 = vcmp.ge.f32.partialorder %v4736, 9.0
        %vm4769 = vcmp.ge.f32.partialorder %v4737, 9.0
        %vm4770 = vcmp.ge.f32.partialorder %v4738, 9.0
        %vm4771 = vcmp.ge.f32.partialorder %v4739, 9.0
        %vm4772 = vcmp.ge.f32.partialorder %v4740, 9.0
        %vm4773 = vcmp.ge.f32.partialorder %v4741, 9.0
        %vm4774 = vcmp.ge.f32.partialorder %v4742, 9.0
        %vm4775 = vcmp.ge.f32.partialorder %v4743, 9.0
        %v4776 = vsel %vm4744, 1, 0
        %v4777 = vsel %vm4745, 1, 0
        %v4778 = vsel %vm4746, 1, 0
        %v4779 = vsel %vm4747, 1, 0
        %v4780 = vsel %vm4748, 1, 0
        %v4781 = vsel %vm4749, 1, 0
        %v4782 = vsel %vm4750, 1, 0
        %v4783 = vsel %vm4751, 1, 0
        %v4784 = vsel %vm4752, 1, 0
        %v4785 = vsel %vm4753, 1, 0
        %v4786 = vsel %vm4754, 1, 0
        %v4787 = vsel %vm4755, 1, 0
        %v4788 = vsel %vm4756, 1, 0
        %v4789 = vsel %vm4757, 1, 0
        %v4790 = vsel %vm4758, 1, 0
        %v4791 = vsel %vm4759, 1, 0
        %v4792 = vsel %vm4760, 1, 0
        %v4793 = vsel %vm4761, 1, 0
        %v4794 = vsel %vm4762, 1, 0
        %v4795 = vsel %vm4763, 1, 0
        %v4796 = vsel %vm4764, 1, 0
        %v4797 = vsel %vm4765, 1, 0
        %v4798 = vsel %vm4766, 1, 0
        %v4799 = vsel %vm4767, 1, 0
        %v4800 = vsel %vm4768, 1, 0
        %v4801 = vsel %vm4769, 1, 0
        %v4802 = vsel %vm4770, 1, 0
        %v4803 = vsel %vm4771, 1, 0
        %v4804 = vsel %vm4772, 1, 0
        %v4805 = vsel %vm4773, 1, 0
        %v4806 = vsel %vm4774, 1, 0
        %v4807 = vsel %vm4775, 1, 0
        %v4808 = vcvt.s32.f32 %v4776
        %v4809 = vcvt.s32.f32 %v4777
        %v4810 = vcvt.s32.f32 %v4778
        %v4811 = vcvt.s32.f32 %v4779
        %v4812 = vcvt.s32.f32 %v4780
        %v4813 = vcvt.s32.f32 %v4781
        %v4814 = vcvt.s32.f32 %v4782
        %v4815 = vcvt.s32.f32 %v4783
        %v4816 = vcvt.s32.f32 %v4784
        %v4817 = vcvt.s32.f32 %v4785
        %v4818 = vcvt.s32.f32 %v4786
        %v4819 = vcvt.s32.f32 %v4787
        %v4820 = vcvt.s32.f32 %v4788
        %v4821 = vcvt.s32.f32 %v4789
        %v4822 = vcvt.s32.f32 %v4790
        %v4823 = vcvt.s32.f32 %v4791
        %v4824 = vcvt.s32.f32 %v4792
        %v4825 = vcvt.s32.f32 %v4793
        %v4826 = vcvt.s32.f32 %v4794
        %v4827 = vcvt.s32.f32 %v4795
        %v4828 = vcvt.s32.f32 %v4796
        %v4829 = vcvt.s32.f32 %v4797
        %v4830 = vcvt.s32.f32 %v4798
        %v4831 = vcvt.s32.f32 %v4799
        %v4832 = vcvt.s32.f32 %v4800
        %v4833 = vcvt.s32.f32 %v4801
        %v4834 = vcvt.s32.f32 %v4802
        %v4835 = vcvt.s32.f32 %v4803
        %v4836 = vcvt.s32.f32 %v4804
        %v4837 = vcvt.s32.f32 %v4805
        %v4838 = vcvt.s32.f32 %v4806
        %v4839 = vcvt.s32.f32 %v4807
        %v4840 = vadd.f32 %v4648, %v4808
        %v4841 = vadd.f32 %v4649, %v4809
        %v4842 = vadd.f32 %v4650, %v4810
        %v4843 = vadd.f32 %v4651, %v4811
        %v4844 = vadd.f32 %v4652, %v4812
        %v4845 = vadd.f32 %v4653, %v4813
        %v4846 = vadd.f32 %v4654, %v4814
        %v4847 = vadd.f32 %v4655, %v4815
        %v4848 = vadd.f32 %v4656, %v4816
        %v4849 = vadd.f32 %v4657, %v4817
        %v4850 = vadd.f32 %v4658, %v4818
        %v4851 = vadd.f32 %v4659, %v4819
        %v4852 = vadd.f32 %v4660, %v4820
        %v4853 = vadd.f32 %v4661, %v4821
        %v4854 = vadd.f32 %v4662, %v4822
        %v4855 = vadd.f32 %v4663, %v4823
        %v4856 = vadd.f32 %v4664, %v4824
        %v4857 = vadd.f32 %v4665, %v4825
        %v4858 = vadd.f32 %v4666, %v4826
        %v4859 = vadd.f32 %v4667, %v4827
        %v4860 = vadd.f32 %v4668, %v4828
        %v4861 = vadd.f32 %v4669, %v4829
        %v4862 = vadd.f32 %v4670, %v4830
        %v4863 = vadd.f32 %v4671, %v4831
        %v4864 = vadd.f32 %v4672, %v4832
        %v4865 = vadd.f32 %v4673, %v4833
        %v4866 = vadd.f32 %v4674, %v4834
        %v4867 = vadd.f32 %v4675, %v4835
        %v4868 = vadd.f32 %v4676, %v4836
        %v4869 = vadd.f32 %v4677, %v4837
        %v4870 = vadd.f32 %v4678, %v4838
        %v4871 = vadd.f32 %v4679, %v4839
        %vm4872 = vcmp.lt.f32.partialorder %v4712, 0.0
        %vm4873 = vcmp.lt.f32.partialorder %v4713, 0.0
        %vm4874 = vcmp.lt.f32.partialorder %v4714, 0.0
        %vm4875 = vcmp.lt.f32.partialorder %v4715, 0.0
        %vm4876 = vcmp.lt.f32.partialorder %v4716, 0.0
        %vm4877 = vcmp.lt.f32.partialorder %v4717, 0.0
        %vm4878 = vcmp.lt.f32.partialorder %v4718, 0.0
        %vm4879 = vcmp.lt.f32.partialorder %v4719, 0.0
        %vm4880 = vcmp.lt.f32.partialorder %v4720, 0.0
        %vm4881 = vcmp.lt.f32.partialorder %v4721, 0.0
        %vm4882 = vcmp.lt.f32.partialorder %v4722, 0.0
        %vm4883 = vcmp.lt.f32.partialorder %v4723, 0.0
        %vm4884 = vcmp.lt.f32.partialorder %v4724, 0.0
        %vm4885 = vcmp.lt.f32.partialorder %v4725, 0.0
        %vm4886 = vcmp.lt.f32.partialorder %v4726, 0.0
        %vm4887 = vcmp.lt.f32.partialorder %v4727, 0.0
        %vm4888 = vcmp.lt.f32.partialorder %v4728, 0.0
        %vm4889 = vcmp.lt.f32.partialorder %v4729, 0.0
        %vm4890 = vcmp.lt.f32.partialorder %v4730, 0.0
        %vm4891 = vcmp.lt.f32.partialorder %v4731, 0.0
        %vm4892 = vcmp.lt.f32.partialorder %v4732, 0.0
        %vm4893 = vcmp.lt.f32.partialorder %v4733, 0.0
        %vm4894 = vcmp.lt.f32.partialorder %v4734, 0.0
        %vm4895 = vcmp.lt.f32.partialorder %v4735, 0.0
        %vm4896 = vcmp.lt.f32.partialorder %v4736, 0.0
        %vm4897 = vcmp.lt.f32.partialorder %v4737, 0.0
        %vm4898 = vcmp.lt.f32.partialorder %v4738, 0.0
        %vm4899 = vcmp.lt.f32.partialorder %v4739, 0.0
        %vm4900 = vcmp.lt.f32.partialorder %v4740, 0.0
        %vm4901 = vcmp.lt.f32.partialorder %v4741, 0.0
        %vm4902 = vcmp.lt.f32.partialorder %v4742, 0.0
        %vm4903 = vcmp.lt.f32.partialorder %v4743, 0.0
        %v4904 = vsel %vm4872, 1, 0
        %v4905 = vsel %vm4873, 1, 0
        %v4906 = vsel %vm4874, 1, 0
        %v4907 = vsel %vm4875, 1, 0
        %v4908 = vsel %vm4876, 1, 0
        %v4909 = vsel %vm4877, 1, 0
        %v4910 = vsel %vm4878, 1, 0
        %v4911 = vsel %vm4879, 1, 0
        %v4912 = vsel %vm4880, 1, 0
        %v4913 = vsel %vm4881, 1, 0
        %v4914 = vsel %vm4882, 1, 0
        %v4915 = vsel %vm4883, 1, 0
        %v4916 = vsel %vm4884, 1, 0
        %v4917 = vsel %vm4885, 1, 0
        %v4918 = vsel %vm4886, 1, 0
        %v4919 = vsel %vm4887, 1, 0
        %v4920 = vsel %vm4888, 1, 0
        %v4921 = vsel %vm4889, 1, 0
        %v4922 = vsel %vm4890, 1, 0
        %v4923 = vsel %vm4891, 1, 0
        %v4924 = vsel %vm4892, 1, 0
        %v4925 = vsel %vm4893, 1, 0
        %v4926 = vsel %vm4894, 1, 0
        %v4927 = vsel %vm4895, 1, 0
        %v4928 = vsel %vm4896, 1, 0
        %v4929 = vsel %vm4897, 1, 0
        %v4930 = vsel %vm4898, 1, 0
        %v4931 = vsel %vm4899, 1, 0
        %v4932 = vsel %vm4900, 1, 0
        %v4933 = vsel %vm4901, 1, 0
        %v4934 = vsel %vm4902, 1, 0
        %v4935 = vsel %vm4903, 1, 0
        %v4936 = vcvt.s32.f32 %v4904
        %v4937 = vcvt.s32.f32 %v4905
        %v4938 = vcvt.s32.f32 %v4906
        %v4939 = vcvt.s32.f32 %v4907
        %v4940 = vcvt.s32.f32 %v4908
        %v4941 = vcvt.s32.f32 %v4909
        %v4942 = vcvt.s32.f32 %v4910
        %v4943 = vcvt.s32.f32 %v4911
        %v4944 = vcvt.s32.f32 %v4912
        %v4945 = vcvt.s32.f32 %v4913
        %v4946 = vcvt.s32.f32 %v4914
        %v4947 = vcvt.s32.f32 %v4915
        %v4948 = vcvt.s32.f32 %v4916
        %v4949 = vcvt.s32.f32 %v4917
        %v4950 = vcvt.s32.f32 %v4918
        %v4951 = vcvt.s32.f32 %v4919
        %v4952 = vcvt.s32.f32 %v4920
        %v4953 = vcvt.s32.f32 %v4921
        %v4954 = vcvt.s32.f32 %v4922
        %v4955 = vcvt.s32.f32 %v4923
        %v4956 = vcvt.s32.f32 %v4924
        %v4957 = vcvt.s32.f32 %v4925
        %v4958 = vcvt.s32.f32 %v4926
        %v4959 = vcvt.s32.f32 %v4927
        %v4960 = vcvt.s32.f32 %v4928
        %v4961 = vcvt.s32.f32 %v4929
        %v4962 = vcvt.s32.f32 %v4930
        %v4963 = vcvt.s32.f32 %v4931
        %v4964 = vcvt.s32.f32 %v4932
        %v4965 = vcvt.s32.f32 %v4933
        %v4966 = vcvt.s32.f32 %v4934
        %v4967 = vcvt.s32.f32 %v4935
        %v4968 = vsub.f32 %v4840, %v4936
        %v4969 = vsub.f32 %v4841, %v4937
        %v4970 = vsub.f32 %v4842, %v4938
        %v4971 = vsub.f32 %v4843, %v4939
        %v4972 = vsub.f32 %v4844, %v4940
        %v4973 = vsub.f32 %v4845, %v4941
        %v4974 = vsub.f32 %v4846, %v4942
        %v4975 = vsub.f32 %v4847, %v4943
        %v4976 = vsub.f32 %v4848, %v4944
        %v4977 = vsub.f32 %v4849, %v4945
        %v4978 = vsub.f32 %v4850, %v4946
        %v4979 = vsub.f32 %v4851, %v4947
        %v4980 = vsub.f32 %v4852, %v4948
        %v4981 = vsub.f32 %v4853, %v4949
        %v4982 = vsub.f32 %v4854, %v4950
        %v4983 = vsub.f32 %v4855, %v4951
        %v4984 = vsub.f32 %v4856, %v4952
        %v4985 = vsub.f32 %v4857, %v4953
        %v4986 = vsub.f32 %v4858, %v4954
        %v4987 = vsub.f32 %v4859, %v4955
        %v4988 = vsub.f32 %v4860, %v4956
        %v4989 = vsub.f32 %v4861, %v4957
        %v4990 = vsub.f32 %v4862, %v4958
        %v4991 = vsub.f32 %v4863, %v4959
        %v4992 = vsub.f32 %v4864, %v4960
        %v4993 = vsub.f32 %v4865, %v4961
        %v4994 = vsub.f32 %v4866, %v4962
        %v4995 = vsub.f32 %v4867, %v4963
        %v4996 = vsub.f32 %v4868, %v4964
        %v4997 = vsub.f32 %v4869, %v4965
        %v4998 = vsub.f32 %v4870, %v4966
        %v4999 = vsub.f32 %v4871, %v4967
        %v5000 = vmul.f32 %v4968, 9.0
        %v5001 = vmul.f32 %v4969, 9.0
        %v5002 = vmul.f32 %v4970, 9.0
        %v5003 = vmul.f32 %v4971, 9.0
        %v5004 = vmul.f32 %v4972, 9.0
        %v5005 = vmul.f32 %v4973, 9.0
        %v5006 = vmul.f32 %v4974, 9.0
        %v5007 = vmul.f32 %v4975, 9.0
        %v5008 = vmul.f32 %v4976, 9.0
        %v5009 = vmul.f32 %v4977, 9.0
        %v5010 = vmul.f32 %v4978, 9.0
        %v5011 = vmul.f32 %v4979, 9.0
        %v5012 = vmul.f32 %v4980, 9.0
        %v5013 = vmul.f32 %v4981, 9.0
        %v5014 = vmul.f32 %v4982, 9.0
        %v5015 = vmul.f32 %v4983, 9.0
        %v5016 = vmul.f32 %v4984, 9.0
        %v5017 = vmul.f32 %v4985, 9.0
        %v5018 = vmul.f32 %v4986, 9.0
        %v5019 = vmul.f32 %v4987, 9.0
        %v5020 = vmul.f32 %v4988, 9.0
        %v5021 = vmul.f32 %v4989, 9.0
        %v5022 = vmul.f32 %v4990, 9.0
        %v5023 = vmul.f32 %v4991, 9.0
        %v5024 = vmul.f32 %v4992, 9.0
        %v5025 = vmul.f32 %v4993, 9.0
        %v5026 = vmul.f32 %v4994, 9.0
        %v5027 = vmul.f32 %v4995, 9.0
        %v5028 = vmul.f32 %v4996, 9.0
        %v5029 = vmul.f32 %v4997, 9.0
        %v5030 = vmul.f32 %v4998, 9.0
        %v5031 = vmul.f32 %v4999, 9.0
        %v5032 = vsub.f32 %v4520, %v5000
        %v5033 = vsub.f32 %v4521, %v5001
        %v5034 = vsub.f32 %v4522, %v5002
        %v5035 = vsub.f32 %v4523, %v5003
        %v5036 = vsub.f32 %v4524, %v5004
        %v5037 = vsub.f32 %v4525, %v5005
        %v5038 = vsub.f32 %v4526, %v5006
        %v5039 = vsub.f32 %v4527, %v5007
        %v5040 = vsub.f32 %v4528, %v5008
        %v5041 = vsub.f32 %v4529, %v5009
        %v5042 = vsub.f32 %v4530, %v5010
        %v5043 = vsub.f32 %v4531, %v5011
        %v5044 = vsub.f32 %v4532, %v5012
        %v5045 = vsub.f32 %v4533, %v5013
        %v5046 = vsub.f32 %v4534, %v5014
        %v5047 = vsub.f32 %v4535, %v5015
        %v5048 = vsub.f32 %v4536, %v5016
        %v5049 = vsub.f32 %v4537, %v5017
        %v5050 = vsub.f32 %v4538, %v5018
        %v5051 = vsub.f32 %v4539, %v5019
        %v5052 = vsub.f32 %v4540, %v5020
        %v5053 = vsub.f32 %v4541, %v5021
        %v5054 = vsub.f32 %v4542, %v5022
        %v5055 = vsub.f32 %v4543, %v5023
        %v5056 = vsub.f32 %v4544, %v5024
        %v5057 = vsub.f32 %v4545, %v5025
        %v5058 = vsub.f32 %v4546, %v5026
        %v5059 = vsub.f32 %v4547, %v5027
        %v5060 = vsub.f32 %v4548, %v5028
        %v5061 = vsub.f32 %v4549, %v5029
        %v5062 = vsub.f32 %v4550, %v5030
        %v5063 = vsub.f32 %v4551, %v5031
        %v5064 = vsub.f32 %v4584, %v1160
        %v5065 = vsub.f32 %v4584, %v1164
        %v5066 = vsub.f32 %v4585, %v1160
        %v5067 = vsub.f32 %v4585, %v1164
        %v5068 = vsub.f32 %v4586, %v1160
        %v5069 = vsub.f32 %v4586, %v1164
        %v5070 = vsub.f32 %v4587, %v1160
        %v5071 = vsub.f32 %v4587, %v1164
        %v5072 = vsub.f32 %v4588, %v1160
        %v5073 = vsub.f32 %v4588, %v1164
        %v5074 = vsub.f32 %v4589, %v1160
        %v5075 = vsub.f32 %v4589, %v1164
        %v5076 = vsub.f32 %v4590, %v1160
        %v5077 = vsub.f32 %v4590, %v1164
        %v5078 = vsub.f32 %v4591, %v1160
        %v5079 = vsub.f32 %v4591, %v1164
        %v5080 = vsub.f32 %v4592, %v1160
        %v5081 = vsub.f32 %v4592, %v1164
        %v5082 = vsub.f32 %v4593, %v1160
        %v5083 = vsub.f32 %v4593, %v1164
        %v5084 = vsub.f32 %v4594, %v1160
        %v5085 = vsub.f32 %v4594, %v1164
        %v5086 = vsub.f32 %v4595, %v1160
        %v5087 = vsub.f32 %v4595, %v1164
        %v5088 = vsub.f32 %v4596, %v1160
        %v5089 = vsub.f32 %v4596, %v1164
        %v5090 = vsub.f32 %v4597, %v1160
        %v5091 = vsub.f32 %v4597, %v1164
        %v5092 = vsub.f32 %v4598, %v1160
        %v5093 = vsub.f32 %v4598, %v1164
        %v5094 = vsub.f32 %v4599, %v1160
        %v5095 = vsub.f32 %v4599, %v1164
        %v5096 = vsub.f32 %v4600, %v1160
        %v5097 = vsub.f32 %v4600, %v1164
        %v5098 = vsub.f32 %v4601, %v1160
        %v5099 = vsub.f32 %v4601, %v1164
        %v5100 = vsub.f32 %v4602, %v1160
        %v5101 = vsub.f32 %v4602, %v1164
        %v5102 = vsub.f32 %v4603, %v1160
        %v5103 = vsub.f32 %v4603, %v1164
        %v5104 = vsub.f32 %v4604, %v1160
        %v5105 = vsub.f32 %v4604, %v1164
        %v5106 = vsub.f32 %v4605, %v1160
        %v5107 = vsub.f32 %v4605, %v1164
        %v5108 = vsub.f32 %v4606, %v1160
        %v5109 = vsub.f32 %v4606, %v1164
        %v5110 = vsub.f32 %v4607, %v1160
        %v5111 = vsub.f32 %v4607, %v1164
        %v5112 = vsub.f32 %v4608, %v1160
        %v5113 = vsub.f32 %v4608, %v1164
        %v5114 = vsub.f32 %v4609, %v1160
        %v5115 = vsub.f32 %v4609, %v1164
        %v5116 = vsub.f32 %v4610, %v1160
        %v5117 = vsub.f32 %v4610, %v1164
        %v5118 = vsub.f32 %v4611, %v1160
        %v5119 = vsub.f32 %v4611, %v1164
        %v5120 = vsub.f32 %v4612, %v1160
        %v5121 = vsub.f32 %v4612, %v1164
        %v5122 = vsub.f32 %v4613, %v1160
        %v5123 = vsub.f32 %v4613, %v1164
        %v5124 = vsub.f32 %v4614, %v1160
        %v5125 = vsub.f32 %v4614, %v1164
        %v5126 = vsub.f32 %v4615, %v1160
        %v5127 = vsub.f32 %v4615, %v1164
        %v5128 = vand.u32 2147483647, %v5064
        %v5129 = vand.u32 2147483647, %v5065
        %v5130 = vand.u32 2147483647, %v5066
        %v5131 = vand.u32 2147483647, %v5067
        %v5132 = vand.u32 2147483647, %v5068
        %v5133 = vand.u32 2147483647, %v5069
        %v5134 = vand.u32 2147483647, %v5070
        %v5135 = vand.u32 2147483647, %v5071
        %v5136 = vand.u32 2147483647, %v5072
        %v5137 = vand.u32 2147483647, %v5073
        %v5138 = vand.u32 2147483647, %v5074
        %v5139 = vand.u32 2147483647, %v5075
        %v5140 = vand.u32 2147483647, %v5076
        %v5141 = vand.u32 2147483647, %v5077
        %v5142 = vand.u32 2147483647, %v5078
        %v5143 = vand.u32 2147483647, %v5079
        %v5144 = vand.u32 2147483647, %v5080
        %v5145 = vand.u32 2147483647, %v5081
        %v5146 = vand.u32 2147483647, %v5082
        %v5147 = vand.u32 2147483647, %v5083
        %v5148 = vand.u32 2147483647, %v5084
        %v5149 = vand.u32 2147483647, %v5085
        %v5150 = vand.u32 2147483647, %v5086
        %v5151 = vand.u32 2147483647, %v5087
        %v5152 = vand.u32 2147483647, %v5088
        %v5153 = vand.u32 2147483647, %v5089
        %v5154 = vand.u32 2147483647, %v5090
        %v5155 = vand.u32 2147483647, %v5091
        %v5156 = vand.u32 2147483647, %v5092
        %v5157 = vand.u32 2147483647, %v5093
        %v5158 = vand.u32 2147483647, %v5094
        %v5159 = vand.u32 2147483647, %v5095
        %v5160 = vand.u32 2147483647, %v5096
        %v5161 = vand.u32 2147483647, %v5097
        %v5162 = vand.u32 2147483647, %v5098
        %v5163 = vand.u32 2147483647, %v5099
        %v5164 = vand.u32 2147483647, %v5100
        %v5165 = vand.u32 2147483647, %v5101
        %v5166 = vand.u32 2147483647, %v5102
        %v5167 = vand.u32 2147483647, %v5103
        %v5168 = vand.u32 2147483647, %v5104
        %v5169 = vand.u32 2147483647, %v5105
        %v5170 = vand.u32 2147483647, %v5106
        %v5171 = vand.u32 2147483647, %v5107
        %v5172 = vand.u32 2147483647, %v5108
        %v5173 = vand.u32 2147483647, %v5109
        %v5174 = vand.u32 2147483647, %v5110
        %v5175 = vand.u32 2147483647, %v5111
        %v5176 = vand.u32 2147483647, %v5112
        %v5177 = vand.u32 2147483647, %v5113
        %v5178 = vand.u32 2147483647, %v5114
        %v5179 = vand.u32 2147483647, %v5115
        %v5180 = vand.u32 2147483647, %v5116
        %v5181 = vand.u32 2147483647, %v5117
        %v5182 = vand.u32 2147483647, %v5118
        %v5183 = vand.u32 2147483647, %v5119
        %v5184 = vand.u32 2147483647, %v5120
        %v5185 = vand.u32 2147483647, %v5121
        %v5186 = vand.u32 2147483647, %v5122
        %v5187 = vand.u32 2147483647, %v5123
        %v5188 = vand.u32 2147483647, %v5124
        %v5189 = vand.u32 2147483647, %v5125
        %v5190 = vand.u32 2147483647, %v5126
        %v5191 = vand.u32 2147483647, %v5127
        %v5192 = vsub.f32 1.0, %v5128
        %v5193 = vsub.f32 1.0, %v5129
        %v5194 = vsub.f32 1.0, %v5130
        %v5195 = vsub.f32 1.0, %v5131
        %v5196 = vsub.f32 1.0, %v5132
        %v5197 = vsub.f32 1.0, %v5133
        %v5198 = vsub.f32 1.0, %v5134
        %v5199 = vsub.f32 1.0, %v5135
        %v5200 = vsub.f32 1.0, %v5136
        %v5201 = vsub.f32 1.0, %v5137
        %v5202 = vsub.f32 1.0, %v5138
        %v5203 = vsub.f32 1.0, %v5139
        %v5204 = vsub.f32 1.0, %v5140
        %v5205 = vsub.f32 1.0, %v5141
        %v5206 = vsub.f32 1.0, %v5142
        %v5207 = vsub.f32 1.0, %v5143
        %v5208 = vsub.f32 1.0, %v5144
        %v5209 = vsub.f32 1.0, %v5145
        %v5210 = vsub.f32 1.0, %v5146
        %v5211 = vsub.f32 1.0, %v5147
        %v5212 = vsub.f32 1.0, %v5148
        %v5213 = vsub.f32 1.0, %v5149
        %v5214 = vsub.f32 1.0, %v5150
        %v5215 = vsub.f32 1.0, %v5151
        %v5216 = vsub.f32 1.0, %v5152
        %v5217 = vsub.f32 1.0, %v5153
        %v5218 = vsub.f32 1.0, %v5154
        %v5219 = vsub.f32 1.0, %v5155
        %v5220 = vsub.f32 1.0, %v5156
        %v5221 = vsub.f32 1.0, %v5157
        %v5222 = vsub.f32 1.0, %v5158
        %v5223 = vsub.f32 1.0, %v5159
        %v5224 = vsub.f32 1.0, %v5160
        %v5225 = vsub.f32 1.0, %v5161
        %v5226 = vsub.f32 1.0, %v5162
        %v5227 = vsub.f32 1.0, %v5163
        %v5228 = vsub.f32 1.0, %v5164
        %v5229 = vsub.f32 1.0, %v5165
        %v5230 = vsub.f32 1.0, %v5166
        %v5231 = vsub.f32 1.0, %v5167
        %v5232 = vsub.f32 1.0, %v5168
        %v5233 = vsub.f32 1.0, %v5169
        %v5234 = vsub.f32 1.0, %v5170
        %v5235 = vsub.f32 1.0, %v5171
        %v5236 = vsub.f32 1.0, %v5172
        %v5237 = vsub.f32 1.0, %v5173
        %v5238 = vsub.f32 1.0, %v5174
        %v5239 = vsub.f32 1.0, %v5175
        %v5240 = vsub.f32 1.0, %v5176
        %v5241 = vsub.f32 1.0, %v5177
        %v5242 = vsub.f32 1.0, %v5178
        %v5243 = vsub.f32 1.0, %v5179
        %v5244 = vsub.f32 1.0, %v5180
        %v5245 = vsub.f32 1.0, %v5181
        %v5246 = vsub.f32 1.0, %v5182
        %v5247 = vsub.f32 1.0, %v5183
        %v5248 = vsub.f32 1.0, %v5184
        %v5249 = vsub.f32 1.0, %v5185
        %v5250 = vsub.f32 1.0, %v5186
        %v5251 = vsub.f32 1.0, %v5187
        %v5252 = vsub.f32 1.0, %v5188
        %v5253 = vsub.f32 1.0, %v5189
        %v5254 = vsub.f32 1.0, %v5190
        %v5255 = vsub.f32 1.0, %v5191
        %v5256 = vmax.f32 %v5192, 0.0
        %v5257 = vmax.f32 %v5193, 0.0
        %v5258 = vmax.f32 %v5194, 0.0
        %v5259 = vmax.f32 %v5195, 0.0
        %v5260 = vmax.f32 %v5196, 0.0
        %v5261 = vmax.f32 %v5197, 0.0
        %v5262 = vmax.f32 %v5198, 0.0
        %v5263 = vmax.f32 %v5199, 0.0
        %v5264 = vmax.f32 %v5200, 0.0
        %v5265 = vmax.f32 %v5201, 0.0
        %v5266 = vmax.f32 %v5202, 0.0
        %v5267 = vmax.f32 %v5203, 0.0
        %v5268 = vmax.f32 %v5204, 0.0
        %v5269 = vmax.f32 %v5205, 0.0
        %v5270 = vmax.f32 %v5206, 0.0
        %v5271 = vmax.f32 %v5207, 0.0
        %v5272 = vmax.f32 %v5208, 0.0
        %v5273 = vmax.f32 %v5209, 0.0
        %v5274 = vmax.f32 %v5210, 0.0
        %v5275 = vmax.f32 %v5211, 0.0
        %v5276 = vmax.f32 %v5212, 0.0
        %v5277 = vmax.f32 %v5213, 0.0
        %v5278 = vmax.f32 %v5214, 0.0
        %v5279 = vmax.f32 %v5215, 0.0
        %v5280 = vmax.f32 %v5216, 0.0
        %v5281 = vmax.f32 %v5217, 0.0
        %v5282 = vmax.f32 %v5218, 0.0
        %v5283 = vmax.f32 %v5219, 0.0
        %v5284 = vmax.f32 %v5220, 0.0
        %v5285 = vmax.f32 %v5221, 0.0
        %v5286 = vmax.f32 %v5222, 0.0
        %v5287 = vmax.f32 %v5223, 0.0
        %v5288 = vmax.f32 %v5224, 0.0
        %v5289 = vmax.f32 %v5225, 0.0
        %v5290 = vmax.f32 %v5226, 0.0
        %v5291 = vmax.f32 %v5227, 0.0
        %v5292 = vmax.f32 %v5228, 0.0
        %v5293 = vmax.f32 %v5229, 0.0
        %v5294 = vmax.f32 %v5230, 0.0
        %v5295 = vmax.f32 %v5231, 0.0
        %v5296 = vmax.f32 %v5232, 0.0
        %v5297 = vmax.f32 %v5233, 0.0
        %v5298 = vmax.f32 %v5234, 0.0
        %v5299 = vmax.f32 %v5235, 0.0
        %v5300 = vmax.f32 %v5236, 0.0
        %v5301 = vmax.f32 %v5237, 0.0
        %v5302 = vmax.f32 %v5238, 0.0
        %v5303 = vmax.f32 %v5239, 0.0
        %v5304 = vmax.f32 %v5240, 0.0
        %v5305 = vmax.f32 %v5241, 0.0
        %v5306 = vmax.f32 %v5242, 0.0
        %v5307 = vmax.f32 %v5243, 0.0
        %v5308 = vmax.f32 %v5244, 0.0
        %v5309 = vmax.f32 %v5245, 0.0
        %v5310 = vmax.f32 %v5246, 0.0
        %v5311 = vmax.f32 %v5247, 0.0
        %v5312 = vmax.f32 %v5248, 0.0
        %v5313 = vmax.f32 %v5249, 0.0
        %v5314 = vmax.f32 %v5250, 0.0
        %v5315 = vmax.f32 %v5251, 0.0
        %v5316 = vmax.f32 %v5252, 0.0
        %v5317 = vmax.f32 %v5253, 0.0
        %v5318 = vmax.f32 %v5254, 0.0
        %v5319 = vmax.f32 %v5255, 0.0
        %v5320 = vsub.f32 %v5032, %v1427
        %v5321 = vsub.f32 %v5032, %v1431
        %v5322 = vsub.f32 %v5033, %v1427
        %v5323 = vsub.f32 %v5033, %v1431
        %v5324 = vsub.f32 %v5034, %v1427
        %v5325 = vsub.f32 %v5034, %v1431
        %v5326 = vsub.f32 %v5035, %v1427
        %v5327 = vsub.f32 %v5035, %v1431
        %v5328 = vsub.f32 %v5036, %v1427
        %v5329 = vsub.f32 %v5036, %v1431
        %v5330 = vsub.f32 %v5037, %v1427
        %v5331 = vsub.f32 %v5037, %v1431
        %v5332 = vsub.f32 %v5038, %v1427
        %v5333 = vsub.f32 %v5038, %v1431
        %v5334 = vsub.f32 %v5039, %v1427
        %v5335 = vsub.f32 %v5039, %v1431
        %v5336 = vsub.f32 %v5040, %v1427
        %v5337 = vsub.f32 %v5040, %v1431
        %v5338 = vsub.f32 %v5041, %v1427
        %v5339 = vsub.f32 %v5041, %v1431
        %v5340 = vsub.f32 %v5042, %v1427
        %v5341 = vsub.f32 %v5042, %v1431
        %v5342 = vsub.f32 %v5043, %v1427
        %v5343 = vsub.f32 %v5043, %v1431
        %v5344 = vsub.f32 %v5044, %v1427
        %v5345 = vsub.f32 %v5044, %v1431
        %v5346 = vsub.f32 %v5045, %v1427
        %v5347 = vsub.f32 %v5045, %v1431
        %v5348 = vsub.f32 %v5046, %v1427
        %v5349 = vsub.f32 %v5046, %v1431
        %v5350 = vsub.f32 %v5047, %v1427
        %v5351 = vsub.f32 %v5047, %v1431
        %v5352 = vsub.f32 %v5048, %v1427
        %v5353 = vsub.f32 %v5048, %v1431
        %v5354 = vsub.f32 %v5049, %v1427
        %v5355 = vsub.f32 %v5049, %v1431
        %v5356 = vsub.f32 %v5050, %v1427
        %v5357 = vsub.f32 %v5050, %v1431
        %v5358 = vsub.f32 %v5051, %v1427
        %v5359 = vsub.f32 %v5051, %v1431
        %v5360 = vsub.f32 %v5052, %v1427
        %v5361 = vsub.f32 %v5052, %v1431
        %v5362 = vsub.f32 %v5053, %v1427
        %v5363 = vsub.f32 %v5053, %v1431
        %v5364 = vsub.f32 %v5054, %v1427
        %v5365 = vsub.f32 %v5054, %v1431
        %v5366 = vsub.f32 %v5055, %v1427
        %v5367 = vsub.f32 %v5055, %v1431
        %v5368 = vsub.f32 %v5056, %v1427
        %v5369 = vsub.f32 %v5056, %v1431
        %v5370 = vsub.f32 %v5057, %v1427
        %v5371 = vsub.f32 %v5057, %v1431
        %v5372 = vsub.f32 %v5058, %v1427
        %v5373 = vsub.f32 %v5058, %v1431
        %v5374 = vsub.f32 %v5059, %v1427
        %v5375 = vsub.f32 %v5059, %v1431
        %v5376 = vsub.f32 %v5060, %v1427
        %v5377 = vsub.f32 %v5060, %v1431
        %v5378 = vsub.f32 %v5061, %v1427
        %v5379 = vsub.f32 %v5061, %v1431
        %v5380 = vsub.f32 %v5062, %v1427
        %v5381 = vsub.f32 %v5062, %v1431
        %v5382 = vsub.f32 %v5063, %v1427
        %v5383 = vsub.f32 %v5063, %v1431
        %v5384 = vand.u32 2147483647, %v5320
        %v5385 = vand.u32 2147483647, %v5321
        %v5386 = vand.u32 2147483647, %v5322
        %v5387 = vand.u32 2147483647, %v5323
        %v5388 = vand.u32 2147483647, %v5324
        %v5389 = vand.u32 2147483647, %v5325
        %v5390 = vand.u32 2147483647, %v5326
        %v5391 = vand.u32 2147483647, %v5327
        %v5392 = vand.u32 2147483647, %v5328
        %v5393 = vand.u32 2147483647, %v5329
        %v5394 = vand.u32 2147483647, %v5330
        %v5395 = vand.u32 2147483647, %v5331
        %v5396 = vand.u32 2147483647, %v5332
        %v5397 = vand.u32 2147483647, %v5333
        %v5398 = vand.u32 2147483647, %v5334
        %v5399 = vand.u32 2147483647, %v5335
        %v5400 = vand.u32 2147483647, %v5336
        %v5401 = vand.u32 2147483647, %v5337
        %v5402 = vand.u32 2147483647, %v5338
        %v5403 = vand.u32 2147483647, %v5339
        %v5404 = vand.u32 2147483647, %v5340
        %v5405 = vand.u32 2147483647, %v5341
        %v5406 = vand.u32 2147483647, %v5342
        %v5407 = vand.u32 2147483647, %v5343
        %v5408 = vand.u32 2147483647, %v5344
        %v5409 = vand.u32 2147483647, %v5345
        %v5410 = vand.u32 2147483647, %v5346
        %v5411 = vand.u32 2147483647, %v5347
        %v5412 = vand.u32 2147483647, %v5348
        %v5413 = vand.u32 2147483647, %v5349
        %v5414 = vand.u32 2147483647, %v5350
        %v5415 = vand.u32 2147483647, %v5351
        %v5416 = vand.u32 2147483647, %v5352
        %v5417 = vand.u32 2147483647, %v5353
        %v5418 = vand.u32 2147483647, %v5354
        %v5419 = vand.u32 2147483647, %v5355
        %v5420 = vand.u32 2147483647, %v5356
        %v5421 = vand.u32 2147483647, %v5357
        %v5422 = vand.u32 2147483647, %v5358
        %v5423 = vand.u32 2147483647, %v5359
        %v5424 = vand.u32 2147483647, %v5360
        %v5425 = vand.u32 2147483647, %v5361
        %v5426 = vand.u32 2147483647, %v5362
        %v5427 = vand.u32 2147483647, %v5363
        %v5428 = vand.u32 2147483647, %v5364
        %v5429 = vand.u32 2147483647, %v5365
        %v5430 = vand.u32 2147483647, %v5366
        %v5431 = vand.u32 2147483647, %v5367
        %v5432 = vand.u32 2147483647, %v5368
        %v5433 = vand.u32 2147483647, %v5369
        %v5434 = vand.u32 2147483647, %v5370
        %v5435 = vand.u32 2147483647, %v5371
        %v5436 = vand.u32 2147483647, %v5372
        %v5437 = vand.u32 2147483647, %v5373
        %v5438 = vand.u32 2147483647, %v5374
        %v5439 = vand.u32 2147483647, %v5375
        %v5440 = vand.u32 2147483647, %v5376
        %v5441 = vand.u32 2147483647, %v5377
        %v5442 = vand.u32 2147483647, %v5378
        %v5443 = vand.u32 2147483647, %v5379
        %v5444 = vand.u32 2147483647, %v5380
        %v5445 = vand.u32 2147483647, %v5381
        %v5446 = vand.u32 2147483647, %v5382
        %v5447 = vand.u32 2147483647, %v5383
        %v5448 = vsub.f32 1.0, %v5384
        %v5449 = vsub.f32 1.0, %v5385
        %v5450 = vsub.f32 1.0, %v5386
        %v5451 = vsub.f32 1.0, %v5387
        %v5452 = vsub.f32 1.0, %v5388
        %v5453 = vsub.f32 1.0, %v5389
        %v5454 = vsub.f32 1.0, %v5390
        %v5455 = vsub.f32 1.0, %v5391
        %v5456 = vsub.f32 1.0, %v5392
        %v5457 = vsub.f32 1.0, %v5393
        %v5458 = vsub.f32 1.0, %v5394
        %v5459 = vsub.f32 1.0, %v5395
        %v5460 = vsub.f32 1.0, %v5396
        %v5461 = vsub.f32 1.0, %v5397
        %v5462 = vsub.f32 1.0, %v5398
        %v5463 = vsub.f32 1.0, %v5399
        %v5464 = vsub.f32 1.0, %v5400
        %v5465 = vsub.f32 1.0, %v5401
        %v5466 = vsub.f32 1.0, %v5402
        %v5467 = vsub.f32 1.0, %v5403
        %v5468 = vsub.f32 1.0, %v5404
        %v5469 = vsub.f32 1.0, %v5405
        %v5470 = vsub.f32 1.0, %v5406
        %v5471 = vsub.f32 1.0, %v5407
        %v5472 = vsub.f32 1.0, %v5408
        %v5473 = vsub.f32 1.0, %v5409
        %v5474 = vsub.f32 1.0, %v5410
        %v5475 = vsub.f32 1.0, %v5411
        %v5476 = vsub.f32 1.0, %v5412
        %v5477 = vsub.f32 1.0, %v5413
        %v5478 = vsub.f32 1.0, %v5414
        %v5479 = vsub.f32 1.0, %v5415
        %v5480 = vsub.f32 1.0, %v5416
        %v5481 = vsub.f32 1.0, %v5417
        %v5482 = vsub.f32 1.0, %v5418
        %v5483 = vsub.f32 1.0, %v5419
        %v5484 = vsub.f32 1.0, %v5420
        %v5485 = vsub.f32 1.0, %v5421
        %v5486 = vsub.f32 1.0, %v5422
        %v5487 = vsub.f32 1.0, %v5423
        %v5488 = vsub.f32 1.0, %v5424
        %v5489 = vsub.f32 1.0, %v5425
        %v5490 = vsub.f32 1.0, %v5426
        %v5491 = vsub.f32 1.0, %v5427
        %v5492 = vsub.f32 1.0, %v5428
        %v5493 = vsub.f32 1.0, %v5429
        %v5494 = vsub.f32 1.0, %v5430
        %v5495 = vsub.f32 1.0, %v5431
        %v5496 = vsub.f32 1.0, %v5432
        %v5497 = vsub.f32 1.0, %v5433
        %v5498 = vsub.f32 1.0, %v5434
        %v5499 = vsub.f32 1.0, %v5435
        %v5500 = vsub.f32 1.0, %v5436
        %v5501 = vsub.f32 1.0, %v5437
        %v5502 = vsub.f32 1.0, %v5438
        %v5503 = vsub.f32 1.0, %v5439
        %v5504 = vsub.f32 1.0, %v5440
        %v5505 = vsub.f32 1.0, %v5441
        %v5506 = vsub.f32 1.0, %v5442
        %v5507 = vsub.f32 1.0, %v5443
        %v5508 = vsub.f32 1.0, %v5444
        %v5509 = vsub.f32 1.0, %v5445
        %v5510 = vsub.f32 1.0, %v5446
        %v5511 = vsub.f32 1.0, %v5447
        %v5512 = vmax.f32 %v5448, 0.0
        %v5513 = vmax.f32 %v5449, 0.0
        %v5514 = vmax.f32 %v5450, 0.0
        %v5515 = vmax.f32 %v5451, 0.0
        %v5516 = vmax.f32 %v5452, 0.0
        %v5517 = vmax.f32 %v5453, 0.0
        %v5518 = vmax.f32 %v5454, 0.0
        %v5519 = vmax.f32 %v5455, 0.0
        %v5520 = vmax.f32 %v5456, 0.0
        %v5521 = vmax.f32 %v5457, 0.0
        %v5522 = vmax.f32 %v5458, 0.0
        %v5523 = vmax.f32 %v5459, 0.0
        %v5524 = vmax.f32 %v5460, 0.0
        %v5525 = vmax.f32 %v5461, 0.0
        %v5526 = vmax.f32 %v5462, 0.0
        %v5527 = vmax.f32 %v5463, 0.0
        %v5528 = vmax.f32 %v5464, 0.0
        %v5529 = vmax.f32 %v5465, 0.0
        %v5530 = vmax.f32 %v5466, 0.0
        %v5531 = vmax.f32 %v5467, 0.0
        %v5532 = vmax.f32 %v5468, 0.0
        %v5533 = vmax.f32 %v5469, 0.0
        %v5534 = vmax.f32 %v5470, 0.0
        %v5535 = vmax.f32 %v5471, 0.0
        %v5536 = vmax.f32 %v5472, 0.0
        %v5537 = vmax.f32 %v5473, 0.0
        %v5538 = vmax.f32 %v5474, 0.0
        %v5539 = vmax.f32 %v5475, 0.0
        %v5540 = vmax.f32 %v5476, 0.0
        %v5541 = vmax.f32 %v5477, 0.0
        %v5542 = vmax.f32 %v5478, 0.0
        %v5543 = vmax.f32 %v5479, 0.0
        %v5544 = vmax.f32 %v5480, 0.0
        %v5545 = vmax.f32 %v5481, 0.0
        %v5546 = vmax.f32 %v5482, 0.0
        %v5547 = vmax.f32 %v5483, 0.0
        %v5548 = vmax.f32 %v5484, 0.0
        %v5549 = vmax.f32 %v5485, 0.0
        %v5550 = vmax.f32 %v5486, 0.0
        %v5551 = vmax.f32 %v5487, 0.0
        %v5552 = vmax.f32 %v5488, 0.0
        %v5553 = vmax.f32 %v5489, 0.0
        %v5554 = vmax.f32 %v5490, 0.0
        %v5555 = vmax.f32 %v5491, 0.0
        %v5556 = vmax.f32 %v5492, 0.0
        %v5557 = vmax.f32 %v5493, 0.0
        %v5558 = vmax.f32 %v5494, 0.0
        %v5559 = vmax.f32 %v5495, 0.0
        %v5560 = vmax.f32 %v5496, 0.0
        %v5561 = vmax.f32 %v5497, 0.0
        %v5562 = vmax.f32 %v5498, 0.0
        %v5563 = vmax.f32 %v5499, 0.0
        %v5564 = vmax.f32 %v5500, 0.0
        %v5565 = vmax.f32 %v5501, 0.0
        %v5566 = vmax.f32 %v5502, 0.0
        %v5567 = vmax.f32 %v5503, 0.0
        %v5568 = vmax.f32 %v5504, 0.0
        %v5569 = vmax.f32 %v5505, 0.0
        %v5570 = vmax.f32 %v5506, 0.0
        %v5571 = vmax.f32 %v5507, 0.0
        %v5572 = vmax.f32 %v5508, 0.0
        %v5573 = vmax.f32 %v5509, 0.0
        %v5574 = vmax.f32 %v5510, 0.0
        %v5575 = vmax.f32 %v5511, 0.0
        %v5576 = vmul.f32 %v5256, %v5512
        %v5577 = vmul.f32 %v5257, %v5513
        %v5578 = vmul.f32 %v5258, %v5514
        %v5579 = vmul.f32 %v5259, %v5515
        %v5580 = vmul.f32 %v5260, %v5516
        %v5581 = vmul.f32 %v5261, %v5517
        %v5582 = vmul.f32 %v5262, %v5518
        %v5583 = vmul.f32 %v5263, %v5519
        %v5584 = vmul.f32 %v5264, %v5520
        %v5585 = vmul.f32 %v5265, %v5521
        %v5586 = vmul.f32 %v5266, %v5522
        %v5587 = vmul.f32 %v5267, %v5523
        %v5588 = vmul.f32 %v5268, %v5524
        %v5589 = vmul.f32 %v5269, %v5525
        %v5590 = vmul.f32 %v5270, %v5526
        %v5591 = vmul.f32 %v5271, %v5527
        %v5592 = vmul.f32 %v5272, %v5528
        %v5593 = vmul.f32 %v5273, %v5529
        %v5594 = vmul.f32 %v5274, %v5530
        %v5595 = vmul.f32 %v5275, %v5531
        %v5596 = vmul.f32 %v5276, %v5532
        %v5597 = vmul.f32 %v5277, %v5533
        %v5598 = vmul.f32 %v5278, %v5534
        %v5599 = vmul.f32 %v5279, %v5535
        %v5600 = vmul.f32 %v5280, %v5536
        %v5601 = vmul.f32 %v5281, %v5537
        %v5602 = vmul.f32 %v5282, %v5538
        %v5603 = vmul.f32 %v5283, %v5539
        %v5604 = vmul.f32 %v5284, %v5540
        %v5605 = vmul.f32 %v5285, %v5541
        %v5606 = vmul.f32 %v5286, %v5542
        %v5607 = vmul.f32 %v5287, %v5543
        %v5608 = vmul.f32 %v5288, %v5544
        %v5609 = vmul.f32 %v5289, %v5545
        %v5610 = vmul.f32 %v5290, %v5546
        %v5611 = vmul.f32 %v5291, %v5547
        %v5612 = vmul.f32 %v5292, %v5548
        %v5613 = vmul.f32 %v5293, %v5549
        %v5614 = vmul.f32 %v5294, %v5550
        %v5615 = vmul.f32 %v5295, %v5551
        %v5616 = vmul.f32 %v5296, %v5552
        %v5617 = vmul.f32 %v5297, %v5553
        %v5618 = vmul.f32 %v5298, %v5554
        %v5619 = vmul.f32 %v5299, %v5555
        %v5620 = vmul.f32 %v5300, %v5556
        %v5621 = vmul.f32 %v5301, %v5557
        %v5622 = vmul.f32 %v5302, %v5558
        %v5623 = vmul.f32 %v5303, %v5559
        %v5624 = vmul.f32 %v5304, %v5560
        %v5625 = vmul.f32 %v5305, %v5561
        %v5626 = vmul.f32 %v5306, %v5562
        %v5627 = vmul.f32 %v5307, %v5563
        %v5628 = vmul.f32 %v5308, %v5564
        %v5629 = vmul.f32 %v5309, %v5565
        %v5630 = vmul.f32 %v5310, %v5566
        %v5631 = vmul.f32 %v5311, %v5567
        %v5632 = vmul.f32 %v5312, %v5568
        %v5633 = vmul.f32 %v5313, %v5569
        %v5634 = vmul.f32 %v5314, %v5570
        %v5635 = vmul.f32 %v5315, %v5571
        %v5636 = vmul.f32 %v5316, %v5572
        %v5637 = vmul.f32 %v5317, %v5573
        %v5638 = vmul.f32 %v5318, %v5574
        %v5639 = vmul.f32 %v5319, %v5575
        %v5640 = vsub.f32 %v4968, %v1758
        %v5641 = vsub.f32 %v4968, %v1762
        %v5642 = vsub.f32 %v4969, %v1758
        %v5643 = vsub.f32 %v4969, %v1762
        %v5644 = vsub.f32 %v4970, %v1758
        %v5645 = vsub.f32 %v4970, %v1762
        %v5646 = vsub.f32 %v4971, %v1758
        %v5647 = vsub.f32 %v4971, %v1762
        %v5648 = vsub.f32 %v4972, %v1758
        %v5649 = vsub.f32 %v4972, %v1762
        %v5650 = vsub.f32 %v4973, %v1758
        %v5651 = vsub.f32 %v4973, %v1762
        %v5652 = vsub.f32 %v4974, %v1758
        %v5653 = vsub.f32 %v4974, %v1762
        %v5654 = vsub.f32 %v4975, %v1758
        %v5655 = vsub.f32 %v4975, %v1762
        %v5656 = vsub.f32 %v4976, %v1758
        %v5657 = vsub.f32 %v4976, %v1762
        %v5658 = vsub.f32 %v4977, %v1758
        %v5659 = vsub.f32 %v4977, %v1762
        %v5660 = vsub.f32 %v4978, %v1758
        %v5661 = vsub.f32 %v4978, %v1762
        %v5662 = vsub.f32 %v4979, %v1758
        %v5663 = vsub.f32 %v4979, %v1762
        %v5664 = vsub.f32 %v4980, %v1758
        %v5665 = vsub.f32 %v4980, %v1762
        %v5666 = vsub.f32 %v4981, %v1758
        %v5667 = vsub.f32 %v4981, %v1762
        %v5668 = vsub.f32 %v4982, %v1758
        %v5669 = vsub.f32 %v4982, %v1762
        %v5670 = vsub.f32 %v4983, %v1758
        %v5671 = vsub.f32 %v4983, %v1762
        %v5672 = vsub.f32 %v4984, %v1758
        %v5673 = vsub.f32 %v4984, %v1762
        %v5674 = vsub.f32 %v4985, %v1758
        %v5675 = vsub.f32 %v4985, %v1762
        %v5676 = vsub.f32 %v4986, %v1758
        %v5677 = vsub.f32 %v4986, %v1762
        %v5678 = vsub.f32 %v4987, %v1758
        %v5679 = vsub.f32 %v4987, %v1762
        %v5680 = vsub.f32 %v4988, %v1758
        %v5681 = vsub.f32 %v4988, %v1762
        %v5682 = vsub.f32 %v4989, %v1758
        %v5683 = vsub.f32 %v4989, %v1762
        %v5684 = vsub.f32 %v4990, %v1758
        %v5685 = vsub.f32 %v4990, %v1762
        %v5686 = vsub.f32 %v4991, %v1758
        %v5687 = vsub.f32 %v4991, %v1762
        %v5688 = vsub.f32 %v4992, %v1758
        %v5689 = vsub.f32 %v4992, %v1762
        %v5690 = vsub.f32 %v4993, %v1758
        %v5691 = vsub.f32 %v4993, %v1762
        %v5692 = vsub.f32 %v4994, %v1758
        %v5693 = vsub.f32 %v4994, %v1762
        %v5694 = vsub.f32 %v4995, %v1758
        %v5695 = vsub.f32 %v4995, %v1762
        %v5696 = vsub.f32 %v4996, %v1758
        %v5697 = vsub.f32 %v4996, %v1762
        %v5698 = vsub.f32 %v4997, %v1758
        %v5699 = vsub.f32 %v4997, %v1762
        %v5700 = vsub.f32 %v4998, %v1758
        %v5701 = vsub.f32 %v4998, %v1762
        %v5702 = vsub.f32 %v4999, %v1758
        %v5703 = vsub.f32 %v4999, %v1762
        %v5704 = vand.u32 2147483647, %v5640
        %v5705 = vand.u32 2147483647, %v5641
        %v5706 = vand.u32 2147483647, %v5642
        %v5707 = vand.u32 2147483647, %v5643
        %v5708 = vand.u32 2147483647, %v5644
        %v5709 = vand.u32 2147483647, %v5645
        %v5710 = vand.u32 2147483647, %v5646
        %v5711 = vand.u32 2147483647, %v5647
        %v5712 = vand.u32 2147483647, %v5648
        %v5713 = vand.u32 2147483647, %v5649
        %v5714 = vand.u32 2147483647, %v5650
        %v5715 = vand.u32 2147483647, %v5651
        %v5716 = vand.u32 2147483647, %v5652
        %v5717 = vand.u32 2147483647, %v5653
        %v5718 = vand.u32 2147483647, %v5654
        %v5719 = vand.u32 2147483647, %v5655
        %v5720 = vand.u32 2147483647, %v5656
        %v5721 = vand.u32 2147483647, %v5657
        %v5722 = vand.u32 2147483647, %v5658
        %v5723 = vand.u32 2147483647, %v5659
        %v5724 = vand.u32 2147483647, %v5660
        %v5725 = vand.u32 2147483647, %v5661
        %v5726 = vand.u32 2147483647, %v5662
        %v5727 = vand.u32 2147483647, %v5663
        %v5728 = vand.u32 2147483647, %v5664
        %v5729 = vand.u32 2147483647, %v5665
        %v5730 = vand.u32 2147483647, %v5666
        %v5731 = vand.u32 2147483647, %v5667
        %v5732 = vand.u32 2147483647, %v5668
        %v5733 = vand.u32 2147483647, %v5669
        %v5734 = vand.u32 2147483647, %v5670
        %v5735 = vand.u32 2147483647, %v5671
        %v5736 = vand.u32 2147483647, %v5672
        %v5737 = vand.u32 2147483647, %v5673
        %v5738 = vand.u32 2147483647, %v5674
        %v5739 = vand.u32 2147483647, %v5675
        %v5740 = vand.u32 2147483647, %v5676
        %v5741 = vand.u32 2147483647, %v5677
        %v5742 = vand.u32 2147483647, %v5678
        %v5743 = vand.u32 2147483647, %v5679
        %v5744 = vand.u32 2147483647, %v5680
        %v5745 = vand.u32 2147483647, %v5681
        %v5746 = vand.u32 2147483647, %v5682
        %v5747 = vand.u32 2147483647, %v5683
        %v5748 = vand.u32 2147483647, %v5684
        %v5749 = vand.u32 2147483647, %v5685
        %v5750 = vand.u32 2147483647, %v5686
        %v5751 = vand.u32 2147483647, %v5687
        %v5752 = vand.u32 2147483647, %v5688
        %v5753 = vand.u32 2147483647, %v5689
        %v5754 = vand.u32 2147483647, %v5690
        %v5755 = vand.u32 2147483647, %v5691
        %v5756 = vand.u32 2147483647, %v5692
        %v5757 = vand.u32 2147483647, %v5693
        %v5758 = vand.u32 2147483647, %v5694
        %v5759 = vand.u32 2147483647, %v5695
        %v5760 = vand.u32 2147483647, %v5696
        %v5761 = vand.u32 2147483647, %v5697
        %v5762 = vand.u32 2147483647, %v5698
        %v5763 = vand.u32 2147483647, %v5699
        %v5764 = vand.u32 2147483647, %v5700
        %v5765 = vand.u32 2147483647, %v5701
        %v5766 = vand.u32 2147483647, %v5702
        %v5767 = vand.u32 2147483647, %v5703
        %v5768 = vsub.f32 1.0, %v5704
        %v5769 = vsub.f32 1.0, %v5705
        %v5770 = vsub.f32 1.0, %v5706
        %v5771 = vsub.f32 1.0, %v5707
        %v5772 = vsub.f32 1.0, %v5708
        %v5773 = vsub.f32 1.0, %v5709
        %v5774 = vsub.f32 1.0, %v5710
        %v5775 = vsub.f32 1.0, %v5711
        %v5776 = vsub.f32 1.0, %v5712
        %v5777 = vsub.f32 1.0, %v5713
        %v5778 = vsub.f32 1.0, %v5714
        %v5779 = vsub.f32 1.0, %v5715
        %v5780 = vsub.f32 1.0, %v5716
        %v5781 = vsub.f32 1.0, %v5717
        %v5782 = vsub.f32 1.0, %v5718
        %v5783 = vsub.f32 1.0, %v5719
        %v5784 = vsub.f32 1.0, %v5720
        %v5785 = vsub.f32 1.0, %v5721
        %v5786 = vsub.f32 1.0, %v5722
        %v5787 = vsub.f32 1.0, %v5723
        %v5788 = vsub.f32 1.0, %v5724
        %v5789 = vsub.f32 1.0, %v5725
        %v5790 = vsub.f32 1.0, %v5726
        %v5791 = vsub.f32 1.0, %v5727
        %v5792 = vsub.f32 1.0, %v5728
        %v5793 = vsub.f32 1.0, %v5729
        %v5794 = vsub.f32 1.0, %v5730
        %v5795 = vsub.f32 1.0, %v5731
        %v5796 = vsub.f32 1.0, %v5732
        %v5797 = vsub.f32 1.0, %v5733
        %v5798 = vsub.f32 1.0, %v5734
        %v5799 = vsub.f32 1.0, %v5735
        %v5800 = vsub.f32 1.0, %v5736
        %v5801 = vsub.f32 1.0, %v5737
        %v5802 = vsub.f32 1.0, %v5738
        %v5803 = vsub.f32 1.0, %v5739
        %v5804 = vsub.f32 1.0, %v5740
        %v5805 = vsub.f32 1.0, %v5741
        %v5806 = vsub.f32 1.0, %v5742
        %v5807 = vsub.f32 1.0, %v5743
        %v5808 = vsub.f32 1.0, %v5744
        %v5809 = vsub.f32 1.0, %v5745
        %v5810 = vsub.f32 1.0, %v5746
        %v5811 = vsub.f32 1.0, %v5747
        %v5812 = vsub.f32 1.0, %v5748
        %v5813 = vsub.f32 1.0, %v5749
        %v5814 = vsub.f32 1.0, %v5750
        %v5815 = vsub.f32 1.0, %v5751
        %v5816 = vsub.f32 1.0, %v5752
        %v5817 = vsub.f32 1.0, %v5753
        %v5818 = vsub.f32 1.0, %v5754
        %v5819 = vsub.f32 1.0, %v5755
        %v5820 = vsub.f32 1.0, %v5756
        %v5821 = vsub.f32 1.0, %v5757
        %v5822 = vsub.f32 1.0, %v5758
        %v5823 = vsub.f32 1.0, %v5759
        %v5824 = vsub.f32 1.0, %v5760
        %v5825 = vsub.f32 1.0, %v5761
        %v5826 = vsub.f32 1.0, %v5762
        %v5827 = vsub.f32 1.0, %v5763
        %v5828 = vsub.f32 1.0, %v5764
        %v5829 = vsub.f32 1.0, %v5765
        %v5830 = vsub.f32 1.0, %v5766
        %v5831 = vsub.f32 1.0, %v5767
        %v5832 = vmax.f32 %v5768, 0.0
        %v5833 = vmax.f32 %v5769, 0.0
        %v5834 = vmax.f32 %v5770, 0.0
        %v5835 = vmax.f32 %v5771, 0.0
        %v5836 = vmax.f32 %v5772, 0.0
        %v5837 = vmax.f32 %v5773, 0.0
        %v5838 = vmax.f32 %v5774, 0.0
        %v5839 = vmax.f32 %v5775, 0.0
        %v5840 = vmax.f32 %v5776, 0.0
        %v5841 = vmax.f32 %v5777, 0.0
        %v5842 = vmax.f32 %v5778, 0.0
        %v5843 = vmax.f32 %v5779, 0.0
        %v5844 = vmax.f32 %v5780, 0.0
        %v5845 = vmax.f32 %v5781, 0.0
        %v5846 = vmax.f32 %v5782, 0.0
        %v5847 = vmax.f32 %v5783, 0.0
        %v5848 = vmax.f32 %v5784, 0.0
        %v5849 = vmax.f32 %v5785, 0.0
        %v5850 = vmax.f32 %v5786, 0.0
        %v5851 = vmax.f32 %v5787, 0.0
        %v5852 = vmax.f32 %v5788, 0.0
        %v5853 = vmax.f32 %v5789, 0.0
        %v5854 = vmax.f32 %v5790, 0.0
        %v5855 = vmax.f32 %v5791, 0.0
        %v5856 = vmax.f32 %v5792, 0.0
        %v5857 = vmax.f32 %v5793, 0.0
        %v5858 = vmax.f32 %v5794, 0.0
        %v5859 = vmax.f32 %v5795, 0.0
        %v5860 = vmax.f32 %v5796, 0.0
        %v5861 = vmax.f32 %v5797, 0.0
        %v5862 = vmax.f32 %v5798, 0.0
        %v5863 = vmax.f32 %v5799, 0.0
        %v5864 = vmax.f32 %v5800, 0.0
        %v5865 = vmax.f32 %v5801, 0.0
        %v5866 = vmax.f32 %v5802, 0.0
        %v5867 = vmax.f32 %v5803, 0.0
        %v5868 = vmax.f32 %v5804, 0.0
        %v5869 = vmax.f32 %v5805, 0.0
        %v5870 = vmax.f32 %v5806, 0.0
        %v5871 = vmax.f32 %v5807, 0.0
        %v5872 = vmax.f32 %v5808, 0.0
        %v5873 = vmax.f32 %v5809, 0.0
        %v5874 = vmax.f32 %v5810, 0.0
        %v5875 = vmax.f32 %v5811, 0.0
        %v5876 = vmax.f32 %v5812, 0.0
        %v5877 = vmax.f32 %v5813, 0.0
        %v5878 = vmax.f32 %v5814, 0.0
        %v5879 = vmax.f32 %v5815, 0.0
        %v5880 = vmax.f32 %v5816, 0.0
        %v5881 = vmax.f32 %v5817, 0.0
        %v5882 = vmax.f32 %v5818, 0.0
        %v5883 = vmax.f32 %v5819, 0.0
        %v5884 = vmax.f32 %v5820, 0.0
        %v5885 = vmax.f32 %v5821, 0.0
        %v5886 = vmax.f32 %v5822, 0.0
        %v5887 = vmax.f32 %v5823, 0.0
        %v5888 = vmax.f32 %v5824, 0.0
        %v5889 = vmax.f32 %v5825, 0.0
        %v5890 = vmax.f32 %v5826, 0.0
        %v5891 = vmax.f32 %v5827, 0.0
        %v5892 = vmax.f32 %v5828, 0.0
        %v5893 = vmax.f32 %v5829, 0.0
        %v5894 = vmax.f32 %v5830, 0.0
        %v5895 = vmax.f32 %v5831, 0.0
        %v5896 = vmul.f32 %v5576, %v5832
        %v5897 = vmul.f32 %v5577, %v5833
        %v5898 = vmul.f32 %v5578, %v5834
        %v5899 = vmul.f32 %v5579, %v5835
        %v5900 = vmul.f32 %v5580, %v5836
        %v5901 = vmul.f32 %v5581, %v5837
        %v5902 = vmul.f32 %v5582, %v5838
        %v5903 = vmul.f32 %v5583, %v5839
        %v5904 = vmul.f32 %v5584, %v5840
        %v5905 = vmul.f32 %v5585, %v5841
        %v5906 = vmul.f32 %v5586, %v5842
        %v5907 = vmul.f32 %v5587, %v5843
        %v5908 = vmul.f32 %v5588, %v5844
        %v5909 = vmul.f32 %v5589, %v5845
        %v5910 = vmul.f32 %v5590, %v5846
        %v5911 = vmul.f32 %v5591, %v5847
        %v5912 = vmul.f32 %v5592, %v5848
        %v5913 = vmul.f32 %v5593, %v5849
        %v5914 = vmul.f32 %v5594, %v5850
        %v5915 = vmul.f32 %v5595, %v5851
        %v5916 = vmul.f32 %v5596, %v5852
        %v5917 = vmul.f32 %v5597, %v5853
        %v5918 = vmul.f32 %v5598, %v5854
        %v5919 = vmul.f32 %v5599, %v5855
        %v5920 = vmul.f32 %v5600, %v5856
        %v5921 = vmul.f32 %v5601, %v5857
        %v5922 = vmul.f32 %v5602, %v5858
        %v5923 = vmul.f32 %v5603, %v5859
        %v5924 = vmul.f32 %v5604, %v5860
        %v5925 = vmul.f32 %v5605, %v5861
        %v5926 = vmul.f32 %v5606, %v5862
        %v5927 = vmul.f32 %v5607, %v5863
        %v5928 = vmul.f32 %v5608, %v5864
        %v5929 = vmul.f32 %v5609, %v5865
        %v5930 = vmul.f32 %v5610, %v5866
        %v5931 = vmul.f32 %v5611, %v5867
        %v5932 = vmul.f32 %v5612, %v5868
        %v5933 = vmul.f32 %v5613, %v5869
        %v5934 = vmul.f32 %v5614, %v5870
        %v5935 = vmul.f32 %v5615, %v5871
        %v5936 = vmul.f32 %v5616, %v5872
        %v5937 = vmul.f32 %v5617, %v5873
        %v5938 = vmul.f32 %v5618, %v5874
        %v5939 = vmul.f32 %v5619, %v5875
        %v5940 = vmul.f32 %v5620, %v5876
        %v5941 = vmul.f32 %v5621, %v5877
        %v5942 = vmul.f32 %v5622, %v5878
        %v5943 = vmul.f32 %v5623, %v5879
        %v5944 = vmul.f32 %v5624, %v5880
        %v5945 = vmul.f32 %v5625, %v5881
        %v5946 = vmul.f32 %v5626, %v5882
        %v5947 = vmul.f32 %v5627, %v5883
        %v5948 = vmul.f32 %v5628, %v5884
        %v5949 = vmul.f32 %v5629, %v5885
        %v5950 = vmul.f32 %v5630, %v5886
        %v5951 = vmul.f32 %v5631, %v5887
        %v5952 = vmul.f32 %v5632, %v5888
        %v5953 = vmul.f32 %v5633, %v5889
        %v5954 = vmul.f32 %v5634, %v5890
        %v5955 = vmul.f32 %v5635, %v5891
        %v5956 = vmul.f32 %v5636, %v5892
        %v5957 = vmul.f32 %v5637, %v5893
        %v5958 = vmul.f32 %v5638, %v5894
        %v5959 = vmul.f32 %v5639, %v5895
        %s5960 = scalar_lea.vmem [#allocation5], 64
        %v5961 = vld [vmem:[%s5960] sm:$0xff]
        %v5962 = vld [vmem:[%s5960 + $0x8] sm:$0xff]
        %v5963 = vld [vmem:[%s5960 + $0x10] sm:$0xff]
        %v5964 = vld [vmem:[%s5960 + $0x18] sm:$0xff]
        %5965 = vmatprep.subr.mxu0 %v5897
        %5966 = vmatpush1.msra.mxu0 %v5896
        %5967 = vmatprep.subr.mxu0 %v5899
        %5968 = vmatpush1.msra.mxu0 %v5898
        %5969 = vmatprep.subr.mxu0 %v5901
        %5970 = vmatpush1.msra.mxu0 %v5900
        %5971 = vmatprep.subr.mxu0 %v5903
        %5972 = vmatpush1.msra.mxu0 %v5902
        %5973 = vmatprep.subr.mxu0 %v5905
        %5974 = vmatpush1.msra.mxu0 %v5904
        %5975 = vmatprep.subr.mxu0 %v5907
        %5976 = vmatpush1.msra.mxu0 %v5906
        %5977 = vmatprep.subr.mxu0 %v5909
        %5978 = vmatpush1.msra.mxu0 %v5908
        %5979 = vmatprep.subr.mxu0 %v5911
        %5980 = vmatpush1.msra.mxu0 %v5910
        %5981 = vmatprep.subr.mxu0 %v5913
        %5982 = vmatpush1.msra.mxu0 %v5912
        %5983 = vmatprep.subr.mxu0 %v5915
        %5984 = vmatpush1.msra.mxu0 %v5914
        %5985 = vmatprep.subr.mxu0 %v5917
        %5986 = vmatpush1.msra.mxu0 %v5916
        %5987 = vmatprep.subr.mxu0 %v5919
        %5988 = vmatpush1.msra.mxu0 %v5918
        %5989 = vmatprep.subr.mxu0 %v5921
        %5990 = vmatpush1.msra.mxu0 %v5920
        %5991 = vmatprep.subr.mxu0 %v5923
        %5992 = vmatpush1.msra.mxu0 %v5922
        %5993 = vmatprep.subr.mxu0 %v5925
        %5994 = vmatpush1.msra.mxu0 %v5924
        %5995 = vmatprep.subr.mxu0 %v5927
        %5996 = vmatpush1.msra.mxu0 %v5926
        %5997 = vmatprep.subr.mxu0 %v5929
        %5998 = vmatpush1.msra.mxu0 %v5928
        %5999 = vmatprep.subr.mxu0 %v5931
        %6000 = vmatpush1.msra.mxu0 %v5930
        %6001 = vmatprep.subr.mxu0 %v5933
        %6002 = vmatpush1.msra.mxu0 %v5932
        %6003 = vmatprep.subr.mxu0 %v5935
        %6004 = vmatpush1.msra.mxu0 %v5934
        %6005 = vmatprep.subr.mxu0 %v5937
        %6006 = vmatpush1.msra.mxu0 %v5936
        %6007 = vmatprep.subr.mxu0 %v5939
        %6008 = vmatpush1.msra.mxu0 %v5938
        %6009 = vmatprep.subr.mxu0 %v5941
        %6010 = vmatpush1.msra.mxu0 %v5940
        %6011 = vmatprep.subr.mxu0 %v5943
        %6012 = vmatpush1.msra.mxu0 %v5942
        %6013 = vmatprep.subr.mxu0 %v5945
        %6014 = vmatpush1.msra.mxu0 %v5944
        %6015 = vmatprep.subr.mxu0 %v5947
        %6016 = vmatpush1.msra.mxu0 %v5946
        %6017 = vmatprep.subr.mxu0 %v5949
        %6018 = vmatpush1.msra.mxu0 %v5948
        %6019 = vmatprep.subr.mxu0 %v5951
        %6020 = vmatpush1.msra.mxu0 %v5950
        %6021 = vmatprep.subr.mxu0 %v5953
        %6022 = vmatpush1.msra.mxu0 %v5952
        %6023 = vmatprep.subr.mxu0 %v5955
        %6024 = vmatpush1.msra.mxu0 %v5954
        %6025 = vmatprep.subr.mxu0 %v5957
        %6026 = vmatpush1.msra.mxu0 %v5956
        %6027 = vmatprep.subr.mxu0 %v5959
        %6028 = vmatpush1.msra.mxu0 %v5958
        %6029 = vmatprep.mubr.f32.mxu0 %v5962
        %6030 = vmatmul.mubr.f32.gmra.mrb[0].mxu0 %v5961
        %v6031 = vpop.f32.mrb[0].mxu0
        %v6032 = vadd.f32 0.0, %v6031
        %v6033 = vpop.f32.mrb[0].mxu0
        %v6034 = vadd.f32 0.0, %v6033
        %6035 = vmatprep.mubr.f32.mxu0 %v5964
        %6036 = vmatmul.mubr.f32.gmra.mrb[0].mxu0 %v5963
        %v6037 = vpop.f32.mrb[0].mxu0
        %v6038 = vadd.f32 0.0, %v6037
        %v6039 = vpop.f32.mrb[0].mxu0
        %v6040 = vadd.f32 0.0, %v6039
        %6041 = vdwg.mxu0
        %v6042 = vadd.f32 %v4094, %v6032
        %v6043 = vadd.f32 %v4096, %v6034
        %v6044 = vadd.f32 %v4100, %v6038
        %v6045 = vadd.f32 %v4102, %v6040
        %6046 = vst [vmem:[%s174] sm:$0xff] %v6042
        %6047 = vst [vmem:[%s174 + $0x8] sm:$0xff] %v6043
        %6048 = vst [vmem:[%s174 + $0x10] sm:$0xff] %v6044
        %6049 = vst [vmem:[%s174 + $0x18] sm:$0xff] %v6045
        %s6050 = sand.u32 %s75, 1
        %s6051 = scalar_lea.sflag [#allocation4], %s6050
        %s6052 = sand.u32 %s75, 1
        %s6053 = smul.addr %s6052, 32
        %s6054 = scalar_lea.vmem [#allocation7], %s6053
        // Predicated region
        $region37: #{tpu_custom_call.1} parent=27 // pred_check
          %p6055 = pneg %p85
        $region38: #{tpu_custom_call.1} parent=27 // pred_check_branch
          %6057 = sbr.rel (%p6055) target = $region40
        $region39: #{tpu_custom_call.1} parent=27 // pred_region
          %s6058 = smul.u32 2, %s20
          %s6060 = ssub.s32 512, 512
          %6061 = vsyncadd %s6051, %s6060
          %s6062 = smul.addr %s6058, 128
          %s6063 = scalar_lea.hbm %s2, %s6062
          %s6064 = sshll.u32 %s6054, 4
          %s6065 = int_to_ptr.vmem [resolvable:$true] %s6064
          %6070 = dma.vmem_to_hbm [thread:$0]  %s6065, 512, %s6063, %s6051, 256, 512, 16
        $region40: #{tpu_custom_call.1} parent=27 // pred_fallthru
          _
      $region28: #{tpu_custom_call.1} parent=5 // pred_fallthru
        _
      %p6071 = scmp.le.s32.totalorder 2, %s15
      // Predicated region
      $region41: #{tpu_custom_call.1} parent=5 // pred_check
        %p6072 = pneg %p6071
      $region42: #{tpu_custom_call.1} parent=5 // pred_check_branch
        %6074 = sbr.rel (%p6072) target = $region44
      $region43: #{tpu_custom_call.1} parent=5 // pred_region
        %s6075 = ssub.s32 %s15, 2
        // Predicated region
        $region45: #{tpu_custom_call.1} parent=43 // pred_check
          %p6076 = pneg %p91
        $region46: #{tpu_custom_call.1} parent=43 // pred_check_branch
          %6078 = sbr.rel (%p6076) target = $region48
        $region47: #{tpu_custom_call.1} parent=43 // pred_region
          %s6079 = sand.u32 %s76, 1
          %s6080 = scalar_lea.sflag [#allocation4], %s6079
          %s6081 = sand.u32 %s76, 1
          %s6082 = smul.addr %s6081, 32
          %s6083 = scalar_lea.vmem [#allocation7], %s6082
          %6084 = dma.done %s6080, 512
        $region48: #{tpu_custom_call.1} parent=43 // pred_fallthru
          _
      $region44: #{tpu_custom_call.1} parent=5 // pred_fallthru
        _
    $region6: #{tpu_custom_call.1} parent=1 // loop_footer
      %s19 = sadd.s32 1, %s15
    $region7: #{tpu_custom_call.1} parent=1 // loop_footer_branch
      %14 = sbr.rel target = $region3
    $region8: #{tpu_custom_call.1} parent=1 // loop_exit
      _
    %6085 = vsyncpa [#allocation3], 1
    %s6086 = scalar_lea.sflag [#allocation3], 1
    %6087 = vsyncpa %s6086, 1
    %6088 = vsyncpa [#allocation6], 1
    %6089 = vsyncpa [#allocation4], 1
    %s6090 = scalar_lea.sflag [#allocation4], 1
    %6091 = vsyncpa %s6090, 1

</llo_original>
